<compile_context>
chip_gen: v6e
topology: v6e:2x2x1
jax: 0.10.0
libtpu: 0.0.40
codegen_flags: <defaults>
</compile_context>

<pallas_src>
import math
import jax
import jax.numpy as jnp
from jax import lax
from jax.experimental import pallas as pl
from jax.experimental.pallas import tpu as pltpu

# ---- small synthetic ViT hyper-parameters (shapes follow the real ViT) ----
B = 2              # batch
C = 3              # input channels
IMG = 32           # image size (small instead of 224)
PATCH = 16         # patch size (same as vit-base-patch16)
NP = (IMG // PATCH) ** 2          # 4 patches
SEQ = NP + 1                      # + CLS token = 5
BS = B * SEQ                      # flattened token count = 10
D = 32             # hidden size (small instead of 768)
NUM_HEADS = 4
DH = D // NUM_HEADS
HB = NUM_HEADS * BS               # head-stacked token count = 40
MLP = 64           # intermediate size (small instead of 3072)
LAYERS = 2         # encoder depth (small instead of 12)
NUM_CLASSES = 2    # replaced classifier head: Linear(num_ftrs, 2)
EPS = 1e-12        # HF ViT layer_norm_eps
PATCH_DIM = C * PATCH * PATCH


# ----------------------------- kernel helpers -----------------------------
def _norm(x):
    # LayerNorm without affine (gamma/beta are folded into the next matmul).
    mu = jnp.mean(x, axis=-1, keepdims=True)
    var = jnp.mean(jnp.square(x - mu), axis=-1, keepdims=True)
    return (x - mu) * lax.rsqrt(var + EPS)


# --------------------------- single fused kernel ---------------------------
def vit_fused_kernel(patches_ref, pw_ref, eb_ref, wqkv_ref, wow2_ref, w1_ref,
                     bias_ref, cw_ref, cb_ref, out_ref):
    f32 = jnp.float32
    bf16 = jnp.bfloat16

    # ---- patch embedding + (CLS / patch-bias / positional) additive table ----
    # patches rows at CLS positions are all-zero, so their matmul result is 0
    # and the CLS embedding comes entirely from eb_ref (built host-side).
    tok = jnp.dot(patches_ref[...], pw_ref[...], preferred_element_type=f32)
    x = tok + eb_ref[...]                                       # (BS, D) f32

    neg_inf = jnp.float32(-1e30)
    scale = jnp.float32(1.0 / math.sqrt(DH))

    # ---- constants built once from iotas (static, tiny) ----
    r40 = lax.broadcasted_iota(jnp.int32, (HB, BS), 0)
    c10 = lax.broadcasted_iota(jnp.int32, (HB, BS), 1)
    stack_sel = None                 # S[h*BS+i, i] = 1  (Q replication)
    mask40 = None                    # block-diagonal same-batch mask, stacked
    for h in range(NUM_HEADS):
        sel_h = (r40 == c10 + h * BS)
        stack_sel = sel_h if stack_sel is None else (stack_sel | sel_h)
        for b in range(B):
            blk = ((r40 >= h * BS + b * SEQ) & (r40 < h * BS + (b + 1) * SEQ)
                   & (c10 >= b * SEQ) & (c10 < (b + 1) * SEQ))
            mask40 = blk if mask40 is None else (mask40 | blk)
    S = stack_sel.astype(f32)                                   # (HB, BS)

    rh = lax.broadcasted_iota(jnp.int32, (HB, D), 0)
    ch = lax.broadcasted_iota(jnp.int32, (HB, D), 1)
    head_mask = None                 # row-block h keeps channels [h*DH,(h+1)*DH)
    for h in range(NUM_HEADS):
        blk = ((rh >= h * BS) & (rh < (h + 1) * BS)
               & (ch >= h * DH) & (ch < (h + 1) * DH))
        head_mask = blk if head_mask is None else (head_mask | blk)
    head_mask = head_mask.astype(f32)                           # (HB, D)

    ri = lax.broadcasted_iota(jnp.int32, (BS, HB), 0)
    cj = lax.broadcasted_iota(jnp.int32, (BS, HB), 1)
    recomb = None                    # R[i, h*BS+i] = 1  (head recombination)
    for h in range(NUM_HEADS):
        sel_h = (cj == ri + h * BS)
        recomb = sel_h if recomb is None else (recomb | sel_h)
    R = recomb.astype(f32)                                      # (BS, HB)

    # ---- encoder layers (static loop; all weights resident in VMEM) ----
    for l in range(LAYERS):
        wow2 = wow2_ref[l]              # (D + MLP, D) bf16 : [w_o ; w_2]
        bp = bias_ref[l]                # (4, 3D) f32 : [b_qkv; b_o; b_1; b_2]
        b_qkv = bp[0:1, :]
        b_o = bp[1:2, :D]
        b_1 = bp[2:3, :MLP]
        b_2 = bp[3:4, :D]

        # --- pre-LN MHSA (LN1 affine folded into w_qkv / b_qkv host-side) ---
        h1 = _norm(x)
        qkv = jnp.dot(h1.astype(bf16), wqkv_ref[l],
                      preferred_element_type=f32) + b_qkv        # (BS, 3D)
        q = qkv[:, :D]
        k = qkv[:, D:2 * D]
        v = qkv[:, 2 * D:]

        # head-stacked attention: 2 real matmuls + 2 tiny selection matmuls
        q_stack = jnp.dot(S, q, preferred_element_type=f32) * head_mask
        sc = lax.dot_general(q_stack, k, (((1,), (1,)), ((), ())),
                             preferred_element_type=f32) * scale  # (HB, BS)
        sc = jnp.where(mask40, sc, neg_inf)
        m = jnp.max(sc, axis=-1, keepdims=True)
        p = jnp.exp(sc - m)
        p = p * pl.reciprocal(jnp.sum(p, axis=-1, keepdims=True), approx=True)
        ctx_stack = jnp.dot(p, v, preferred_element_type=f32) * head_mask
        ctx = jnp.dot(R, ctx_stack, preferred_element_type=f32)  # (BS, D)

        x = x + jnp.dot(ctx.astype(bf16), wow2[:D],
                        preferred_element_type=f32) + b_o

        # --- pre-LN MLP (LN2 affine folded into w_1 / b_1 host-side) ---
        h2 = _norm(x)
        mm = jnp.dot(h2.astype(bf16), w1_ref[l],
                     preferred_element_type=f32) + b_1
        # TODO(synk): HF ViT uses exact (erf) GELU; tanh-approx GELU kept for safe Mosaic lowering.
        mm = jax.nn.gelu(mm, approximate=True)
        x = x + jnp.dot(mm.astype(bf16), wow2[D:],
                        preferred_element_type=f32) + b_2

    # ---- CLS extraction + final LN (affine folded into classifier) ----
    rb = lax.broadcasted_iota(jnp.int32, (B, BS), 0)
    rc = lax.broadcasted_iota(jnp.int32, (B, BS), 1)
    sel = (rc == rb * SEQ).astype(f32)                          # (B, BS)
    cls_tok = jnp.dot(sel, x, preferred_element_type=f32)       # (B, D)
    hf = _norm(cls_tok)
    out_ref[...] = (jnp.dot(hf, cw_ref[...], preferred_element_type=f32)
                    + cb_ref[...]).astype(out_ref.dtype)


# ------------------------------ pallas_call glue ----------------------------
def _full_spec(shape):
    nd = len(shape)
    return pl.BlockSpec(shape, lambda i, _nd=nd: (0,) * _nd)


def vit_forward(x, kp):
    patches = extract_patches(x).astype(jnp.bfloat16)           # (BS, PATCH_DIM)
    args = (patches, kp["patch_w"], kp["embed_bias"], kp["w_qkv"], kp["w_ow2"],
            kp["w_1"], kp["bias_pack"], kp["cls_w"], kp["cls_b"])
    return pl.pallas_call(
        vit_fused_kernel,
        out_shape=jax.ShapeDtypeStruct((B, NUM_CLASSES), jnp.float32),
        grid=(1,),
        in_specs=[_full_spec(a.shape) for a in args],
        out_specs=_full_spec((B, NUM_CLASSES)),
        compiler_params=pltpu.CompilerParams(dimension_semantics=("arbitrary",)),
    )(*args)


# ------------------------------ model wrapper -------------------------------
def extract_patches(x):
    # x: (B, C, H, W) NCHW -> (B*SEQ, C*P*P) with row-major (C, ph, pw) patch
    # vectors (identical to flattening the stride-P Conv2d into a matmul),
    # plus one all-zero row per batch at the CLS position.
    nh = IMG // PATCH
    p = x.reshape(B, C, nh, PATCH, nh, PATCH)
    p = p.transpose(0, 2, 4, 1, 3, 5)
    p = p.reshape(B, NP, PATCH_DIM)
    p = jnp.pad(p, ((0, 0), (1, 0), (0, 0)))
    return p.reshape(B * SEQ, PATCH_DIM)


def init_params(key):
    # "Logical" parameters mirroring the HF ViT layout (synthetic small-scale
    # init; pretrained weights can't be loaded in this self-contained script).
    ks = jax.random.split(key, 10)
    std = 0.02

    def nrm(k, shape):
        return (jax.random.normal(k, shape) * std).astype(jnp.float32)

    return {
        "patch_w": nrm(ks[0], (PATCH_DIM, D)),
        "patch_b": jnp.zeros((1, D), jnp.float32),
        "cls": nrm(ks[1], (1, D)),
        "pos": nrm(ks[2], (SEQ, D)),
        "ln_f_g": jnp.ones((1, D), jnp.float32),
        "ln_f_b": jnp.zeros((1, D), jnp.float32),
        "cls_w": nrm(ks[3], (D, NUM_CLASSES)),
        "cls_b": jnp.zeros((1, NUM_CLASSES), jnp.float32),
        # stacked per-layer parameters (leading axis = layer)
        "ln1_g": jnp.ones((LAYERS, 1, D), jnp.float32),
        "ln1_b": jnp.zeros((LAYERS, 1, D), jnp.float32),
        "w_q": nrm(ks[4], (LAYERS, D, D)),
        "w_k": nrm(ks[5], (LAYERS, D, D)),
        "w_v": nrm(ks[6], (LAYERS, D, D)),
        "b_q": jnp.zeros((LAYERS, 1, D), jnp.float32),
        "b_k": jnp.zeros((LAYERS, 1, D), jnp.float32),
        "b_v": jnp.zeros((LAYERS, 1, D), jnp.float32),
        "w_o": nrm(ks[7], (LAYERS, D, D)),
        "b_o": jnp.zeros((LAYERS, 1, D), jnp.float32),
        "ln2_g": jnp.ones((LAYERS, 1, D), jnp.float32),
        "ln2_b": jnp.zeros((LAYERS, 1, D), jnp.float32),
        "w_1": nrm(ks[8], (LAYERS, D, MLP)),
        "b_1": jnp.zeros((LAYERS, 1, MLP), jnp.float32),
        "w_2": nrm(ks[9], (LAYERS, MLP, D)),
        "b_2": jnp.zeros((LAYERS, 1, D), jnp.float32),
    }


def _fold_ln(g, beta, w, b):
    # (LN(x)*g + beta) @ W + b  ==  LN(x) @ (g[:,None]*W) + (beta @ W + b)
    # g, beta: (L,1,Din); w: (L,Din,Dout); b: (L,1,Dout)
    w_f = w * jnp.swapaxes(g, -1, -2)
    b_f = b + jnp.einsum("lij,ljk->lik", beta, w)
    return w_f, b_f


def _padlane(a, width):
    return jnp.pad(a, ((0, 0), (0, 0), (0, width - a.shape[-1])))


def pack_params(p):
    # Fold LN affines into the following matmuls, fuse QKV, and pack the
    # remaining parameters into 8 kernel operands (fewer / larger DMAs).
    w_qkv0 = jnp.concatenate([p["w_q"], p["w_k"], p["w_v"]], axis=-1)   # (L,D,3D)
    b_qkv0 = jnp.concatenate([p["b_q"], p["b_k"], p["b_v"]], axis=-1)   # (L,1,3D)
    w_qkv, b_qkv = _fold_ln(p["ln1_g"], p["ln1_b"], w_qkv0, b_qkv0)
    w_1, b_1 = _fold_ln(p["ln2_g"], p["ln2_b"], p["w_1"], p["b_1"])
    cw, cb = _fold_ln(p["ln_f_g"][None], p["ln_f_b"][None],
                      p["cls_w"][None], p["cls_b"][None])
    cw, cb = cw[0], cb[0]

    bias_pack = jnp.concatenate(
        [b_qkv,
         _padlane(p["b_o"], 3 * D),
         _padlane(b_1, 3 * D),
         _padlane(p["b_2"], 3 * D)], axis=1)                            # (L,4,3D)

    w_ow2 = jnp.concatenate([p["w_o"], p["w_2"]], axis=1)               # (L,D+MLP,D)

    # additive embedding table: CLS rows get cls+pos, patch rows get bias+pos
    row_add = jnp.concatenate([p["cls"], jnp.tile(p["patch_b"], (NP, 1))], axis=0)
    embed_bias = jnp.tile(p["pos"] + row_add, (B, 1))                   # (BS, D)

    return {
        "patch_w": p["patch_w"].astype(jnp.bfloat16),
        "embed_bias": embed_bias.astype(jnp.float32),
        "w_qkv": w_qkv.astype(jnp.bfloat16),
        "w_ow2": w_ow2.astype(jnp.bfloat16),
        "w_1": w_1.astype(jnp.bfloat16),
        "bias_pack": bias_pack.astype(jnp.float32),
        "cls_w": cw.astype(jnp.float32),
        "cls_b": cb.astype(jnp.float32),
    }


if __name__ == "__main__":
    key = jax.random.PRNGKey(0)
    pkey, xkey = jax.random.split(key)
    params = init_params(pkey)
    kparams = pack_params(params)
    x = jax.random.normal(xkey, (B, C, IMG, IMG), jnp.float32)  # NCHW input
    logits = jax.jit(lambda a: vit_forward(a, kparams))(x)
    jax.block_until_ready(logits)
    assert logits.shape == (B, NUM_CLASSES) and logits.dtype == jnp.float32
    assert bool(jnp.all(jnp.isfinite(logits)))
    print("KERNEL_OK")
</pallas_src>

<mosaic_0001>
module attributes {stable_mosaic.version = 11 : i64} {
  func.func @vit_fused_kernel(%arg0: i32, %arg1: memref<10x768xbf16, #tpu.memory_space<vmem>>, %arg2: memref<768x32xbf16, #tpu.memory_space<vmem>>, %arg3: memref<10x32xf32, #tpu.memory_space<vmem>>, %arg4: memref<2x32x96xbf16, #tpu.memory_space<vmem>>, %arg5: memref<2x96x32xbf16, #tpu.memory_space<vmem>>, %arg6: memref<2x32x64xbf16, #tpu.memory_space<vmem>>, %arg7: memref<2x4x96xf32, #tpu.memory_space<vmem>>, %arg8: memref<32x2xf32, #tpu.memory_space<vmem>>, %arg9: memref<1x2xf32, #tpu.memory_space<vmem>>, %arg10: memref<2x2xf32, #tpu.memory_space<vmem>>) attributes {dimension_semantics = [#tpu.dimension_semantics<arbitrary>], iteration_bounds = array<i64: 1>, scalar_prefetch = 0 : i64, scratch_operands = 0 : i64, tpu.core_type = #tpu.core_type<tc>, window_params = [{pipeline_mode = #tpu.pipeline_mode<synchronous>, transform_indices = @transform_0, window_bounds = array<i64: 10, 768>}, {pipeline_mode = #tpu.pipeline_mode<synchronous>, transform_indices = @transform_1, window_bounds = array<i64: 768, 32>}, {pipeline_mode = #tpu.pipeline_mode<synchronous>, transform_indices = @transform_2, window_bounds = array<i64: 10, 32>}, {pipeline_mode = #tpu.pipeline_mode<synchronous>, transform_indices = @transform_3, window_bounds = array<i64: 2, 32, 96>}, {pipeline_mode = #tpu.pipeline_mode<synchronous>, transform_indices = @transform_4, window_bounds = array<i64: 2, 96, 32>}, {pipeline_mode = #tpu.pipeline_mode<synchronous>, transform_indices = @transform_5, window_bounds = array<i64: 2, 32, 64>}, {pipeline_mode = #tpu.pipeline_mode<synchronous>, transform_indices = @transform_6, window_bounds = array<i64: 2, 4, 96>}, {pipeline_mode = #tpu.pipeline_mode<synchronous>, transform_indices = @transform_7, window_bounds = array<i64: 32, 2>}, {pipeline_mode = #tpu.pipeline_mode<synchronous>, transform_indices = @transform_8, window_bounds = array<i64: 1, 2>}, {pipeline_mode = #tpu.pipeline_mode<synchronous>, transform_indices = @transform_9, window_bounds = array<i64: 2, 2>}]} {
    %c0 = arith.constant 0 : index
    %c0_0 = arith.constant 0 : index
    %0 = vector.load %arg1[%c0, %c0_0] : memref<10x768xbf16, #tpu.memory_space<vmem>>, vector<10x768xbf16>
    %c0_1 = arith.constant 0 : index
    %c0_2 = arith.constant 0 : index
    %1 = vector.load %arg2[%c0_1, %c0_2] : memref<768x32xbf16, #tpu.memory_space<vmem>>, vector<768x32xbf16>
    %cst = arith.constant dense<0.000000e+00> : vector<10x32xf32>
    %2 = tpu.matmul %0, %1, %cst {dimension_numbers = #tpu.dot_dimension_numbers<[1], [0], [0], [1], [0, 0, 1, 1], [], []>} : vector<10x768xbf16>, vector<768x32xbf16>, vector<10x32xf32> -> vector<10x32xf32>
    %c0_3 = arith.constant 0 : index
    %c0_4 = arith.constant 0 : index
    %3 = vector.load %arg3[%c0_3, %c0_4] : memref<10x32xf32, #tpu.memory_space<vmem>>, vector<10x32xf32>
    %4 = arith.addf %2, %3 : vector<10x32xf32>
    %5 = tpu.iota {dimensions = array<i32: 0>} : vector<40x10xi32>
    %6 = tpu.iota {dimensions = array<i32: 1>} : vector<40x10xi32>
    %c0_i32 = arith.constant 0 : i32
    %7 = vector.broadcast %c0_i32 : i32 to vector<40x10xi32>
    %8 = arith.addi %6, %7 : vector<40x10xi32>
    %9 = arith.cmpi eq, %5, %8 : vector<40x10xi32>
    %c0_i32_5 = arith.constant 0 : i32
    %10 = vector.broadcast %c0_i32_5 : i32 to vector<40x10xi32>
    %11 = arith.cmpi sge, %5, %10 : vector<40x10xi32>
    %c5_i32 = arith.constant 5 : i32
    %12 = vector.broadcast %c5_i32 : i32 to vector<40x10xi32>
    %13 = arith.cmpi slt, %5, %12 : vector<40x10xi32>
    %14 = arith.andi %11, %13 : vector<40x10xi1>
    %c0_i32_6 = arith.constant 0 : i32
    %15 = vector.broadcast %c0_i32_6 : i32 to vector<40x10xi32>
    %16 = arith.cmpi sge, %6, %15 : vector<40x10xi32>
    %17 = arith.andi %14, %16 : vector<40x10xi1>
    %c5_i32_7 = arith.constant 5 : i32
    %18 = vector.broadcast %c5_i32_7 : i32 to vector<40x10xi32>
    %19 = arith.cmpi slt, %6, %18 : vector<40x10xi32>
    %20 = arith.andi %17, %19 : vector<40x10xi1>
    %c5_i32_8 = arith.constant 5 : i32
    %21 = vector.broadcast %c5_i32_8 : i32 to vector<40x10xi32>
    %22 = arith.cmpi sge, %5, %21 : vector<40x10xi32>
    %c10_i32 = arith.constant 10 : i32
    %23 = vector.broadcast %c10_i32 : i32 to vector<40x10xi32>
    %24 = arith.cmpi slt, %5, %23 : vector<40x10xi32>
    %25 = arith.andi %22, %24 : vector<40x10xi1>
    %c5_i32_9 = arith.constant 5 : i32
    %26 = vector.broadcast %c5_i32_9 : i32 to vector<40x10xi32>
    %27 = arith.cmpi sge, %6, %26 : vector<40x10xi32>
    %28 = arith.andi %25, %27 : vector<40x10xi1>
    %c10_i32_10 = arith.constant 10 : i32
    %29 = vector.broadcast %c10_i32_10 : i32 to vector<40x10xi32>
    %30 = arith.cmpi slt, %6, %29 : vector<40x10xi32>
    %31 = arith.andi %28, %30 : vector<40x10xi1>
    %32 = arith.ori %20, %31 : vector<40x10xi1>
    %c10_i32_11 = arith.constant 10 : i32
    %33 = vector.broadcast %c10_i32_11 : i32 to vector<40x10xi32>
    %34 = arith.addi %6, %33 : vector<40x10xi32>
    %35 = arith.cmpi eq, %5, %34 : vector<40x10xi32>
    %36 = arith.ori %9, %35 : vector<40x10xi1>
    %c10_i32_12 = arith.constant 10 : i32
    %37 = vector.broadcast %c10_i32_12 : i32 to vector<40x10xi32>
    %38 = arith.cmpi sge, %5, %37 : vector<40x10xi32>
    %c15_i32 = arith.constant 15 : i32
    %39 = vector.broadcast %c15_i32 : i32 to vector<40x10xi32>
    %40 = arith.cmpi slt, %5, %39 : vector<40x10xi32>
    %41 = arith.andi %38, %40 : vector<40x10xi1>
    %c0_i32_13 = arith.constant 0 : i32
    %42 = vector.broadcast %c0_i32_13 : i32 to vector<40x10xi32>
    %43 = arith.cmpi sge, %6, %42 : vector<40x10xi32>
    %44 = arith.andi %41, %43 : vector<40x10xi1>
    %c5_i32_14 = arith.constant 5 : i32
    %45 = vector.broadcast %c5_i32_14 : i32 to vector<40x10xi32>
    %46 = arith.cmpi slt, %6, %45 : vector<40x10xi32>
    %47 = arith.andi %44, %46 : vector<40x10xi1>
    %48 = arith.ori %32, %47 : vector<40x10xi1>
    %c15_i32_15 = arith.constant 15 : i32
    %49 = vector.broadcast %c15_i32_15 : i32 to vector<40x10xi32>
    %50 = arith.cmpi sge, %5, %49 : vector<40x10xi32>
    %c20_i32 = arith.constant 20 : i32
    %51 = vector.broadcast %c20_i32 : i32 to vector<40x10xi32>
    %52 = arith.cmpi slt, %5, %51 : vector<40x10xi32>
    %53 = arith.andi %50, %52 : vector<40x10xi1>
    %c5_i32_16 = arith.constant 5 : i32
    %54 = vector.broadcast %c5_i32_16 : i32 to vector<40x10xi32>
    %55 = arith.cmpi sge, %6, %54 : vector<40x10xi32>
    %56 = arith.andi %53, %55 : vector<40x10xi1>
    %c10_i32_17 = arith.constant 10 : i32
    %57 = vector.broadcast %c10_i32_17 : i32 to vector<40x10xi32>
    %58 = arith.cmpi slt, %6, %57 : vector<40x10xi32>
    %59 = arith.andi %56, %58 : vector<40x10xi1>
    %60 = arith.ori %48, %59 : vector<40x10xi1>
    %c20_i32_18 = arith.constant 20 : i32
    %61 = vector.broadcast %c20_i32_18 : i32 to vector<40x10xi32>
    %62 = arith.addi %6, %61 : vector<40x10xi32>
    %63 = arith.cmpi eq, %5, %62 : vector<40x10xi32>
    %64 = arith.ori %36, %63 : vector<40x10xi1>
    %c20_i32_19 = arith.constant 20 : i32
    %65 = vector.broadcast %c20_i32_19 : i32 to vector<40x10xi32>
    %66 = arith.cmpi sge, %5, %65 : vector<40x10xi32>
    %c25_i32 = arith.constant 25 : i32
    %67 = vector.broadcast %c25_i32 : i32 to vector<40x10xi32>
    %68 = arith.cmpi slt, %5, %67 : vector<40x10xi32>
    %69 = arith.andi %66, %68 : vector<40x10xi1>
    %c0_i32_20 = arith.constant 0 : i32
    %70 = vector.broadcast %c0_i32_20 : i32 to vector<40x10xi32>
    %71 = arith.cmpi sge, %6, %70 : vector<40x10xi32>
    %72 = arith.andi %69, %71 : vector<40x10xi1>
    %c5_i32_21 = arith.constant 5 : i32
    %73 = vector.broadcast %c5_i32_21 : i32 to vector<40x10xi32>
    %74 = arith.cmpi slt, %6, %73 : vector<40x10xi32>
    %75 = arith.andi %72, %74 : vector<40x10xi1>
    %76 = arith.ori %60, %75 : vector<40x10xi1>
    %c25_i32_22 = arith.constant 25 : i32
    %77 = vector.broadcast %c25_i32_22 : i32 to vector<40x10xi32>
    %78 = arith.cmpi sge, %5, %77 : vector<40x10xi32>
    %c30_i32 = arith.constant 30 : i32
    %79 = vector.broadcast %c30_i32 : i32 to vector<40x10xi32>
    %80 = arith.cmpi slt, %5, %79 : vector<40x10xi32>
    %81 = arith.andi %78, %80 : vector<40x10xi1>
    %c5_i32_23 = arith.constant 5 : i32
    %82 = vector.broadcast %c5_i32_23 : i32 to vector<40x10xi32>
    %83 = arith.cmpi sge, %6, %82 : vector<40x10xi32>
    %84 = arith.andi %81, %83 : vector<40x10xi1>
    %c10_i32_24 = arith.constant 10 : i32
    %85 = vector.broadcast %c10_i32_24 : i32 to vector<40x10xi32>
    %86 = arith.cmpi slt, %6, %85 : vector<40x10xi32>
    %87 = arith.andi %84, %86 : vector<40x10xi1>
    %88 = arith.ori %76, %87 : vector<40x10xi1>
    %c30_i32_25 = arith.constant 30 : i32
    %89 = vector.broadcast %c30_i32_25 : i32 to vector<40x10xi32>
    %90 = arith.addi %6, %89 : vector<40x10xi32>
    %91 = arith.cmpi eq, %5, %90 : vector<40x10xi32>
    %92 = arith.ori %64, %91 : vector<40x10xi1>
    %c30_i32_26 = arith.constant 30 : i32
    %93 = vector.broadcast %c30_i32_26 : i32 to vector<40x10xi32>
    %94 = arith.cmpi sge, %5, %93 : vector<40x10xi32>
    %c35_i32 = arith.constant 35 : i32
    %95 = vector.broadcast %c35_i32 : i32 to vector<40x10xi32>
    %96 = arith.cmpi slt, %5, %95 : vector<40x10xi32>
    %97 = arith.andi %94, %96 : vector<40x10xi1>
    %c0_i32_27 = arith.constant 0 : i32
    %98 = vector.broadcast %c0_i32_27 : i32 to vector<40x10xi32>
    %99 = arith.cmpi sge, %6, %98 : vector<40x10xi32>
    %100 = arith.andi %97, %99 : vector<40x10xi1>
    %c5_i32_28 = arith.constant 5 : i32
    %101 = vector.broadcast %c5_i32_28 : i32 to vector<40x10xi32>
    %102 = arith.cmpi slt, %6, %101 : vector<40x10xi32>
    %103 = arith.andi %100, %102 : vector<40x10xi1>
    %104 = arith.ori %88, %103 : vector<40x10xi1>
    %c35_i32_29 = arith.constant 35 : i32
    %105 = vector.broadcast %c35_i32_29 : i32 to vector<40x10xi32>
    %106 = arith.cmpi sge, %5, %105 : vector<40x10xi32>
    %c40_i32 = arith.constant 40 : i32
    %107 = vector.broadcast %c40_i32 : i32 to vector<40x10xi32>
    %108 = arith.cmpi slt, %5, %107 : vector<40x10xi32>
    %109 = arith.andi %106, %108 : vector<40x10xi1>
    %c5_i32_30 = arith.constant 5 : i32
    %110 = vector.broadcast %c5_i32_30 : i32 to vector<40x10xi32>
    %111 = arith.cmpi sge, %6, %110 : vector<40x10xi32>
    %112 = arith.andi %109, %111 : vector<40x10xi1>
    %c10_i32_31 = arith.constant 10 : i32
    %113 = vector.broadcast %c10_i32_31 : i32 to vector<40x10xi32>
    %114 = arith.cmpi slt, %6, %113 : vector<40x10xi32>
    %115 = arith.andi %112, %114 : vector<40x10xi1>
    %116 = arith.ori %104, %115 : vector<40x10xi1>
    %117 = arith.extui %92 : vector<40x10xi1> to vector<40x10xi32>
    %118 = arith.sitofp %117 : vector<40x10xi32> to vector<40x10xf32>
    %119 = tpu.iota {dimensions = array<i32: 0>} : vector<40x32xi32>
    %120 = tpu.iota {dimensions = array<i32: 1>} : vector<40x32xi32>
    %c0_i32_32 = arith.constant 0 : i32
    %121 = vector.broadcast %c0_i32_32 : i32 to vector<40x32xi32>
    %122 = arith.cmpi sge, %119, %121 : vector<40x32xi32>
    %c10_i32_33 = arith.constant 10 : i32
    %123 = vector.broadcast %c10_i32_33 : i32 to vector<40x32xi32>
    %124 = arith.cmpi slt, %119, %123 : vector<40x32xi32>
    %125 = arith.andi %122, %124 : vector<40x32xi1>
    %c0_i32_34 = arith.constant 0 : i32
    %126 = vector.broadcast %c0_i32_34 : i32 to vector<40x32xi32>
    %127 = arith.cmpi sge, %120, %126 : vector<40x32xi32>
    %128 = arith.andi %125, %127 : vector<40x32xi1>
    %c8_i32 = arith.constant 8 : i32
    %129 = vector.broadcast %c8_i32 : i32 to vector<40x32xi32>
    %130 = arith.cmpi slt, %120, %129 : vector<40x32xi32>
    %131 = arith.andi %128, %130 : vector<40x32xi1>
    %c10_i32_35 = arith.constant 10 : i32
    %132 = vector.broadcast %c10_i32_35 : i32 to vector<40x32xi32>
    %133 = arith.cmpi sge, %119, %132 : vector<40x32xi32>
    %c20_i32_36 = arith.constant 20 : i32
    %134 = vector.broadcast %c20_i32_36 : i32 to vector<40x32xi32>
    %135 = arith.cmpi slt, %119, %134 : vector<40x32xi32>
    %136 = arith.andi %133, %135 : vector<40x32xi1>
    %c8_i32_37 = arith.constant 8 : i32
    %137 = vector.broadcast %c8_i32_37 : i32 to vector<40x32xi32>
    %138 = arith.cmpi sge, %120, %137 : vector<40x32xi32>
    %139 = arith.andi %136, %138 : vector<40x32xi1>
    %c16_i32 = arith.constant 16 : i32
    %140 = vector.broadcast %c16_i32 : i32 to vector<40x32xi32>
    %141 = arith.cmpi slt, %120, %140 : vector<40x32xi32>
    %142 = arith.andi %139, %141 : vector<40x32xi1>
    %143 = arith.ori %131, %142 : vector<40x32xi1>
    %c20_i32_38 = arith.constant 20 : i32
    %144 = vector.broadcast %c20_i32_38 : i32 to vector<40x32xi32>
    %145 = arith.cmpi sge, %119, %144 : vector<40x32xi32>
    %c30_i32_39 = arith.constant 30 : i32
    %146 = vector.broadcast %c30_i32_39 : i32 to vector<40x32xi32>
    %147 = arith.cmpi slt, %119, %146 : vector<40x32xi32>
    %148 = arith.andi %145, %147 : vector<40x32xi1>
    %c16_i32_40 = arith.constant 16 : i32
    %149 = vector.broadcast %c16_i32_40 : i32 to vector<40x32xi32>
    %150 = arith.cmpi sge, %120, %149 : vector<40x32xi32>
    %151 = arith.andi %148, %150 : vector<40x32xi1>
    %c24_i32 = arith.constant 24 : i32
    %152 = vector.broadcast %c24_i32 : i32 to vector<40x32xi32>
    %153 = arith.cmpi slt, %120, %152 : vector<40x32xi32>
    %154 = arith.andi %151, %153 : vector<40x32xi1>
    %155 = arith.ori %143, %154 : vector<40x32xi1>
    %c30_i32_41 = arith.constant 30 : i32
    %156 = vector.broadcast %c30_i32_41 : i32 to vector<40x32xi32>
    %157 = arith.cmpi sge, %119, %156 : vector<40x32xi32>
    %c40_i32_42 = arith.constant 40 : i32
    %158 = vector.broadcast %c40_i32_42 : i32 to vector<40x32xi32>
    %159 = arith.cmpi slt, %119, %158 : vector<40x32xi32>
    %160 = arith.andi %157, %159 : vector<40x32xi1>
    %c24_i32_43 = arith.constant 24 : i32
    %161 = vector.broadcast %c24_i32_43 : i32 to vector<40x32xi32>
    %162 = arith.cmpi sge, %120, %161 : vector<40x32xi32>
    %163 = arith.andi %160, %162 : vector<40x32xi1>
    %c32_i32 = arith.constant 32 : i32
    %164 = vector.broadcast %c32_i32 : i32 to vector<40x32xi32>
    %165 = arith.cmpi slt, %120, %164 : vector<40x32xi32>
    %166 = arith.andi %163, %165 : vector<40x32xi1>
    %167 = arith.ori %155, %166 : vector<40x32xi1>
    %168 = arith.extui %167 : vector<40x32xi1> to vector<40x32xi32>
    %169 = arith.sitofp %168 : vector<40x32xi32> to vector<40x32xf32>
    %170 = tpu.iota {dimensions = array<i32: 0>} : vector<10x40xi32>
    %171 = tpu.iota {dimensions = array<i32: 1>} : vector<10x40xi32>
    %c0_i32_44 = arith.constant 0 : i32
    %172 = vector.broadcast %c0_i32_44 : i32 to vector<10x40xi32>
    %173 = arith.addi %170, %172 : vector<10x40xi32>
    %174 = arith.cmpi eq, %171, %173 : vector<10x40xi32>
    %c10_i32_45 = arith.constant 10 : i32
    %175 = vector.broadcast %c10_i32_45 : i32 to vector<10x40xi32>
    %176 = arith.addi %170, %175 : vector<10x40xi32>
    %177 = arith.cmpi eq, %171, %176 : vector<10x40xi32>
    %178 = arith.ori %174, %177 : vector<10x40xi1>
    %c20_i32_46 = arith.constant 20 : i32
    %179 = vector.broadcast %c20_i32_46 : i32 to vector<10x40xi32>
    %180 = arith.addi %170, %179 : vector<10x40xi32>
    %181 = arith.cmpi eq, %171, %180 : vector<10x40xi32>
    %182 = arith.ori %178, %181 : vector<10x40xi1>
    %c30_i32_47 = arith.constant 30 : i32
    %183 = vector.broadcast %c30_i32_47 : i32 to vector<10x40xi32>
    %184 = arith.addi %170, %183 : vector<10x40xi32>
    %185 = arith.cmpi eq, %171, %184 : vector<10x40xi32>
    %186 = arith.ori %182, %185 : vector<10x40xi1>
    %187 = arith.extui %186 : vector<10x40xi1> to vector<10x40xi32>
    %188 = arith.sitofp %187 : vector<10x40xi32> to vector<10x40xf32>
    %c0_48 = arith.constant 0 : index
    %c0_49 = arith.constant 0 : index
    %c0_50 = arith.constant 0 : index
    %189 = vector.load %arg5[%c0_48, %c0_49, %c0_50] : memref<2x96x32xbf16, #tpu.memory_space<vmem>>, vector<1x96x32xbf16>
    %190 = vector.shape_cast %189 : vector<1x96x32xbf16> to vector<96x32xbf16>
    %c0_51 = arith.constant 0 : index
    %c0_52 = arith.constant 0 : index
    %c0_53 = arith.constant 0 : index
    %191 = vector.load %arg7[%c0_51, %c0_52, %c0_53] : memref<2x4x96xf32, #tpu.memory_space<vmem>>, vector<1x4x96xf32>
    %192 = vector.shape_cast %191 : vector<1x4x96xf32> to vector<4x96xf32>
    %193 = vector.extract_strided_slice %192 {offsets = [0, 0], sizes = [1, 96], strides = [1, 1]} : vector<4x96xf32> to vector<1x96xf32>
    %194 = vector.extract_strided_slice %192 {offsets = [1, 0], sizes = [1, 32], strides = [1, 1]} : vector<4x96xf32> to vector<1x32xf32>
    %195 = vector.extract_strided_slice %192 {offsets = [2, 0], sizes = [1, 64], strides = [1, 1]} : vector<4x96xf32> to vector<1x64xf32>
    %196 = vector.extract_strided_slice %192 {offsets = [3, 0], sizes = [1, 32], strides = [1, 1]} : vector<4x96xf32> to vector<1x32xf32>
    %cst_54 = arith.constant dense<0.000000e+00> : vector<10xf32>
    %197 = vector.multi_reduction <add>, %4, %cst_54 [1] : vector<10x32xf32> to vector<10xf32>
    %198 = vector.shape_cast %197 : vector<10xf32> to vector<10x1xf32>
    %cst_55 = arith.constant 3.200000e+01 : f32
    %199 = vector.broadcast %cst_55 : f32 to vector<10x1xf32>
    %200 = arith.divf %198, %199 : vector<10x1xf32>
    %201 = vector.broadcast %200 : vector<10x1xf32> to vector<10x32xf32>
    %202 = arith.subf %4, %201 : vector<10x32xf32>
    %203 = arith.mulf %202, %202 : vector<10x32xf32>
    %cst_56 = arith.constant dense<0.000000e+00> : vector<10xf32>
    %204 = vector.multi_reduction <add>, %203, %cst_56 [1] : vector<10x32xf32> to vector<10xf32>
    %205 = vector.shape_cast %204 : vector<10xf32> to vector<10x1xf32>
    %cst_57 = arith.constant 3.200000e+01 : f32
    %206 = vector.broadcast %cst_57 : f32 to vector<10x1xf32>
    %207 = arith.divf %205, %206 : vector<10x1xf32>
    %208 = vector.broadcast %200 : vector<10x1xf32> to vector<10x32xf32>
    %209 = arith.subf %4, %208 : vector<10x32xf32>
    %cst_58 = arith.constant 9.99999996E-13 : f32
    %210 = vector.broadcast %cst_58 : f32 to vector<10x1xf32>
    %211 = arith.addf %207, %210 : vector<10x1xf32>
    %212 = math.rsqrt %211 : vector<10x1xf32>
    %213 = vector.broadcast %212 : vector<10x1xf32> to vector<10x32xf32>
    %214 = arith.mulf %209, %213 : vector<10x32xf32>
    %215 = arith.truncf %214 : vector<10x32xf32> to vector<10x32xbf16>
    %c0_59 = arith.constant 0 : index
    %c0_60 = arith.constant 0 : index
    %c0_61 = arith.constant 0 : index
    %216 = vector.load %arg4[%c0_59, %c0_60, %c0_61] : memref<2x32x96xbf16, #tpu.memory_space<vmem>>, vector<1x32x96xbf16>
    %217 = vector.shape_cast %216 : vector<1x32x96xbf16> to vector<32x96xbf16>
    %cst_62 = arith.constant dense<0.000000e+00> : vector<10x96xf32>
    %218 = tpu.matmul %215, %217, %cst_62 {dimension_numbers = #tpu.dot_dimension_numbers<[1], [0], [0], [1], [0, 0, 1, 1], [], []>} : vector<10x32xbf16>, vector<32x96xbf16>, vector<10x96xf32> -> vector<10x96xf32>
    %219 = vector.broadcast %193 : vector<1x96xf32> to vector<10x96xf32>
    %220 = arith.addf %218, %219 : vector<10x96xf32>
    %221 = vector.extract_strided_slice %220 {offsets = [0, 0], sizes = [10, 32], strides = [1, 1]} : vector<10x96xf32> to vector<10x32xf32>
    %222 = vector.extract_strided_slice %220 {offsets = [0, 32], sizes = [10, 32], strides = [1, 1]} : vector<10x96xf32> to vector<10x32xf32>
    %223 = vector.extract_strided_slice %220 {offsets = [0, 64], sizes = [10, 32], strides = [1, 1]} : vector<10x96xf32> to vector<10x32xf32>
    %cst_63 = arith.constant dense<0.000000e+00> : vector<40x32xf32>
    %224 = tpu.matmul %118, %221, %cst_63 {dimension_numbers = #tpu.dot_dimension_numbers<[1], [0], [0], [1], [0, 0, 1, 1], [], []>} : vector<40x10xf32>, vector<10x32xf32>, vector<40x32xf32> -> vector<40x32xf32>
    %225 = arith.mulf %224, %169 : vector<40x32xf32>
    %cst_64 = arith.constant dense<0.000000e+00> : vector<40x10xf32>
    %226 = tpu.matmul %225, %222, %cst_64 {dimension_numbers = #tpu.dot_dimension_numbers<[1], [1], [0], [0], [0, 0, 1, 0], [], []>} : vector<40x32xf32>, vector<10x32xf32>, vector<40x10xf32> -> vector<40x10xf32>
    %cst_65 = arith.constant 0.353553385 : f32
    %227 = vector.broadcast %cst_65 : f32 to vector<40x10xf32>
    %228 = arith.mulf %226, %227 : vector<40x10xf32>
    %cst_66 = arith.constant -1.000000e+30 : f32
    %229 = vector.broadcast %cst_66 : f32 to vector<40x10xf32>
    %230 = arith.select %116, %228, %229 : vector<40x10xi1>, vector<40x10xf32>
    %cst_67 = arith.constant dense<0xFF800000> : vector<40xf32>
    %231 = vector.multi_reduction <maximumf>, %230, %cst_67 [1] : vector<40x10xf32> to vector<40xf32>
    %232 = vector.shape_cast %231 : vector<40xf32> to vector<40x1xf32>
    %233 = vector.broadcast %232 : vector<40x1xf32> to vector<40x10xf32>
    %234 = arith.subf %230, %233 : vector<40x10xf32>
    %235 = math.exp %234 : vector<40x10xf32>
    %cst_68 = arith.constant dense<0.000000e+00> : vector<40xf32>
    %236 = vector.multi_reduction <add>, %235, %cst_68 [1] : vector<40x10xf32> to vector<40xf32>
    %237 = vector.shape_cast %236 : vector<40xf32> to vector<40x1xf32>
    %238 = tpu.reciprocal %237 {approx = true} : vector<40x1xf32> -> vector<40x1xf32>
    %239 = vector.broadcast %238 : vector<40x1xf32> to vector<40x10xf32>
    %240 = arith.mulf %235, %239 : vector<40x10xf32>
    %cst_69 = arith.constant dense<0.000000e+00> : vector<40x32xf32>
    %241 = tpu.matmul %240, %223, %cst_69 {dimension_numbers = #tpu.dot_dimension_numbers<[1], [0], [0], [1], [0, 0, 1, 1], [], []>} : vector<40x10xf32>, vector<10x32xf32>, vector<40x32xf32> -> vector<40x32xf32>
    %242 = arith.mulf %241, %169 : vector<40x32xf32>
    %cst_70 = arith.constant dense<0.000000e+00> : vector<10x32xf32>
    %243 = tpu.matmul %188, %242, %cst_70 {dimension_numbers = #tpu.dot_dimension_numbers<[1], [0], [0], [1], [0, 0, 1, 1], [], []>} : vector<10x40xf32>, vector<40x32xf32>, vector<10x32xf32> -> vector<10x32xf32>
    %244 = arith.truncf %243 : vector<10x32xf32> to vector<10x32xbf16>
    %245 = vector.extract_strided_slice %190 {offsets = [0, 0], sizes = [32, 32], strides = [1, 1]} : vector<96x32xbf16> to vector<32x32xbf16>
    %cst_71 = arith.constant dense<0.000000e+00> : vector<10x32xf32>
    %246 = tpu.matmul %244, %245, %cst_71 {dimension_numbers = #tpu.dot_dimension_numbers<[1], [0], [0], [1], [0, 0, 1, 1], [], []>} : vector<10x32xbf16>, vector<32x32xbf16>, vector<10x32xf32> -> vector<10x32xf32>
    %247 = arith.addf %4, %246 : vector<10x32xf32>
    %248 = vector.broadcast %194 : vector<1x32xf32> to vector<10x32xf32>
    %249 = arith.addf %247, %248 : vector<10x32xf32>
    %cst_72 = arith.constant dense<0.000000e+00> : vector<10xf32>
    %250 = vector.multi_reduction <add>, %249, %cst_72 [1] : vector<10x32xf32> to vector<10xf32>
    %251 = vector.shape_cast %250 : vector<10xf32> to vector<10x1xf32>
    %cst_73 = arith.constant 3.200000e+01 : f32
    %252 = vector.broadcast %cst_73 : f32 to vector<10x1xf32>
    %253 = arith.divf %251, %252 : vector<10x1xf32>
    %254 = vector.broadcast %253 : vector<10x1xf32> to vector<10x32xf32>
    %255 = arith.subf %249, %254 : vector<10x32xf32>
    %256 = arith.mulf %255, %255 : vector<10x32xf32>
    %cst_74 = arith.constant dense<0.000000e+00> : vector<10xf32>
    %257 = vector.multi_reduction <add>, %256, %cst_74 [1] : vector<10x32xf32> to vector<10xf32>
    %258 = vector.shape_cast %257 : vector<10xf32> to vector<10x1xf32>
    %cst_75 = arith.constant 3.200000e+01 : f32
    %259 = vector.broadcast %cst_75 : f32 to vector<10x1xf32>
    %260 = arith.divf %258, %259 : vector<10x1xf32>
    %261 = vector.broadcast %253 : vector<10x1xf32> to vector<10x32xf32>
    %262 = arith.subf %249, %261 : vector<10x32xf32>
    %cst_76 = arith.constant 9.99999996E-13 : f32
    %263 = vector.broadcast %cst_76 : f32 to vector<10x1xf32>
    %264 = arith.addf %260, %263 : vector<10x1xf32>
    %265 = math.rsqrt %264 : vector<10x1xf32>
    %266 = vector.broadcast %265 : vector<10x1xf32> to vector<10x32xf32>
    %267 = arith.mulf %262, %266 : vector<10x32xf32>
    %268 = arith.truncf %267 : vector<10x32xf32> to vector<10x32xbf16>
    %c0_77 = arith.constant 0 : index
    %c0_78 = arith.constant 0 : index
    %c0_79 = arith.constant 0 : index
    %269 = vector.load %arg6[%c0_77, %c0_78, %c0_79] : memref<2x32x64xbf16, #tpu.memory_space<vmem>>, vector<1x32x64xbf16>
    %270 = vector.shape_cast %269 : vector<1x32x64xbf16> to vector<32x64xbf16>
    %cst_80 = arith.constant dense<0.000000e+00> : vector<10x64xf32>
    %271 = tpu.matmul %268, %270, %cst_80 {dimension_numbers = #tpu.dot_dimension_numbers<[1], [0], [0], [1], [0, 0, 1, 1], [], []>} : vector<10x32xbf16>, vector<32x64xbf16>, vector<10x64xf32> -> vector<10x64xf32>
    %272 = vector.broadcast %195 : vector<1x64xf32> to vector<10x64xf32>
    %273 = arith.addf %271, %272 : vector<10x64xf32>
    %274 = arith.mulf %273, %273 : vector<10x64xf32>
    %275 = arith.mulf %273, %274 : vector<10x64xf32>
    %cst_81 = arith.constant 4.471500e-02 : f32
    %276 = vector.broadcast %cst_81 : f32 to vector<10x64xf32>
    %277 = arith.mulf %276, %275 : vector<10x64xf32>
    %278 = arith.addf %273, %277 : vector<10x64xf32>
    %cst_82 = arith.constant 0.797884583 : f32
    %279 = vector.broadcast %cst_82 : f32 to vector<10x64xf32>
    %280 = arith.mulf %279, %278 : vector<10x64xf32>
    %281 = math.tanh %280 : vector<10x64xf32>
    %cst_83 = arith.constant 1.000000e+00 : f32
    %282 = vector.broadcast %cst_83 : f32 to vector<10x64xf32>
    %283 = arith.addf %282, %281 : vector<10x64xf32>
    %cst_84 = arith.constant 5.000000e-01 : f32
    %284 = vector.broadcast %cst_84 : f32 to vector<10x64xf32>
    %285 = arith.mulf %284, %283 : vector<10x64xf32>
    %286 = arith.mulf %273, %285 : vector<10x64xf32>
    %287 = arith.truncf %286 : vector<10x64xf32> to vector<10x64xbf16>
    %288 = vector.extract_strided_slice %190 {offsets = [32, 0], sizes = [64, 32], strides = [1, 1]} : vector<96x32xbf16> to vector<64x32xbf16>
    %cst_85 = arith.constant dense<0.000000e+00> : vector<10x32xf32>
    %289 = tpu.matmul %287, %288, %cst_85 {dimension_numbers = #tpu.dot_dimension_numbers<[1], [0], [0], [1], [0, 0, 1, 1], [], []>} : vector<10x64xbf16>, vector<64x32xbf16>, vector<10x32xf32> -> vector<10x32xf32>
    %290 = arith.addf %249, %289 : vector<10x32xf32>
    %291 = vector.broadcast %196 : vector<1x32xf32> to vector<10x32xf32>
    %292 = arith.addf %290, %291 : vector<10x32xf32>
    %c1 = arith.constant 1 : index
    %c0_86 = arith.constant 0 : index
    %c0_87 = arith.constant 0 : index
    %293 = vector.load %arg5[%c1, %c0_86, %c0_87] : memref<2x96x32xbf16, #tpu.memory_space<vmem>>, vector<1x96x32xbf16>
    %294 = vector.shape_cast %293 : vector<1x96x32xbf16> to vector<96x32xbf16>
    %c1_88 = arith.constant 1 : index
    %c0_89 = arith.constant 0 : index
    %c0_90 = arith.constant 0 : index
    %295 = vector.load %arg7[%c1_88, %c0_89, %c0_90] : memref<2x4x96xf32, #tpu.memory_space<vmem>>, vector<1x4x96xf32>
    %296 = vector.shape_cast %295 : vector<1x4x96xf32> to vector<4x96xf32>
    %297 = vector.extract_strided_slice %296 {offsets = [0, 0], sizes = [1, 96], strides = [1, 1]} : vector<4x96xf32> to vector<1x96xf32>
    %298 = vector.extract_strided_slice %296 {offsets = [1, 0], sizes = [1, 32], strides = [1, 1]} : vector<4x96xf32> to vector<1x32xf32>
    %299 = vector.extract_strided_slice %296 {offsets = [2, 0], sizes = [1, 64], strides = [1, 1]} : vector<4x96xf32> to vector<1x64xf32>
    %300 = vector.extract_strided_slice %296 {offsets = [3, 0], sizes = [1, 32], strides = [1, 1]} : vector<4x96xf32> to vector<1x32xf32>
    %cst_91 = arith.constant dense<0.000000e+00> : vector<10xf32>
    %301 = vector.multi_reduction <add>, %292, %cst_91 [1] : vector<10x32xf32> to vector<10xf32>
    %302 = vector.shape_cast %301 : vector<10xf32> to vector<10x1xf32>
    %cst_92 = arith.constant 3.200000e+01 : f32
    %303 = vector.broadcast %cst_92 : f32 to vector<10x1xf32>
    %304 = arith.divf %302, %303 : vector<10x1xf32>
    %305 = vector.broadcast %304 : vector<10x1xf32> to vector<10x32xf32>
    %306 = arith.subf %292, %305 : vector<10x32xf32>
    %307 = arith.mulf %306, %306 : vector<10x32xf32>
    %cst_93 = arith.constant dense<0.000000e+00> : vector<10xf32>
    %308 = vector.multi_reduction <add>, %307, %cst_93 [1] : vector<10x32xf32> to vector<10xf32>
    %309 = vector.shape_cast %308 : vector<10xf32> to vector<10x1xf32>
    %cst_94 = arith.constant 3.200000e+01 : f32
    %310 = vector.broadcast %cst_94 : f32 to vector<10x1xf32>
    %311 = arith.divf %309, %310 : vector<10x1xf32>
    %312 = vector.broadcast %304 : vector<10x1xf32> to vector<10x32xf32>
    %313 = arith.subf %292, %312 : vector<10x32xf32>
    %cst_95 = arith.constant 9.99999996E-13 : f32
    %314 = vector.broadcast %cst_95 : f32 to vector<10x1xf32>
    %315 = arith.addf %311, %314 : vector<10x1xf32>
    %316 = math.rsqrt %315 : vector<10x1xf32>
    %317 = vector.broadcast %316 : vector<10x1xf32> to vector<10x32xf32>
    %318 = arith.mulf %313, %317 : vector<10x32xf32>
    %319 = arith.truncf %318 : vector<10x32xf32> to vector<10x32xbf16>
    %c1_96 = arith.constant 1 : index
    %c0_97 = arith.constant 0 : index
    %c0_98 = arith.constant 0 : index
    %320 = vector.load %arg4[%c1_96, %c0_97, %c0_98] : memref<2x32x96xbf16, #tpu.memory_space<vmem>>, vector<1x32x96xbf16>
    %321 = vector.shape_cast %320 : vector<1x32x96xbf16> to vector<32x96xbf16>
    %cst_99 = arith.constant dense<0.000000e+00> : vector<10x96xf32>
    %322 = tpu.matmul %319, %321, %cst_99 {dimension_numbers = #tpu.dot_dimension_numbers<[1], [0], [0], [1], [0, 0, 1, 1], [], []>} : vector<10x32xbf16>, vector<32x96xbf16>, vector<10x96xf32> -> vector<10x96xf32>
    %323 = vector.broadcast %297 : vector<1x96xf32> to vector<10x96xf32>
    %324 = arith.addf %322, %323 : vector<10x96xf32>
    %325 = vector.extract_strided_slice %324 {offsets = [0, 0], sizes = [10, 32], strides = [1, 1]} : vector<10x96xf32> to vector<10x32xf32>
    %326 = vector.extract_strided_slice %324 {offsets = [0, 32], sizes = [10, 32], strides = [1, 1]} : vector<10x96xf32> to vector<10x32xf32>
    %327 = vector.extract_strided_slice %324 {offsets = [0, 64], sizes = [10, 32], strides = [1, 1]} : vector<10x96xf32> to vector<10x32xf32>
    %cst_100 = arith.constant dense<0.000000e+00> : vector<40x32xf32>
    %328 = tpu.matmul %118, %325, %cst_100 {dimension_numbers = #tpu.dot_dimension_numbers<[1], [0], [0], [1], [0, 0, 1, 1], [], []>} : vector<40x10xf32>, vector<10x32xf32>, vector<40x32xf32> -> vector<40x32xf32>
    %329 = arith.mulf %328, %169 : vector<40x32xf32>
    %cst_101 = arith.constant dense<0.000000e+00> : vector<40x10xf32>
    %330 = tpu.matmul %329, %326, %cst_101 {dimension_numbers = #tpu.dot_dimension_numbers<[1], [1], [0], [0], [0, 0, 1, 0], [], []>} : vector<40x32xf32>, vector<10x32xf32>, vector<40x10xf32> -> vector<40x10xf32>
    %cst_102 = arith.constant 0.353553385 : f32
    %331 = vector.broadcast %cst_102 : f32 to vector<40x10xf32>
    %332 = arith.mulf %330, %331 : vector<40x10xf32>
    %cst_103 = arith.constant -1.000000e+30 : f32
    %333 = vector.broadcast %cst_103 : f32 to vector<40x10xf32>
    %334 = arith.select %116, %332, %333 : vector<40x10xi1>, vector<40x10xf32>
    %cst_104 = arith.constant dense<0xFF800000> : vector<40xf32>
    %335 = vector.multi_reduction <maximumf>, %334, %cst_104 [1] : vector<40x10xf32> to vector<40xf32>
    %336 = vector.shape_cast %335 : vector<40xf32> to vector<40x1xf32>
    %337 = vector.broadcast %336 : vector<40x1xf32> to vector<40x10xf32>
    %338 = arith.subf %334, %337 : vector<40x10xf32>
    %339 = math.exp %338 : vector<40x10xf32>
    %cst_105 = arith.constant dense<0.000000e+00> : vector<40xf32>
    %340 = vector.multi_reduction <add>, %339, %cst_105 [1] : vector<40x10xf32> to vector<40xf32>
    %341 = vector.shape_cast %340 : vector<40xf32> to vector<40x1xf32>
    %342 = tpu.reciprocal %341 {approx = true} : vector<40x1xf32> -> vector<40x1xf32>
    %343 = vector.broadcast %342 : vector<40x1xf32> to vector<40x10xf32>
    %344 = arith.mulf %339, %343 : vector<40x10xf32>
    %cst_106 = arith.constant dense<0.000000e+00> : vector<40x32xf32>
    %345 = tpu.matmul %344, %327, %cst_106 {dimension_numbers = #tpu.dot_dimension_numbers<[1], [0], [0], [1], [0, 0, 1, 1], [], []>} : vector<40x10xf32>, vector<10x32xf32>, vector<40x32xf32> -> vector<40x32xf32>
    %346 = arith.mulf %345, %169 : vector<40x32xf32>
    %cst_107 = arith.constant dense<0.000000e+00> : vector<10x32xf32>
    %347 = tpu.matmul %188, %346, %cst_107 {dimension_numbers = #tpu.dot_dimension_numbers<[1], [0], [0], [1], [0, 0, 1, 1], [], []>} : vector<10x40xf32>, vector<40x32xf32>, vector<10x32xf32> -> vector<10x32xf32>
    %348 = arith.truncf %347 : vector<10x32xf32> to vector<10x32xbf16>
    %349 = vector.extract_strided_slice %294 {offsets = [0, 0], sizes = [32, 32], strides = [1, 1]} : vector<96x32xbf16> to vector<32x32xbf16>
    %cst_108 = arith.constant dense<0.000000e+00> : vector<10x32xf32>
    %350 = tpu.matmul %348, %349, %cst_108 {dimension_numbers = #tpu.dot_dimension_numbers<[1], [0], [0], [1], [0, 0, 1, 1], [], []>} : vector<10x32xbf16>, vector<32x32xbf16>, vector<10x32xf32> -> vector<10x32xf32>
    %351 = arith.addf %292, %350 : vector<10x32xf32>
    %352 = vector.broadcast %298 : vector<1x32xf32> to vector<10x32xf32>
    %353 = arith.addf %351, %352 : vector<10x32xf32>
    %cst_109 = arith.constant dense<0.000000e+00> : vector<10xf32>
    %354 = vector.multi_reduction <add>, %353, %cst_109 [1] : vector<10x32xf32> to vector<10xf32>
    %355 = vector.shape_cast %354 : vector<10xf32> to vector<10x1xf32>
    %cst_110 = arith.constant 3.200000e+01 : f32
    %356 = vector.broadcast %cst_110 : f32 to vector<10x1xf32>
    %357 = arith.divf %355, %356 : vector<10x1xf32>
    %358 = vector.broadcast %357 : vector<10x1xf32> to vector<10x32xf32>
    %359 = arith.subf %353, %358 : vector<10x32xf32>
    %360 = arith.mulf %359, %359 : vector<10x32xf32>
    %cst_111 = arith.constant dense<0.000000e+00> : vector<10xf32>
    %361 = vector.multi_reduction <add>, %360, %cst_111 [1] : vector<10x32xf32> to vector<10xf32>
    %362 = vector.shape_cast %361 : vector<10xf32> to vector<10x1xf32>
    %cst_112 = arith.constant 3.200000e+01 : f32
    %363 = vector.broadcast %cst_112 : f32 to vector<10x1xf32>
    %364 = arith.divf %362, %363 : vector<10x1xf32>
    %365 = vector.broadcast %357 : vector<10x1xf32> to vector<10x32xf32>
    %366 = arith.subf %353, %365 : vector<10x32xf32>
    %cst_113 = arith.constant 9.99999996E-13 : f32
    %367 = vector.broadcast %cst_113 : f32 to vector<10x1xf32>
    %368 = arith.addf %364, %367 : vector<10x1xf32>
    %369 = math.rsqrt %368 : vector<10x1xf32>
    %370 = vector.broadcast %369 : vector<10x1xf32> to vector<10x32xf32>
    %371 = arith.mulf %366, %370 : vector<10x32xf32>
    %372 = arith.truncf %371 : vector<10x32xf32> to vector<10x32xbf16>
    %c1_114 = arith.constant 1 : index
    %c0_115 = arith.constant 0 : index
    %c0_116 = arith.constant 0 : index
    %373 = vector.load %arg6[%c1_114, %c0_115, %c0_116] : memref<2x32x64xbf16, #tpu.memory_space<vmem>>, vector<1x32x64xbf16>
    %374 = vector.shape_cast %373 : vector<1x32x64xbf16> to vector<32x64xbf16>
    %cst_117 = arith.constant dense<0.000000e+00> : vector<10x64xf32>
    %375 = tpu.matmul %372, %374, %cst_117 {dimension_numbers = #tpu.dot_dimension_numbers<[1], [0], [0], [1], [0, 0, 1, 1], [], []>} : vector<10x32xbf16>, vector<32x64xbf16>, vector<10x64xf32> -> vector<10x64xf32>
    %376 = vector.broadcast %299 : vector<1x64xf32> to vector<10x64xf32>
    %377 = arith.addf %375, %376 : vector<10x64xf32>
    %378 = arith.mulf %377, %377 : vector<10x64xf32>
    %379 = arith.mulf %377, %378 : vector<10x64xf32>
    %cst_118 = arith.constant 4.471500e-02 : f32
    %380 = vector.broadcast %cst_118 : f32 to vector<10x64xf32>
    %381 = arith.mulf %380, %379 : vector<10x64xf32>
    %382 = arith.addf %377, %381 : vector<10x64xf32>
    %cst_119 = arith.constant 0.797884583 : f32
    %383 = vector.broadcast %cst_119 : f32 to vector<10x64xf32>
    %384 = arith.mulf %383, %382 : vector<10x64xf32>
    %385 = math.tanh %384 : vector<10x64xf32>
    %cst_120 = arith.constant 1.000000e+00 : f32
    %386 = vector.broadcast %cst_120 : f32 to vector<10x64xf32>
    %387 = arith.addf %386, %385 : vector<10x64xf32>
    %cst_121 = arith.constant 5.000000e-01 : f32
    %388 = vector.broadcast %cst_121 : f32 to vector<10x64xf32>
    %389 = arith.mulf %388, %387 : vector<10x64xf32>
    %390 = arith.mulf %377, %389 : vector<10x64xf32>
    %391 = arith.truncf %390 : vector<10x64xf32> to vector<10x64xbf16>
    %392 = vector.extract_strided_slice %294 {offsets = [32, 0], sizes = [64, 32], strides = [1, 1]} : vector<96x32xbf16> to vector<64x32xbf16>
    %cst_122 = arith.constant dense<0.000000e+00> : vector<10x32xf32>
    %393 = tpu.matmul %391, %392, %cst_122 {dimension_numbers = #tpu.dot_dimension_numbers<[1], [0], [0], [1], [0, 0, 1, 1], [], []>} : vector<10x64xbf16>, vector<64x32xbf16>, vector<10x32xf32> -> vector<10x32xf32>
    %394 = arith.addf %353, %393 : vector<10x32xf32>
    %395 = vector.broadcast %300 : vector<1x32xf32> to vector<10x32xf32>
    %396 = arith.addf %394, %395 : vector<10x32xf32>
    %397 = tpu.iota {dimensions = array<i32: 0>} : vector<2x10xi32>
    %398 = tpu.iota {dimensions = array<i32: 1>} : vector<2x10xi32>
    %c5_i32_123 = arith.constant 5 : i32
    %399 = vector.broadcast %c5_i32_123 : i32 to vector<2x10xi32>
    %400 = arith.muli %397, %399 : vector<2x10xi32>
    %401 = arith.cmpi eq, %398, %400 : vector<2x10xi32>
    %402 = arith.extui %401 : vector<2x10xi1> to vector<2x10xi32>
    %403 = arith.sitofp %402 : vector<2x10xi32> to vector<2x10xf32>
    %cst_124 = arith.constant dense<0.000000e+00> : vector<2x32xf32>
    %404 = tpu.matmul %403, %396, %cst_124 {dimension_numbers = #tpu.dot_dimension_numbers<[1], [0], [0], [1], [0, 0, 1, 1], [], []>} : vector<2x10xf32>, vector<10x32xf32>, vector<2x32xf32> -> vector<2x32xf32>
    %cst_125 = arith.constant dense<0.000000e+00> : vector<2xf32>
    %405 = vector.multi_reduction <add>, %404, %cst_125 [1] : vector<2x32xf32> to vector<2xf32>
    %406 = vector.shape_cast %405 : vector<2xf32> to vector<2x1xf32>
    %cst_126 = arith.constant 3.200000e+01 : f32
    %407 = vector.broadcast %cst_126 : f32 to vector<2x1xf32>
    %408 = arith.divf %406, %407 : vector<2x1xf32>
    %409 = vector.broadcast %408 : vector<2x1xf32> to vector<2x32xf32>
    %410 = arith.subf %404, %409 : vector<2x32xf32>
    %411 = arith.mulf %410, %410 : vector<2x32xf32>
    %cst_127 = arith.constant dense<0.000000e+00> : vector<2xf32>
    %412 = vector.multi_reduction <add>, %411, %cst_127 [1] : vector<2x32xf32> to vector<2xf32>
    %413 = vector.shape_cast %412 : vector<2xf32> to vector<2x1xf32>
    %cst_128 = arith.constant 3.200000e+01 : f32
    %414 = vector.broadcast %cst_128 : f32 to vector<2x1xf32>
    %415 = arith.divf %413, %414 : vector<2x1xf32>
    %416 = vector.broadcast %408 : vector<2x1xf32> to vector<2x32xf32>
    %417 = arith.subf %404, %416 : vector<2x32xf32>
    %cst_129 = arith.constant 9.99999996E-13 : f32
    %418 = vector.broadcast %cst_129 : f32 to vector<2x1xf32>
    %419 = arith.addf %415, %418 : vector<2x1xf32>
    %420 = math.rsqrt %419 : vector<2x1xf32>
    %421 = vector.broadcast %420 : vector<2x1xf32> to vector<2x32xf32>
    %422 = arith.mulf %417, %421 : vector<2x32xf32>
    %c0_130 = arith.constant 0 : index
    %c0_131 = arith.constant 0 : index
    %423 = vector.load %arg8[%c0_130, %c0_131] : memref<32x2xf32, #tpu.memory_space<vmem>>, vector<32x2xf32>
    %cst_132 = arith.constant dense<0.000000e+00> : vector<2x2xf32>
    %424 = tpu.matmul %422, %423, %cst_132 {dimension_numbers = #tpu.dot_dimension_numbers<[1], [0], [0], [1], [0, 0, 1, 1], [], []>} : vector<2x32xf32>, vector<32x2xf32>, vector<2x2xf32> -> vector<2x2xf32>
    %c0_133 = arith.constant 0 : index
    %c0_134 = arith.constant 0 : index
    %425 = vector.load %arg9[%c0_133, %c0_134] : memref<1x2xf32, #tpu.memory_space<vmem>>, vector<1x2xf32>
    %426 = vector.broadcast %425 : vector<1x2xf32> to vector<2x2xf32>
    %427 = arith.addf %424, %426 : vector<2x2xf32>
    %c0_135 = arith.constant 0 : index
    %c0_136 = arith.constant 0 : index
    %428 = vector.load %arg10[%c0_135, %c0_136] : memref<2x2xf32, #tpu.memory_space<vmem>>, vector<2x2xf32>
    tpu.vector_store %arg10[%c0_135, %c0_136], %427 {strides = array<i32>} : memref<2x2xf32, #tpu.memory_space<vmem>>, vector<2x2xf32>,
    return
  }
  func.func @transform_0(%arg0: i32) -> (i32, i32) {
    %c0_i32 = arith.constant 0 : i32
    %c0_i32_0 = arith.constant 0 : i32
    %c0_i32_1 = arith.constant 0 : i32
    return %c0_i32, %c0_i32_0 : i32, i32
  }
  func.func @transform_1(%arg0: i32) -> (i32, i32) {
    %c0_i32 = arith.constant 0 : i32
    %c0_i32_0 = arith.constant 0 : i32
    %c0_i32_1 = arith.constant 0 : i32
    return %c0_i32, %c0_i32_0 : i32, i32
  }
  func.func @transform_2(%arg0: i32) -> (i32, i32) {
    %c0_i32 = arith.constant 0 : i32
    %c0_i32_0 = arith.constant 0 : i32
    %c0_i32_1 = arith.constant 0 : i32
    return %c0_i32, %c0_i32_0 : i32, i32
  }
  func.func @transform_3(%arg0: i32) -> (i32, i32, i32) {
    %c0_i32 = arith.constant 0 : i32
    %c0_i32_0 = arith.constant 0 : i32
    %c0_i32_1 = arith.constant 0 : i32
    %c0_i32_2 = arith.constant 0 : i32
    return %c0_i32, %c0_i32_0, %c0_i32_1 : i32, i32, i32
  }
  func.func @transform_4(%arg0: i32) -> (i32, i32, i32) {
    %c0_i32 = arith.constant 0 : i32
    %c0_i32_0 = arith.constant 0 : i32
    %c0_i32_1 = arith.constant 0 : i32
    %c0_i32_2 = arith.constant 0 : i32
    return %c0_i32, %c0_i32_0, %c0_i32_1 : i32, i32, i32
  }
  func.func @transform_5(%arg0: i32) -> (i32, i32, i32) {
    %c0_i32 = arith.constant 0 : i32
    %c0_i32_0 = arith.constant 0 : i32
    %c0_i32_1 = arith.constant 0 : i32
    %c0_i32_2 = arith.constant 0 : i32
    return %c0_i32, %c0_i32_0, %c0_i32_1 : i32, i32, i32
  }
  func.func @transform_6(%arg0: i32) -> (i32, i32, i32) {
    %c0_i32 = arith.constant 0 : i32
    %c0_i32_0 = arith.constant 0 : i32
    %c0_i32_1 = arith.constant 0 : i32
    %c0_i32_2 = arith.constant 0 : i32
    return %c0_i32, %c0_i32_0, %c0_i32_1 : i32, i32, i32
  }
  func.func @transform_7(%arg0: i32) -> (i32, i32) {
    %c0_i32 = arith.constant 0 : i32
    %c0_i32_0 = arith.constant 0 : i32
    %c0_i32_1 = arith.constant 0 : i32
    return %c0_i32, %c0_i32_0 : i32, i32
  }
  func.func @transform_8(%arg0: i32) -> (i32, i32) {
    %c0_i32 = arith.constant 0 : i32
    %c0_i32_0 = arith.constant 0 : i32
    %c0_i32_1 = arith.constant 0 : i32
    return %c0_i32, %c0_i32_0 : i32, i32
  }
  func.func @transform_9(%arg0: i32) -> (i32, i32) {
    %c0_i32 = arith.constant 0 : i32
    %c0_i32_0 = arith.constant 0 : i32
    %c0_i32_1 = arith.constant 0 : i32
    return %c0_i32, %c0_i32_0 : i32, i32
  }
}

</mosaic_0001>

<llo_original>
// kernel: _lambda_.1
$region0: #{_lambda_.1}
  #allocation0 [shape = 'u32[]', space=smem, size = 0x4, offset = 0x4, fixed_abs, tag = 'smem constant byte address 0x4 - core index']
  #allocation1 [shape = 'u32[144,128]{1,0:T(1,128)}', space=vmem, size = 0x12000, scoped, tag = 'internal scratch']
  %s0 = inlined_call_operand.vmem [shape: bf16[10,768], index: 0, kind: input, shape index: {}]
  %s1 = inlined_call_operand.vmem [shape: bf16[768,32], index: 1, kind: input, shape index: {}]
  %s2 = inlined_call_operand.vmem [shape: f32[10,32], index: 2, kind: input, shape index: {}]
  %s3 = inlined_call_operand.vmem [shape: bf16[2,32,96], index: 3, kind: input, shape index: {}]
  %s4 = inlined_call_operand.vmem [shape: bf16[2,96,32], index: 4, kind: input, shape index: {}]
  %s5 = inlined_call_operand.vmem [shape: bf16[2,32,64], index: 5, kind: input, shape index: {}]
  %s6 = inlined_call_operand.vmem [shape: f32[2,4,96], index: 6, kind: input, shape index: {}]
  %s7 = inlined_call_operand.vmem [shape: f32[32,2], index: 7, kind: input, shape index: {}]
  %s8 = inlined_call_operand.vmem [shape: f32[1,2], index: 8, kind: input, shape index: {}]
  %s9 = inlined_call_operand.hbm [shape: f32[2,2], index: 9, kind: output, shape index: {}]
  %s10 = sld [smem:[#allocation0]]
  $region46: #{_lambda_.1} parent=0
    _
  %s12 = ssub.s32 1, %s10
  %s13 = scalar_select 0, %s12, %s10
  $region1: #{_lambda_.1} parent=0
    #allocation2 [shape = 'u8[1024]{0}', space=vmem, size = 0x400, scoped, tag = 'output window, operand 0, single buffered']
    #allocation3 [shape = 's32[1]{0}', space=sflag, size = 0x4, scoped, tag = 'scoped memory for _lambda_.1']
    %14 = vsyncpa [#allocation3], 0
    // Predicated region
    $region2: #{_lambda_.1} parent=1 // pred_check
      _
    $region3: #{_lambda_.1} parent=1 // pred_check_branch
      %16 = sbr.rel (0) target = $region5
    $region4: #{_lambda_.1} parent=1 // pred_region
      _
    $region5: #{_lambda_.1} parent=1 // pred_fallthru
      _
    // Predicated region
    $region6: #{_lambda_.1} parent=1 // pred_check
      _
    $region7: #{_lambda_.1} parent=1 // pred_check_branch
      %18 = sbr.rel (0) target = $region9
    $region8: #{_lambda_.1} parent=1 // pred_region
      _
    $region9: #{_lambda_.1} parent=1 // pred_fallthru
      _
    // Predicated region
    $region10: #{_lambda_.1} parent=1 // pred_check
      _
    $region11: #{_lambda_.1} parent=1 // pred_check_branch
      %20 = sbr.rel (0) target = $region13
    $region12: #{_lambda_.1} parent=1 // pred_region
      _
    $region13: #{_lambda_.1} parent=1 // pred_fallthru
      _
    // Predicated region
    $region14: #{_lambda_.1} parent=1 // pred_check
      _
    $region15: #{_lambda_.1} parent=1 // pred_check_branch
      %22 = sbr.rel (0) target = $region17
    $region16: #{_lambda_.1} parent=1 // pred_region
      _
    $region17: #{_lambda_.1} parent=1 // pred_fallthru
      _
    // Predicated region
    $region18: #{_lambda_.1} parent=1 // pred_check
      _
    $region19: #{_lambda_.1} parent=1 // pred_check_branch
      %24 = sbr.rel (0) target = $region21
    $region20: #{_lambda_.1} parent=1 // pred_region
      _
    $region21: #{_lambda_.1} parent=1 // pred_fallthru
      _
    // Predicated region
    $region22: #{_lambda_.1} parent=1 // pred_check
      _
    $region23: #{_lambda_.1} parent=1 // pred_check_branch
      %26 = sbr.rel (0) target = $region25
    $region24: #{_lambda_.1} parent=1 // pred_region
      _
    $region25: #{_lambda_.1} parent=1 // pred_fallthru
      _
    // Predicated region
    $region26: #{_lambda_.1} parent=1 // pred_check
      _
    $region27: #{_lambda_.1} parent=1 // pred_check_branch
      %28 = sbr.rel (0) target = $region29
    $region28: #{_lambda_.1} parent=1 // pred_region
      _
    $region29: #{_lambda_.1} parent=1 // pred_fallthru
      _
    // Predicated region
    $region30: #{_lambda_.1} parent=1 // pred_check
      _
    $region31: #{_lambda_.1} parent=1 // pred_check_branch
      %30 = sbr.rel (0) target = $region33
    $region32: #{_lambda_.1} parent=1 // pred_region
      _
    $region33: #{_lambda_.1} parent=1 // pred_fallthru
      _
    // Predicated region
    $region34: #{_lambda_.1} parent=1 // pred_check
      _
    $region35: #{_lambda_.1} parent=1 // pred_check_branch
      %32 = sbr.rel (0) target = $region37
    $region36: #{_lambda_.1} parent=1 // pred_region
      _
    $region37: #{_lambda_.1} parent=1 // pred_fallthru
      _
    %v34 = vld [vmem:[%s0] sm:$0xff]
    %v35 = vld [vmem:[%s0 + $0x8] sm:$0xff]
    %v36 = vld [vmem:[%s0 + $0x10] sm:$0xff]
    %v37 = vld [vmem:[%s0 + $0x18] sm:$0x11]
    %v38 = vld [vmem:[%s0 + $0x20] sm:$0x11]
    %v39 = vld [vmem:[%s0 + $0x28] sm:$0x11]
    %v40 = vld [vmem:[%s1] sm:$0xf]
    %v41 = vld [vmem:[%s1 + $0x4] sm:$0xf]
    %v42 = vld [vmem:[%s1 + $0x8] sm:$0xf]
    %v43 = vld [vmem:[%s1 + $0xc] sm:$0xf]
    %v44 = vld [vmem:[%s1 + $0x10] sm:$0xf]
    %v45 = vld [vmem:[%s1 + $0x14] sm:$0xf]
    %v46 = vld [vmem:[%s1 + $0x18] sm:$0xf]
    %v47 = vld [vmem:[%s1 + $0x1c] sm:$0xf]
    %v48 = vld [vmem:[%s1 + $0x20] sm:$0xf]
    %v49 = vld [vmem:[%s1 + $0x24] sm:$0xf]
    %v50 = vld [vmem:[%s1 + $0x28] sm:$0xf]
    %v51 = vld [vmem:[%s1 + $0x2c] sm:$0xf]
    %v52 = vld [vmem:[%s1 + $0x30] sm:$0xf]
    %v53 = vld [vmem:[%s1 + $0x34] sm:$0xf]
    %v54 = vld [vmem:[%s1 + $0x38] sm:$0xf]
    %v55 = vld [vmem:[%s1 + $0x3c] sm:$0xf]
    %v56 = vld [vmem:[%s1 + $0x40] sm:$0xf]
    %v57 = vld [vmem:[%s1 + $0x44] sm:$0xf]
    %v58 = vld [vmem:[%s1 + $0x48] sm:$0xf]
    %v59 = vld [vmem:[%s1 + $0x4c] sm:$0xf]
    %v60 = vld [vmem:[%s1 + $0x50] sm:$0xf]
    %v61 = vld [vmem:[%s1 + $0x54] sm:$0xf]
    %v62 = vld [vmem:[%s1 + $0x58] sm:$0xf]
    %v63 = vld [vmem:[%s1 + $0x5c] sm:$0xf]
    %v64 = vld [vmem:[%s1 + $0x60] sm:$0xf]
    %v65 = vld [vmem:[%s1 + $0x64] sm:$0xf]
    %v66 = vld [vmem:[%s1 + $0x68] sm:$0xf]
    %v67 = vld [vmem:[%s1 + $0x6c] sm:$0xf]
    %v68 = vld [vmem:[%s1 + $0x70] sm:$0xf]
    %v69 = vld [vmem:[%s1 + $0x74] sm:$0xf]
    %v70 = vld [vmem:[%s1 + $0x78] sm:$0xf]
    %v71 = vld [vmem:[%s1 + $0x7c] sm:$0xf]
    %v72 = vld [vmem:[%s1 + $0x80] sm:$0xf]
    %v73 = vld [vmem:[%s1 + $0x84] sm:$0xf]
    %v74 = vld [vmem:[%s1 + $0x88] sm:$0xf]
    %v75 = vld [vmem:[%s1 + $0x8c] sm:$0xf]
    %v76 = vld [vmem:[%s1 + $0x90] sm:$0xf]
    %v77 = vld [vmem:[%s1 + $0x94] sm:$0xf]
    %v78 = vld [vmem:[%s1 + $0x98] sm:$0xf]
    %v79 = vld [vmem:[%s1 + $0x9c] sm:$0xf]
    %v80 = vld [vmem:[%s1 + $0xa0] sm:$0xf]
    %v81 = vld [vmem:[%s1 + $0xa4] sm:$0xf]
    %v82 = vld [vmem:[%s1 + $0xa8] sm:$0xf]
    %v83 = vld [vmem:[%s1 + $0xac] sm:$0xf]
    %v84 = vld [vmem:[%s1 + $0xb0] sm:$0xf]
    %v85 = vld [vmem:[%s1 + $0xb4] sm:$0xf]
    %v86 = vld [vmem:[%s1 + $0xb8] sm:$0xf]
    %v87 = vld [vmem:[%s1 + $0xbc] sm:$0xf]
    %v88 = vld [vmem:[%s1 + $0xc0] sm:$0xf]
    %v89 = vld [vmem:[%s1 + $0xc4] sm:$0xf]
    %v90 = vld [vmem:[%s1 + $0xc8] sm:$0xf]
    %v91 = vld [vmem:[%s1 + $0xcc] sm:$0xf]
    %v92 = vld [vmem:[%s1 + $0xd0] sm:$0xf]
    %v93 = vld [vmem:[%s1 + $0xd4] sm:$0xf]
    %v94 = vld [vmem:[%s1 + $0xd8] sm:$0xf]
    %v95 = vld [vmem:[%s1 + $0xdc] sm:$0xf]
    %v96 = vld [vmem:[%s1 + $0xe0] sm:$0xf]
    %v97 = vld [vmem:[%s1 + $0xe4] sm:$0xf]
    %v98 = vld [vmem:[%s1 + $0xe8] sm:$0xf]
    %v99 = vld [vmem:[%s1 + $0xec] sm:$0xf]
    %v100 = vld [vmem:[%s1 + $0xf0] sm:$0xf]
    %v101 = vld [vmem:[%s1 + $0xf4] sm:$0xf]
    %v102 = vld [vmem:[%s1 + $0xf8] sm:$0xf]
    %v103 = vld [vmem:[%s1 + $0xfc] sm:$0xf]
    %v104 = vld [vmem:[%s1 + $0x100] sm:$0xf]
    %v105 = vld [vmem:[%s1 + $0x104] sm:$0xf]
    %v106 = vld [vmem:[%s1 + $0x108] sm:$0xf]
    %v107 = vld [vmem:[%s1 + $0x10c] sm:$0xf]
    %v108 = vld [vmem:[%s1 + $0x110] sm:$0xf]
    %v109 = vld [vmem:[%s1 + $0x114] sm:$0xf]
    %v110 = vld [vmem:[%s1 + $0x118] sm:$0xf]
    %v111 = vld [vmem:[%s1 + $0x11c] sm:$0xf]
    %v112 = vld [vmem:[%s1 + $0x120] sm:$0xf]
    %v113 = vld [vmem:[%s1 + $0x124] sm:$0xf]
    %v114 = vld [vmem:[%s1 + $0x128] sm:$0xf]
    %v115 = vld [vmem:[%s1 + $0x12c] sm:$0xf]
    %v116 = vld [vmem:[%s1 + $0x130] sm:$0xf]
    %v117 = vld [vmem:[%s1 + $0x134] sm:$0xf]
    %v118 = vld [vmem:[%s1 + $0x138] sm:$0xf]
    %v119 = vld [vmem:[%s1 + $0x13c] sm:$0xf]
    %v120 = vld [vmem:[%s1 + $0x140] sm:$0xf]
    %v121 = vld [vmem:[%s1 + $0x144] sm:$0xf]
    %v122 = vld [vmem:[%s1 + $0x148] sm:$0xf]
    %v123 = vld [vmem:[%s1 + $0x14c] sm:$0xf]
    %v124 = vld [vmem:[%s1 + $0x150] sm:$0xf]
    %v125 = vld [vmem:[%s1 + $0x154] sm:$0xf]
    %v126 = vld [vmem:[%s1 + $0x158] sm:$0xf]
    %v127 = vld [vmem:[%s1 + $0x15c] sm:$0xf]
    %v128 = vld [vmem:[%s1 + $0x160] sm:$0xf]
    %v129 = vld [vmem:[%s1 + $0x164] sm:$0xf]
    %v130 = vld [vmem:[%s1 + $0x168] sm:$0xf]
    %v131 = vld [vmem:[%s1 + $0x16c] sm:$0xf]
    %v132 = vld [vmem:[%s1 + $0x170] sm:$0xf]
    %v133 = vld [vmem:[%s1 + $0x174] sm:$0xf]
    %v134 = vld [vmem:[%s1 + $0x178] sm:$0xf]
    %v135 = vld [vmem:[%s1 + $0x17c] sm:$0xf]
    %v136 = vld [vmem:[%s2] sm:$0xff]
    %v137 = vld [vmem:[%s2 + $0x8] sm:$0x3]
    %v144 = vunpack.c.l.b16 %v34
    %v145 = vunpack.c.h.b16 %v34
    %v146 = vunpack.c.l.b16 %v35
    %v147 = vunpack.c.h.b16 %v35
    %v148 = vunpack.c.l.b16 %v36
    %v149 = vunpack.c.h.b16 %v36
    %v150 = vunpack.c.l.b16 %v37
    %v151 = vunpack.c.h.b16 %v37
    %v152 = vunpack.c.l.b16 %v38
    %v153 = vunpack.c.h.b16 %v38
    %v154 = vunpack.c.l.b16 %v39
    %v155 = vunpack.c.h.b16 %v39
    %v156 = vpack.c.b16 %v150, %v144
    %v157 = vpack.c.b16 %v151, %v145
    %v158 = vpack.c.b16 %v152, %v146
    %v159 = vpack.c.b16 %v153, %v147
    %v160 = vpack.c.b16 %v154, %v148
    %v161 = vpack.c.b16 %v155, %v149
    %v264 = vunpack.c.l.b16 %v40
    %v265 = vunpack.c.l.b16 %v41
    %v266 = vunpack.c.l.b16 %v42
    %v267 = vunpack.c.l.b16 %v43
    %v268 = vunpack.c.l.b16 %v44
    %v269 = vunpack.c.l.b16 %v45
    %v270 = vunpack.c.l.b16 %v46
    %v271 = vunpack.c.l.b16 %v47
    %v272 = vunpack.c.l.b16 %v48
    %v273 = vunpack.c.l.b16 %v49
    %v274 = vunpack.c.l.b16 %v50
    %v275 = vunpack.c.l.b16 %v51
    %v276 = vunpack.c.l.b16 %v52
    %v277 = vunpack.c.l.b16 %v53
    %v278 = vunpack.c.l.b16 %v54
    %v279 = vunpack.c.l.b16 %v55
    %v280 = vunpack.c.l.b16 %v56
    %v281 = vunpack.c.l.b16 %v57
    %v282 = vunpack.c.l.b16 %v58
    %v283 = vunpack.c.l.b16 %v59
    %v284 = vunpack.c.l.b16 %v60
    %v285 = vunpack.c.l.b16 %v61
    %v286 = vunpack.c.l.b16 %v62
    %v287 = vunpack.c.l.b16 %v63
    %v288 = vunpack.c.l.b16 %v64
    %v289 = vunpack.c.l.b16 %v65
    %v290 = vunpack.c.l.b16 %v66
    %v291 = vunpack.c.l.b16 %v67
    %v292 = vunpack.c.l.b16 %v68
    %v293 = vunpack.c.l.b16 %v69
    %v294 = vunpack.c.l.b16 %v70
    %v295 = vunpack.c.l.b16 %v71
    %v296 = vunpack.c.l.b16 %v72
    %v297 = vunpack.c.l.b16 %v73
    %v298 = vunpack.c.l.b16 %v74
    %v299 = vunpack.c.l.b16 %v75
    %v300 = vunpack.c.l.b16 %v76
    %v301 = vunpack.c.l.b16 %v77
    %v302 = vunpack.c.l.b16 %v78
    %v303 = vunpack.c.l.b16 %v79
    %v304 = vunpack.c.l.b16 %v80
    %v305 = vunpack.c.l.b16 %v81
    %v306 = vunpack.c.l.b16 %v82
    %v307 = vunpack.c.l.b16 %v83
    %v308 = vunpack.c.l.b16 %v84
    %v309 = vunpack.c.l.b16 %v85
    %v310 = vunpack.c.l.b16 %v86
    %v311 = vunpack.c.l.b16 %v87
    %v312 = vunpack.c.l.b16 %v88
    %v313 = vunpack.c.l.b16 %v89
    %v314 = vunpack.c.l.b16 %v90
    %v315 = vunpack.c.l.b16 %v91
    %v316 = vunpack.c.l.b16 %v92
    %v317 = vunpack.c.l.b16 %v93
    %v318 = vunpack.c.l.b16 %v94
    %v319 = vunpack.c.l.b16 %v95
    %v320 = vunpack.c.l.b16 %v96
    %v321 = vunpack.c.l.b16 %v97
    %v322 = vunpack.c.l.b16 %v98
    %v323 = vunpack.c.l.b16 %v99
    %v324 = vunpack.c.l.b16 %v100
    %v325 = vunpack.c.l.b16 %v101
    %v326 = vunpack.c.l.b16 %v102
    %v327 = vunpack.c.l.b16 %v103
    %v328 = vunpack.c.l.b16 %v104
    %v329 = vunpack.c.l.b16 %v105
    %v330 = vunpack.c.l.b16 %v106
    %v331 = vunpack.c.l.b16 %v107
    %v332 = vunpack.c.l.b16 %v108
    %v333 = vunpack.c.l.b16 %v109
    %v334 = vunpack.c.l.b16 %v110
    %v335 = vunpack.c.l.b16 %v111
    %v336 = vunpack.c.l.b16 %v112
    %v337 = vunpack.c.l.b16 %v113
    %v338 = vunpack.c.l.b16 %v114
    %v339 = vunpack.c.l.b16 %v115
    %v340 = vunpack.c.l.b16 %v116
    %v341 = vunpack.c.l.b16 %v117
    %v342 = vunpack.c.l.b16 %v118
    %v343 = vunpack.c.l.b16 %v119
    %v344 = vunpack.c.l.b16 %v120
    %v345 = vunpack.c.l.b16 %v121
    %v346 = vunpack.c.l.b16 %v122
    %v347 = vunpack.c.l.b16 %v123
    %v348 = vunpack.c.l.b16 %v124
    %v349 = vunpack.c.l.b16 %v125
    %v350 = vunpack.c.l.b16 %v126
    %v351 = vunpack.c.l.b16 %v127
    %v352 = vunpack.c.l.b16 %v128
    %v353 = vunpack.c.l.b16 %v129
    %v354 = vunpack.c.l.b16 %v130
    %v355 = vunpack.c.l.b16 %v131
    %v356 = vunpack.c.l.b16 %v132
    %v357 = vunpack.c.l.b16 %v133
    %v358 = vunpack.c.l.b16 %v134
    %v359 = vunpack.c.l.b16 %v135
    %v360 = vpack.c.b16 %v265, %v264
    %v361 = vpack.c.b16 %v267, %v266
    %v362 = vpack.c.b16 %v269, %v268
    %v363 = vpack.c.b16 %v271, %v270
    %v364 = vpack.c.b16 %v273, %v272
    %v365 = vpack.c.b16 %v275, %v274
    %v366 = vpack.c.b16 %v277, %v276
    %v367 = vpack.c.b16 %v279, %v278
    %v368 = vpack.c.b16 %v281, %v280
    %v369 = vpack.c.b16 %v283, %v282
    %v370 = vpack.c.b16 %v285, %v284
    %v371 = vpack.c.b16 %v287, %v286
    %v372 = vpack.c.b16 %v289, %v288
    %v373 = vpack.c.b16 %v291, %v290
    %v374 = vpack.c.b16 %v293, %v292
    %v375 = vpack.c.b16 %v295, %v294
    %v376 = vpack.c.b16 %v297, %v296
    %v377 = vpack.c.b16 %v299, %v298
    %v378 = vpack.c.b16 %v301, %v300
    %v379 = vpack.c.b16 %v303, %v302
    %v380 = vpack.c.b16 %v305, %v304
    %v381 = vpack.c.b16 %v307, %v306
    %v382 = vpack.c.b16 %v309, %v308
    %v383 = vpack.c.b16 %v311, %v310
    %v384 = vpack.c.b16 %v313, %v312
    %v385 = vpack.c.b16 %v315, %v314
    %v386 = vpack.c.b16 %v317, %v316
    %v387 = vpack.c.b16 %v319, %v318
    %v388 = vpack.c.b16 %v321, %v320
    %v389 = vpack.c.b16 %v323, %v322
    %v390 = vpack.c.b16 %v325, %v324
    %v391 = vpack.c.b16 %v327, %v326
    %v392 = vpack.c.b16 %v329, %v328
    %v393 = vpack.c.b16 %v331, %v330
    %v394 = vpack.c.b16 %v333, %v332
    %v395 = vpack.c.b16 %v335, %v334
    %v396 = vpack.c.b16 %v337, %v336
    %v397 = vpack.c.b16 %v339, %v338
    %v398 = vpack.c.b16 %v341, %v340
    %v399 = vpack.c.b16 %v343, %v342
    %v400 = vpack.c.b16 %v345, %v344
    %v401 = vpack.c.b16 %v347, %v346
    %v402 = vpack.c.b16 %v349, %v348
    %v403 = vpack.c.b16 %v351, %v350
    %v404 = vpack.c.b16 %v353, %v352
    %v405 = vpack.c.b16 %v355, %v354
    %v406 = vpack.c.b16 %v357, %v356
    %v407 = vpack.c.b16 %v359, %v358
    %456 = vmatprep.subr.bf16.mxu0 0
    %457 = vmatpush1.bf16.msra.mxu0 %v367
    %458 = vmatprep.subr.bf16.mxu0 0
    %459 = vmatpush1.bf16.msra.mxu0 %v366
    %460 = vmatprep.subr.bf16.mxu0 0
    %461 = vmatpush1.bf16.msra.mxu0 %v365
    %462 = vmatprep.subr.bf16.mxu0 0
    %463 = vmatpush1.bf16.msra.mxu0 %v364
    %464 = vmatprep.subr.bf16.mxu0 0
    %465 = vmatpush1.bf16.msra.mxu0 %v363
    %466 = vmatprep.subr.bf16.mxu0 0
    %467 = vmatpush1.bf16.msra.mxu0 %v362
    %468 = vmatprep.subr.bf16.mxu0 0
    %469 = vmatpush1.bf16.msra.mxu0 %v361
    %470 = vmatprep.subr.bf16.mxu0 0
    %471 = vmatpush1.bf16.msra.mxu0 %v360
    %472 = vmatprep.subr.bf16.mxu0 0
    %473 = vmatpush2.bf16.msra.mxu0 %v375
    %474 = vmatprep.subr.bf16.mxu0 0
    %475 = vmatpush2.bf16.msra.mxu0 %v374
    %476 = vmatprep.subr.bf16.mxu0 0
    %477 = vmatpush2.bf16.msra.mxu0 %v373
    %478 = vmatprep.subr.bf16.mxu0 0
    %479 = vmatpush2.bf16.msra.mxu0 %v372
    %480 = vmatprep.subr.bf16.mxu0 0
    %481 = vmatpush2.bf16.msra.mxu0 %v371
    %482 = vmatprep.subr.bf16.mxu0 0
    %483 = vmatpush2.bf16.msra.mxu0 %v370
    %484 = vmatprep.subr.bf16.mxu0 0
    %485 = vmatpush2.bf16.msra.mxu0 %v369
    %486 = vmatprep.subr.bf16.mxu0 0
    %487 = vmatpush2.bf16.msra.mxu0 %v368
    %488 = vmatprep.mubr.bf16.mxu0 %v157
    %489 = vmatmul.mubr.bf16.gmra.mxu0 %v156
    %v490 = vpop.f32.mrf.mxu0
    %v491 = vadd.f32 %v136, %v490
    %v492 = vpop.f32.mrf.mxu0
    %v493 = vpop.f32.mrf.mxu0
    %v494 = vadd.f32 %v137, %v493
    %v495 = vpop.f32.mrf.mxu0
    %496 = vdwg.mxu0
    %497 = vmatprep.subr.bf16.mxu0 0
    %498 = vmatpush1.bf16.msra.mxu0 %v383
    %499 = vmatprep.subr.bf16.mxu0 0
    %500 = vmatpush1.bf16.msra.mxu0 %v382
    %501 = vmatprep.subr.bf16.mxu0 0
    %502 = vmatpush1.bf16.msra.mxu0 %v381
    %503 = vmatprep.subr.bf16.mxu0 0
    %504 = vmatpush1.bf16.msra.mxu0 %v380
    %505 = vmatprep.subr.bf16.mxu0 0
    %506 = vmatpush1.bf16.msra.mxu0 %v379
    %507 = vmatprep.subr.bf16.mxu0 0
    %508 = vmatpush1.bf16.msra.mxu0 %v378
    %509 = vmatprep.subr.bf16.mxu0 0
    %510 = vmatpush1.bf16.msra.mxu0 %v377
    %511 = vmatprep.subr.bf16.mxu0 0
    %512 = vmatpush1.bf16.msra.mxu0 %v376
    %513 = vmatprep.subr.bf16.mxu0 0
    %514 = vmatpush2.bf16.msra.mxu0 %v391
    %515 = vmatprep.subr.bf16.mxu0 0
    %516 = vmatpush2.bf16.msra.mxu0 %v390
    %517 = vmatprep.subr.bf16.mxu0 0
    %518 = vmatpush2.bf16.msra.mxu0 %v389
    %519 = vmatprep.subr.bf16.mxu0 0
    %520 = vmatpush2.bf16.msra.mxu0 %v388
    %521 = vmatprep.subr.bf16.mxu0 0
    %522 = vmatpush2.bf16.msra.mxu0 %v387
    %523 = vmatprep.subr.bf16.mxu0 0
    %524 = vmatpush2.bf16.msra.mxu0 %v386
    %525 = vmatprep.subr.bf16.mxu0 0
    %526 = vmatpush2.bf16.msra.mxu0 %v385
    %527 = vmatprep.subr.bf16.mxu0 0
    %528 = vmatpush2.bf16.msra.mxu0 %v384
    %529 = vmatprep.mubr.bf16.mxu0 %v159
    %530 = vmatmul.mubr.bf16.gmra.mxu0 %v158
    %v531 = vpop.f32.mrf.mxu0
    %v532 = vadd.f32 %v491, %v531
    %v533 = vpop.f32.mrf.mxu0
    %v534 = vpop.f32.mrf.mxu0
    %v535 = vadd.f32 %v494, %v534
    %v536 = vpop.f32.mrf.mxu0
    %537 = vdwg.mxu0
    %538 = vmatprep.subr.bf16.mxu0 0
    %539 = vmatpush1.bf16.msra.mxu0 %v399
    %540 = vmatprep.subr.bf16.mxu0 0
    %541 = vmatpush1.bf16.msra.mxu0 %v398
    %542 = vmatprep.subr.bf16.mxu0 0
    %543 = vmatpush1.bf16.msra.mxu0 %v397
    %544 = vmatprep.subr.bf16.mxu0 0
    %545 = vmatpush1.bf16.msra.mxu0 %v396
    %546 = vmatprep.subr.bf16.mxu0 0
    %547 = vmatpush1.bf16.msra.mxu0 %v395
    %548 = vmatprep.subr.bf16.mxu0 0
    %549 = vmatpush1.bf16.msra.mxu0 %v394
    %550 = vmatprep.subr.bf16.mxu0 0
    %551 = vmatpush1.bf16.msra.mxu0 %v393
    %552 = vmatprep.subr.bf16.mxu0 0
    %553 = vmatpush1.bf16.msra.mxu0 %v392
    %554 = vmatprep.subr.bf16.mxu0 0
    %555 = vmatpush2.bf16.msra.mxu0 %v407
    %556 = vmatprep.subr.bf16.mxu0 0
    %557 = vmatpush2.bf16.msra.mxu0 %v406
    %558 = vmatprep.subr.bf16.mxu0 0
    %559 = vmatpush2.bf16.msra.mxu0 %v405
    %560 = vmatprep.subr.bf16.mxu0 0
    %561 = vmatpush2.bf16.msra.mxu0 %v404
    %562 = vmatprep.subr.bf16.mxu0 0
    %563 = vmatpush2.bf16.msra.mxu0 %v403
    %564 = vmatprep.subr.bf16.mxu0 0
    %565 = vmatpush2.bf16.msra.mxu0 %v402
    %566 = vmatprep.subr.bf16.mxu0 0
    %567 = vmatpush2.bf16.msra.mxu0 %v401
    %568 = vmatprep.subr.bf16.mxu0 0
    %569 = vmatpush2.bf16.msra.mxu0 %v400
    %570 = vmatprep.mubr.bf16.mxu0 %v161
    %571 = vmatmul.mubr.bf16.gmra.mxu0 %v160
    %v572 = vpop.f32.mrf.mxu0
    %v573 = vadd.f32 %v532, %v572
    %v574 = vpop.f32.mrf.mxu0
    %v575 = vpop.f32.mrf.mxu0
    %v576 = vadd.f32 %v535, %v575
    %v577 = vpop.f32.mrf.mxu0
    %578 = vdwg.mxu0
    %v579 = vlaneseq
    %v580 = vshrl.u32 %v579, 7
    %v581 = vadd.s32 %v580, 8
    %v582 = vadd.s32 %v580, 16
    %v583 = vadd.s32 %v580, 24
    %v584 = vadd.s32 %v580, 32
    %v585 = vlaneseq
    %v586 = vand.u32 %v585, 127
    %vm587 = vcmp.eq.s32.totalorder %v580, %v586
    %vm588 = vcmp.eq.s32.totalorder %v581, %v586
    %vm589 = vcmp.eq.s32.totalorder %v582, %v586
    %vm590 = vcmp.eq.s32.totalorder %v583, %v586
    %vm591 = vcmp.eq.s32.totalorder %v584, %v586
    %vm592 = vcmp.ge.s32.totalorder %v580, 0
    %vm593 = vcmp.ge.s32.totalorder %v581, 0
    %vm594 = vcmp.ge.s32.totalorder %v582, 0
    %vm595 = vcmp.ge.s32.totalorder %v583, 0
    %vm596 = vcmp.ge.s32.totalorder %v584, 0
    %vm597 = vcmp.lt.s32.totalorder %v580, 5
    %vm598 = vcmp.lt.s32.totalorder %v581, 5
    %vm599 = vcmp.lt.s32.totalorder %v582, 5
    %vm600 = vcmp.lt.s32.totalorder %v583, 5
    %vm601 = vcmp.lt.s32.totalorder %v584, 5
    %vm602 = vmand %vm592, %vm597
    %vm603 = vmand %vm593, %vm598
    %vm604 = vmand %vm594, %vm599
    %vm605 = vmand %vm595, %vm600
    %vm606 = vmand %vm596, %vm601
    %vm607 = vcmp.ge.s32.totalorder %v586, 0
    %vm608 = vmand %vm602, %vm607
    %vm609 = vmand %vm603, %vm607
    %vm610 = vmand %vm604, %vm607
    %vm611 = vmand %vm605, %vm607
    %vm612 = vmand %vm606, %vm607
    %vm613 = vcmp.lt.s32.totalorder %v586, 5
    %vm614 = vmand %vm608, %vm613
    %vm615 = vmand %vm609, %vm613
    %vm616 = vmand %vm610, %vm613
    %vm617 = vmand %vm611, %vm613
    %vm618 = vmand %vm612, %vm613
    %vm619 = vcmp.ge.s32.totalorder %v580, 5
    %vm620 = vcmp.ge.s32.totalorder %v581, 5
    %vm621 = vcmp.ge.s32.totalorder %v582, 5
    %vm622 = vcmp.ge.s32.totalorder %v583, 5
    %vm623 = vcmp.ge.s32.totalorder %v584, 5
    %vm624 = vcmp.lt.s32.totalorder %v580, 10
    %vm625 = vcmp.lt.s32.totalorder %v581, 10
    %vm626 = vcmp.lt.s32.totalorder %v582, 10
    %vm627 = vcmp.lt.s32.totalorder %v583, 10
    %vm628 = vcmp.lt.s32.totalorder %v584, 10
    %vm629 = vmand %vm619, %vm624
    %vm630 = vmand %vm620, %vm625
    %vm631 = vmand %vm621, %vm626
    %vm632 = vmand %vm622, %vm627
    %vm633 = vmand %vm623, %vm628
    %vm634 = vcmp.ge.s32.totalorder %v586, 5
    %vm635 = vmand %vm629, %vm634
    %vm636 = vmand %vm630, %vm634
    %vm637 = vmand %vm631, %vm634
    %vm638 = vmand %vm632, %vm634
    %vm639 = vmand %vm633, %vm634
    %vm640 = vcmp.lt.s32.totalorder %v586, 10
    %vm641 = vmand %vm635, %vm640
    %vm642 = vmand %vm636, %vm640
    %vm643 = vmand %vm637, %vm640
    %vm644 = vmand %vm638, %vm640
    %vm645 = vmand %vm639, %vm640
    %vm646 = vmor %vm614, %vm641
    %vm647 = vmor %vm615, %vm642
    %vm648 = vmor %vm616, %vm643
    %vm649 = vmor %vm617, %vm644
    %vm650 = vmor %vm618, %vm645
    %v651 = vadd.s32 %v586, 10
    %vm652 = vcmp.eq.s32.totalorder %v580, %v651
    %vm653 = vcmp.eq.s32.totalorder %v581, %v651
    %vm654 = vcmp.eq.s32.totalorder %v582, %v651
    %vm655 = vcmp.eq.s32.totalorder %v583, %v651
    %vm656 = vcmp.eq.s32.totalorder %v584, %v651
    %vm657 = vmor %vm587, %vm652
    %vm658 = vmor %vm588, %vm653
    %vm659 = vmor %vm589, %vm654
    %vm660 = vmor %vm590, %vm655
    %vm661 = vmor %vm591, %vm656
    %vm662 = vcmp.ge.s32.totalorder %v580, 10
    %vm663 = vcmp.ge.s32.totalorder %v581, 10
    %vm664 = vcmp.ge.s32.totalorder %v582, 10
    %vm665 = vcmp.ge.s32.totalorder %v583, 10
    %vm666 = vcmp.ge.s32.totalorder %v584, 10
    %vm667 = vcmp.lt.s32.totalorder %v580, 15
    %vm668 = vcmp.lt.s32.totalorder %v581, 15
    %vm669 = vcmp.lt.s32.totalorder %v582, 15
    %vm670 = vcmp.lt.s32.totalorder %v583, 15
    %vm671 = vcmp.lt.s32.totalorder %v584, 15
    %vm672 = vmand %vm662, %vm667
    %vm673 = vmand %vm663, %vm668
    %vm674 = vmand %vm664, %vm669
    %vm675 = vmand %vm665, %vm670
    %vm676 = vmand %vm666, %vm671
    %vm677 = vmand %vm672, %vm607
    %vm678 = vmand %vm673, %vm607
    %vm679 = vmand %vm674, %vm607
    %vm680 = vmand %vm675, %vm607
    %vm681 = vmand %vm676, %vm607
    %vm682 = vmand %vm677, %vm613
    %vm683 = vmand %vm678, %vm613
    %vm684 = vmand %vm679, %vm613
    %vm685 = vmand %vm680, %vm613
    %vm686 = vmand %vm681, %vm613
    %vm687 = vmor %vm646, %vm682
    %vm688 = vmor %vm647, %vm683
    %vm689 = vmor %vm648, %vm684
    %vm690 = vmor %vm649, %vm685
    %vm691 = vmor %vm650, %vm686
    %vm692 = vcmp.ge.s32.totalorder %v580, 15
    %vm693 = vcmp.ge.s32.totalorder %v581, 15
    %vm694 = vcmp.ge.s32.totalorder %v582, 15
    %vm695 = vcmp.ge.s32.totalorder %v583, 15
    %vm696 = vcmp.ge.s32.totalorder %v584, 15
    %vm697 = vcmp.lt.s32.totalorder %v580, 20
    %vm698 = vcmp.lt.s32.totalorder %v581, 20
    %vm699 = vcmp.lt.s32.totalorder %v582, 20
    %vm700 = vcmp.lt.s32.totalorder %v583, 20
    %vm701 = vcmp.lt.s32.totalorder %v584, 20
    %vm702 = vmand %vm692, %vm697
    %vm703 = vmand %vm693, %vm698
    %vm704 = vmand %vm694, %vm699
    %vm705 = vmand %vm695, %vm700
    %vm706 = vmand %vm696, %vm701
    %vm707 = vmand %vm702, %vm634
    %vm708 = vmand %vm703, %vm634
    %vm709 = vmand %vm704, %vm634
    %vm710 = vmand %vm705, %vm634
    %vm711 = vmand %vm706, %vm634
    %vm712 = vmand %vm707, %vm640
    %vm713 = vmand %vm708, %vm640
    %vm714 = vmand %vm709, %vm640
    %vm715 = vmand %vm710, %vm640
    %vm716 = vmand %vm711, %vm640
    %vm717 = vmor %vm687, %vm712
    %vm718 = vmor %vm688, %vm713
    %vm719 = vmor %vm689, %vm714
    %vm720 = vmor %vm690, %vm715
    %vm721 = vmor %vm691, %vm716
    %v722 = vadd.s32 %v586, 20
    %vm723 = vcmp.eq.s32.totalorder %v580, %v722
    %vm724 = vcmp.eq.s32.totalorder %v581, %v722
    %vm725 = vcmp.eq.s32.totalorder %v582, %v722
    %vm726 = vcmp.eq.s32.totalorder %v583, %v722
    %vm727 = vcmp.eq.s32.totalorder %v584, %v722
    %vm728 = vmor %vm657, %vm723
    %vm729 = vmor %vm658, %vm724
    %vm730 = vmor %vm659, %vm725
    %vm731 = vmor %vm660, %vm726
    %vm732 = vmor %vm661, %vm727
    %vm733 = vcmp.ge.s32.totalorder %v580, 20
    %vm734 = vcmp.ge.s32.totalorder %v581, 20
    %vm735 = vcmp.ge.s32.totalorder %v582, 20
    %vm736 = vcmp.ge.s32.totalorder %v583, 20
    %vm737 = vcmp.ge.s32.totalorder %v584, 20
    %vm738 = vcmp.lt.s32.totalorder %v580, 25
    %vm739 = vcmp.lt.s32.totalorder %v581, 25
    %vm740 = vcmp.lt.s32.totalorder %v582, 25
    %vm741 = vcmp.lt.s32.totalorder %v583, 25
    %vm742 = vcmp.lt.s32.totalorder %v584, 25
    %vm743 = vmand %vm733, %vm738
    %vm744 = vmand %vm734, %vm739
    %vm745 = vmand %vm735, %vm740
    %vm746 = vmand %vm736, %vm741
    %vm747 = vmand %vm737, %vm742
    %vm748 = vmand %vm743, %vm607
    %vm749 = vmand %vm744, %vm607
    %vm750 = vmand %vm745, %vm607
    %vm751 = vmand %vm746, %vm607
    %vm752 = vmand %vm747, %vm607
    %vm753 = vmand %vm748, %vm613
    %vm754 = vmand %vm749, %vm613
    %vm755 = vmand %vm750, %vm613
    %vm756 = vmand %vm751, %vm613
    %vm757 = vmand %vm752, %vm613
    %vm758 = vmor %vm717, %vm753
    %vm759 = vmor %vm718, %vm754
    %vm760 = vmor %vm719, %vm755
    %vm761 = vmor %vm720, %vm756
    %vm762 = vmor %vm721, %vm757
    %vm763 = vcmp.ge.s32.totalorder %v580, 25
    %vm764 = vcmp.ge.s32.totalorder %v581, 25
    %vm765 = vcmp.ge.s32.totalorder %v582, 25
    %vm766 = vcmp.ge.s32.totalorder %v583, 25
    %vm767 = vcmp.ge.s32.totalorder %v584, 25
    %vm768 = vcmp.lt.s32.totalorder %v580, 30
    %vm769 = vcmp.lt.s32.totalorder %v581, 30
    %vm770 = vcmp.lt.s32.totalorder %v582, 30
    %vm771 = vcmp.lt.s32.totalorder %v583, 30
    %vm772 = vcmp.lt.s32.totalorder %v584, 30
    %vm773 = vmand %vm763, %vm768
    %vm774 = vmand %vm764, %vm769
    %vm775 = vmand %vm765, %vm770
    %vm776 = vmand %vm766, %vm771
    %vm777 = vmand %vm767, %vm772
    %vm778 = vmand %vm773, %vm634
    %vm779 = vmand %vm774, %vm634
    %vm780 = vmand %vm775, %vm634
    %vm781 = vmand %vm776, %vm634
    %vm782 = vmand %vm777, %vm634
    %vm783 = vmand %vm778, %vm640
    %vm784 = vmand %vm779, %vm640
    %vm785 = vmand %vm780, %vm640
    %vm786 = vmand %vm781, %vm640
    %vm787 = vmand %vm782, %vm640
    %vm788 = vmor %vm758, %vm783
    %vm789 = vmor %vm759, %vm784
    %vm790 = vmor %vm760, %vm785
    %vm791 = vmor %vm761, %vm786
    %vm792 = vmor %vm762, %vm787
    %v793 = vadd.s32 %v586, 30
    %vm794 = vcmp.eq.s32.totalorder %v580, %v793
    %vm795 = vcmp.eq.s32.totalorder %v581, %v793
    %vm796 = vcmp.eq.s32.totalorder %v582, %v793
    %vm797 = vcmp.eq.s32.totalorder %v583, %v793
    %vm798 = vcmp.eq.s32.totalorder %v584, %v793
    %vm799 = vmor %vm728, %vm794
    %vm800 = vmor %vm729, %vm795
    %vm801 = vmor %vm730, %vm796
    %vm802 = vmor %vm731, %vm797
    %vm803 = vmor %vm732, %vm798
    %vm804 = vcmp.ge.s32.totalorder %v580, 30
    %vm805 = vcmp.ge.s32.totalorder %v581, 30
    %vm806 = vcmp.ge.s32.totalorder %v582, 30
    %vm807 = vcmp.ge.s32.totalorder %v583, 30
    %vm808 = vcmp.ge.s32.totalorder %v584, 30
    %vm809 = vcmp.lt.s32.totalorder %v580, 35
    %vm810 = vcmp.lt.s32.totalorder %v581, 35
    %vm811 = vcmp.lt.s32.totalorder %v582, 35
    %vm812 = vcmp.lt.s32.totalorder %v583, 35
    %vm813 = vcmp.lt.s32.totalorder %v584, 35
    %vm814 = vmand %vm804, %vm809
    %vm815 = vmand %vm805, %vm810
    %vm816 = vmand %vm806, %vm811
    %vm817 = vmand %vm807, %vm812
    %vm818 = vmand %vm808, %vm813
    %vm819 = vmand %vm814, %vm607
    %vm820 = vmand %vm815, %vm607
    %vm821 = vmand %vm816, %vm607
    %vm822 = vmand %vm817, %vm607
    %vm823 = vmand %vm818, %vm607
    %vm824 = vmand %vm819, %vm613
    %vm825 = vmand %vm820, %vm613
    %vm826 = vmand %vm821, %vm613
    %vm827 = vmand %vm822, %vm613
    %vm828 = vmand %vm823, %vm613
    %vm829 = vmor %vm788, %vm824
    %vm830 = vmor %vm789, %vm825
    %vm831 = vmor %vm790, %vm826
    %vm832 = vmor %vm791, %vm827
    %vm833 = vmor %vm792, %vm828
    %vm834 = vcmp.ge.s32.totalorder %v580, 35
    %vm835 = vcmp.ge.s32.totalorder %v581, 35
    %vm836 = vcmp.ge.s32.totalorder %v582, 35
    %vm837 = vcmp.ge.s32.totalorder %v583, 35
    %vm838 = vcmp.ge.s32.totalorder %v584, 35
    %vm839 = vcmp.lt.s32.totalorder %v580, 40
    %vm840 = vcmp.lt.s32.totalorder %v581, 40
    %vm841 = vcmp.lt.s32.totalorder %v582, 40
    %vm842 = vcmp.lt.s32.totalorder %v583, 40
    %vm843 = vcmp.lt.s32.totalorder %v584, 40
    %vm844 = vmand %vm834, %vm839
    %vm845 = vmand %vm835, %vm840
    %vm846 = vmand %vm836, %vm841
    %vm847 = vmand %vm837, %vm842
    %vm848 = vmand %vm838, %vm843
    %vm849 = vmand %vm844, %vm634
    %vm850 = vmand %vm845, %vm634
    %vm851 = vmand %vm846, %vm634
    %vm852 = vmand %vm847, %vm634
    %vm853 = vmand %vm848, %vm634
    %vm854 = vmand %vm849, %vm640
    %vm855 = vmand %vm850, %vm640
    %vm856 = vmand %vm851, %vm640
    %vm857 = vmand %vm852, %vm640
    %vm858 = vmand %vm853, %vm640
    %vm859 = vmor %vm829, %vm854
    %vm860 = vmor %vm830, %vm855
    %vm861 = vmor %vm831, %vm856
    %vm862 = vmor %vm832, %vm857
    %vm863 = vmor %vm833, %vm858
    %v864 = vsel %vm799, 1, 0
    %v865 = vsel %vm800, 1, 0
    %v866 = vsel %vm801, 1, 0
    %v867 = vsel %vm802, 1, 0
    %v868 = vsel %vm803, 1, 0
    %v869 = vcvt.s32.f32 %v864
    %v870 = vcvt.s32.f32 %v865
    %v871 = vcvt.s32.f32 %v866
    %v872 = vcvt.s32.f32 %v867
    %v873 = vcvt.s32.f32 %v868
    %vm874 = vmand %vm592, %vm624
    %vm875 = vmand %vm593, %vm625
    %vm876 = vmand %vm594, %vm626
    %vm877 = vmand %vm595, %vm627
    %vm878 = vmand %vm596, %vm628
    %vm879 = vmand %vm874, %vm607
    %vm880 = vmand %vm875, %vm607
    %vm881 = vmand %vm876, %vm607
    %vm882 = vmand %vm877, %vm607
    %vm883 = vmand %vm878, %vm607
    %vm884 = vcmp.lt.s32.totalorder %v586, 8
    %vm885 = vmand %vm879, %vm884
    %vm886 = vmand %vm880, %vm884
    %vm887 = vmand %vm881, %vm884
    %vm888 = vmand %vm882, %vm884
    %vm889 = vmand %vm883, %vm884
    %vm890 = vmand %vm662, %vm697
    %vm891 = vmand %vm663, %vm698
    %vm892 = vmand %vm664, %vm699
    %vm893 = vmand %vm665, %vm700
    %vm894 = vmand %vm666, %vm701
    %vm895 = vcmp.ge.s32.totalorder %v586, 8
    %vm896 = vmand %vm890, %vm895
    %vm897 = vmand %vm891, %vm895
    %vm898 = vmand %vm892, %vm895
    %vm899 = vmand %vm893, %vm895
    %vm900 = vmand %vm894, %vm895
    %vm901 = vcmp.lt.s32.totalorder %v586, 16
    %vm902 = vmand %vm896, %vm901
    %vm903 = vmand %vm897, %vm901
    %vm904 = vmand %vm898, %vm901
    %vm905 = vmand %vm899, %vm901
    %vm906 = vmand %vm900, %vm901
    %vm907 = vmor %vm885, %vm902
    %vm908 = vmor %vm886, %vm903
    %vm909 = vmor %vm887, %vm904
    %vm910 = vmor %vm888, %vm905
    %vm911 = vmor %vm889, %vm906
    %vm912 = vmand %vm733, %vm768
    %vm913 = vmand %vm734, %vm769
    %vm914 = vmand %vm735, %vm770
    %vm915 = vmand %vm736, %vm771
    %vm916 = vmand %vm737, %vm772
    %vm917 = vcmp.ge.s32.totalorder %v586, 16
    %vm918 = vmand %vm912, %vm917
    %vm919 = vmand %vm913, %vm917
    %vm920 = vmand %vm914, %vm917
    %vm921 = vmand %vm915, %vm917
    %vm922 = vmand %vm916, %vm917
    %vm923 = vcmp.lt.s32.totalorder %v586, 24
    %vm924 = vmand %vm918, %vm923
    %vm925 = vmand %vm919, %vm923
    %vm926 = vmand %vm920, %vm923
    %vm927 = vmand %vm921, %vm923
    %vm928 = vmand %vm922, %vm923
    %vm929 = vmor %vm907, %vm924
    %vm930 = vmor %vm908, %vm925
    %vm931 = vmor %vm909, %vm926
    %vm932 = vmor %vm910, %vm927
    %vm933 = vmor %vm911, %vm928
    %vm934 = vmand %vm804, %vm839
    %vm935 = vmand %vm805, %vm840
    %vm936 = vmand %vm806, %vm841
    %vm937 = vmand %vm807, %vm842
    %vm938 = vmand %vm808, %vm843
    %vm939 = vcmp.ge.s32.totalorder %v586, 24
    %vm940 = vmand %vm934, %vm939
    %vm941 = vmand %vm935, %vm939
    %vm942 = vmand %vm936, %vm939
    %vm943 = vmand %vm937, %vm939
    %vm944 = vmand %vm938, %vm939
    %vm945 = vcmp.lt.s32.totalorder %v586, 32
    %vm946 = vmand %vm940, %vm945
    %vm947 = vmand %vm941, %vm945
    %vm948 = vmand %vm942, %vm945
    %vm949 = vmand %vm943, %vm945
    %vm950 = vmand %vm944, %vm945
    %vm951 = vmor %vm929, %vm946
    %vm952 = vmor %vm930, %vm947
    %vm953 = vmor %vm931, %vm948
    %vm954 = vmor %vm932, %vm949
    %vm955 = vmor %vm933, %vm950
    %v956 = vsel %vm951, 1, 0
    %v957 = vsel %vm952, 1, 0
    %v958 = vsel %vm953, 1, 0
    %v959 = vsel %vm954, 1, 0
    %v960 = vsel %vm955, 1, 0
    %v961 = vcvt.s32.f32 %v956
    %v962 = vcvt.s32.f32 %v957
    %v963 = vcvt.s32.f32 %v958
    %v964 = vcvt.s32.f32 %v959
    %v965 = vcvt.s32.f32 %v960
    %vm966 = vcmp.eq.s32.totalorder %v586, %v580
    %vm967 = vcmp.eq.s32.totalorder %v586, %v581
    %v968 = vadd.s32 %v580, 10
    %v969 = vadd.s32 %v581, 10
    %vm970 = vcmp.eq.s32.totalorder %v586, %v968
    %vm971 = vcmp.eq.s32.totalorder %v586, %v969
    %vm972 = vmor %vm966, %vm970
    %vm973 = vmor %vm967, %vm971
    %v974 = vadd.s32 %v580, 20
    %v975 = vadd.s32 %v581, 20
    %vm976 = vcmp.eq.s32.totalorder %v586, %v974
    %vm977 = vcmp.eq.s32.totalorder %v586, %v975
    %vm978 = vmor %vm972, %vm976
    %vm979 = vmor %vm973, %vm977
    %v980 = vadd.s32 %v580, 30
    %v981 = vadd.s32 %v581, 30
    %vm982 = vcmp.eq.s32.totalorder %v586, %v980
    %vm983 = vcmp.eq.s32.totalorder %v586, %v981
    %vm984 = vmor %vm978, %vm982
    %vm985 = vmor %vm979, %vm983
    %v986 = vsel %vm984, 1, 0
    %v987 = vsel %vm985, 1, 0
    %v988 = vcvt.s32.f32 %v986
    %v989 = vcvt.s32.f32 %v987
    %v990 = vld [vmem:[%s4] sm:$0xf]
    %v991 = vld [vmem:[%s4 + $0x4] sm:$0xf]
    %v992 = vld [vmem:[%s4 + $0x8] sm:$0xf]
    %v993 = vld [vmem:[%s4 + $0xc] sm:$0xf]
    %v994 = vld [vmem:[%s4 + $0x10] sm:$0xf]
    %v995 = vld [vmem:[%s4 + $0x14] sm:$0xf]
    %v996 = vld [vmem:[%s4 + $0x18] sm:$0xf]
    %v997 = vld [vmem:[%s4 + $0x1c] sm:$0xf]
    %v998 = vld [vmem:[%s4 + $0x20] sm:$0xf]
    %v999 = vld [vmem:[%s4 + $0x24] sm:$0xf]
    %v1000 = vld [vmem:[%s4 + $0x28] sm:$0xf]
    %v1001 = vld [vmem:[%s4 + $0x2c] sm:$0xf]
    %v1002 = vld [vmem:[%s6] sm:$0xf]
    %vm1003 = vcmask 261120
    %v1004 = vsel %vm1003, %v573, 0.0
    %1005 = vadd.xlane.f32.xlu0 %v1004
    %v1006 = vpop.xlane.xlu0 %1005
    %vm1007 = vcmask 254976
    %v1008 = vsel %vm1007, %v576, 0.0
    %1009 = vadd.xlane.f32.xlu0 %v1008
    %v1010 = vpop.xlane.xlu0 %1009
    %v1011 = vrcp.pop 32.0
    %v1012 = vmul.f32 %v1006, %v1011
    %v1013 = vmul.f32 %v1010, %v1011
    %v1014 = vsub.f32 %v573, %v1012
    %v1015 = vsub.f32 %v576, %v1013
    %v1016 = vmul.f32 %v1014, %v1014
    %v1017 = vmul.f32 %v1015, %v1015
    %v1018 = vsel %vm1003, %v1016, 0.0
    %1019 = vadd.xlane.f32.xlu0 %v1018
    %v1020 = vpop.xlane.xlu0 %1019
    %v1021 = vsel %vm1007, %v1017, 0.0
    %1022 = vadd.xlane.f32.xlu0 %v1021
    %v1023 = vpop.xlane.xlu0 %1022
    %v1024 = vmul.f32 %v1020, %v1011
    %v1025 = vmul.f32 %v1023, %v1011
    %v1026 = vadd.f32 %v1024, 1e-12
    %v1027 = vadd.f32 %v1025, 1e-12
    %v1028 = vrsqrt.pop %v1026
    %v1029 = vrsqrt.pop %v1027
    %v1030 = vmul.f32 %v1014, %v1028
    %v1031 = vmul.f32 %v1015, %v1029
    %v1032 = vpack.c.bf16 %v1031, %v1030
    %v1033 = vld [vmem:[%s3] sm:$0xf]
    %v1034 = vld [vmem:[%s3 + $0x4] sm:$0xf]
    %v1035 = vld [vmem:[%s3 + $0x8] sm:$0xf]
    %v1036 = vld [vmem:[%s3 + $0xc] sm:$0xf]
    %v1037 = vlaneseq
    %v1038 = vshrl.u32 %v1037, 7
    %v1039 = vsub.s32 0, %v1038
    %v1040 = vrot.slane %v1002, %v1039
    %v1045 = vunpack.c.l.b16 %v1033
    %v1046 = vunpack.c.l.b16 %v1034
    %v1047 = vunpack.c.l.b16 %v1035
    %v1048 = vunpack.c.l.b16 %v1036
    %v1049 = vpack.c.b16 %v1046, %v1045
    %v1050 = vpack.c.b16 %v1048, %v1047
    %v1054 = vsel %vm1003, %v1032, 0
    %1056 = vmatprep.subr.bf16.mxu0 0
    %1057 = vmatpush1.bf16.msra.mxu0 0
    %1058 = vmatprep.subr.bf16.mxu0 0
    %1059 = vmatpush1.bf16.msra.mxu0 0
    %1060 = vmatprep.subr.bf16.mxu0 0
    %1061 = vmatpush1.bf16.msra.mxu0 0
    %1062 = vmatprep.subr.bf16.mxu0 0
    %1063 = vmatpush1.bf16.msra.mxu0 0
    %1064 = vmatprep.subr.bf16.mxu0 0
    %1065 = vmatpush1.bf16.msra.mxu0 0
    %1066 = vmatprep.subr.bf16.mxu0 0
    %1067 = vmatpush1.bf16.msra.mxu0 0
    %1068 = vmatprep.subr.bf16.mxu0 0
    %1069 = vmatpush1.bf16.msra.mxu0 %v1050
    %1070 = vmatprep.subr.bf16.mxu0 0
    %1071 = vmatpush1.bf16.msra.mxu0 %v1049
    %1072 = vmatprep.subr.bf16.mxu0 0
    %1073 = vmatpush2.bf16.msra.mxu0 0
    %1074 = vmatprep.subr.bf16.mxu0 0
    %1075 = vmatpush2.bf16.msra.mxu0 0
    %1076 = vmatprep.subr.bf16.mxu0 0
    %1077 = vmatpush2.bf16.msra.mxu0 0
    %1078 = vmatprep.subr.bf16.mxu0 0
    %1079 = vmatpush2.bf16.msra.mxu0 0
    %1080 = vmatprep.subr.bf16.mxu0 0
    %1081 = vmatpush2.bf16.msra.mxu0 0
    %1082 = vmatprep.subr.bf16.mxu0 0
    %1083 = vmatpush2.bf16.msra.mxu0 0
    %1084 = vmatprep.subr.bf16.mxu0 0
    %1085 = vmatpush2.bf16.msra.mxu0 0
    %1086 = vmatprep.subr.bf16.mxu0 0
    %1087 = vmatpush2.bf16.msra.mxu0 0
    %1088 = vmatprep.mubr.bf16.mxu0 0
    %1089 = vmatmul.mubr.bf16.gmra.mxu0 %v1054
    %v1090 = vpop.f32.mrf.mxu0
    %v1091 = vadd.f32 %v1040, %v1090
    %v1092 = vpop.f32.mrf.mxu0
    %v1093 = vpop.f32.mrf.mxu0
    %v1094 = vadd.f32 %v1040, %v1093
    %v1095 = vpop.f32.mrf.mxu0
    %1096 = vdwg.mxu0
    %vm1097 = vcmask 80896
    %v1099 = vsel %vm1097, %v869, 0
    %v1102 = vsel %vm1097, %v870, 0
    %v1105 = vsel %vm1097, %v871, 0
    %v1108 = vsel %vm1097, %v872, 0
    %v1111 = vsel %vm1097, %v873, 0
    %vm1113 = vcmask 1041408
    %v1115 = vsel %vm1113, %v1094, 0
    %1117 = vmatprep.subr.mxu0 0.0
    %1118 = vmatpush1.msra.mxu0 0.0
    %1119 = vmatprep.subr.mxu0 0.0
    %1120 = vmatpush1.msra.mxu0 0.0
    %1121 = vmatprep.subr.mxu0 0.0
    %1122 = vmatpush1.msra.mxu0 0.0
    %1123 = vmatprep.subr.mxu0 0.0
    %1124 = vmatpush1.msra.mxu0 0.0
    %1125 = vmatprep.subr.mxu0 0.0
    %1126 = vmatpush1.msra.mxu0 0.0
    %1127 = vmatprep.subr.mxu0 0.0
    %1128 = vmatpush1.msra.mxu0 0.0
    %1129 = vmatprep.subr.mxu0 0.0
    %1130 = vmatpush1.msra.mxu0 0.0
    %1131 = vmatprep.subr.mxu0 0.0
    %1132 = vmatpush1.msra.mxu0 0.0
    %1133 = vmatprep.subr.mxu0 0.0
    %1134 = vmatpush1.msra.mxu0 0.0
    %1135 = vmatprep.subr.mxu0 0.0
    %1136 = vmatpush1.msra.mxu0 0.0
    %1137 = vmatprep.subr.mxu0 0.0
    %1138 = vmatpush1.msra.mxu0 0.0
    %1139 = vmatprep.subr.mxu0 0.0
    %1140 = vmatpush1.msra.mxu0 0.0
    %1141 = vmatprep.subr.mxu0 0.0
    %1142 = vmatpush1.msra.mxu0 0.0
    %1143 = vmatprep.subr.mxu0 0.0
    %1144 = vmatpush1.msra.mxu0 0.0
    %1145 = vmatprep.subr.mxu0 0.0
    %1146 = vmatpush1.msra.mxu0 %v1115
    %1147 = vmatprep.subr.mxu0 0.0
    %1148 = vmatpush1.msra.mxu0 %v1091
    %1149 = vmatprep.subr.mxu0 0.0
    %1150 = vmatpush2.msra.mxu0 0.0
    %1151 = vmatprep.subr.mxu0 0.0
    %1152 = vmatpush2.msra.mxu0 0.0
    %1153 = vmatprep.subr.mxu0 0.0
    %1154 = vmatpush2.msra.mxu0 0.0
    %1155 = vmatprep.subr.mxu0 0.0
    %1156 = vmatpush2.msra.mxu0 0.0
    %1157 = vmatprep.subr.mxu0 0.0
    %1158 = vmatpush2.msra.mxu0 0.0
    %1159 = vmatprep.subr.mxu0 0.0
    %1160 = vmatpush2.msra.mxu0 0.0
    %1161 = vmatprep.subr.mxu0 0.0
    %1162 = vmatpush2.msra.mxu0 0.0
    %1163 = vmatprep.subr.mxu0 0.0
    %1164 = vmatpush2.msra.mxu0 0.0
    %1165 = vmatprep.subr.mxu0 0.0
    %1166 = vmatpush2.msra.mxu0 0.0
    %1167 = vmatprep.subr.mxu0 0.0
    %1168 = vmatpush2.msra.mxu0 0.0
    %1169 = vmatprep.subr.mxu0 0.0
    %1170 = vmatpush2.msra.mxu0 0.0
    %1171 = vmatprep.subr.mxu0 0.0
    %1172 = vmatpush2.msra.mxu0 0.0
    %1173 = vmatprep.subr.mxu0 0.0
    %1174 = vmatpush2.msra.mxu0 0.0
    %1175 = vmatprep.subr.mxu0 0.0
    %1176 = vmatpush2.msra.mxu0 0.0
    %1177 = vmatprep.subr.mxu0 0.0
    %1178 = vmatpush2.msra.mxu0 0.0
    %1179 = vmatprep.subr.mxu0 0.0
    %1180 = vmatpush2.msra.mxu0 0.0
    %1181 = vmatprep.mubr.f32.mxu0 0.0
    %1182 = vmatmul.mubr.f32.gmra.mxu0 %v1099
    %v1183 = vpop.f32.mrf.mxu0
    %v1184 = vadd.f32 0.0, %v1183
    %v1185 = vpop.f32.mrf.mxu0
    %1186 = vmatprep.mubr.f32.mxu0 0.0
    %1187 = vmatmul.mubr.f32.gmra.mxu0 %v1102
    %v1188 = vpop.f32.mrf.mxu0
    %v1189 = vadd.f32 0.0, %v1188
    %v1190 = vpop.f32.mrf.mxu0
    %1191 = vmatprep.mubr.f32.mxu0 0.0
    %1192 = vmatmul.mubr.f32.gmra.mxu0 %v1105
    %v1193 = vpop.f32.mrf.mxu0
    %v1194 = vadd.f32 0.0, %v1193
    %v1195 = vpop.f32.mrf.mxu0
    %1196 = vmatprep.mubr.f32.mxu0 0.0
    %1197 = vmatmul.mubr.f32.gmra.mxu0 %v1108
    %v1198 = vpop.f32.mrf.mxu0
    %v1199 = vadd.f32 0.0, %v1198
    %v1200 = vpop.f32.mrf.mxu0
    %1201 = vmatprep.mubr.f32.mxu0 0.0
    %1202 = vmatmul.mubr.f32.gmra.mxu0 %v1111
    %v1203 = vpop.f32.mrf.mxu0
    %v1204 = vadd.f32 0.0, %v1203
    %v1205 = vpop.f32.mrf.mxu0
    %1206 = vdwg.mxu0
    %v1207 = vmul.f32 %v1184, %v961
    %v1208 = vmul.f32 %v1189, %v962
    %v1209 = vmul.f32 %v1194, %v963
    %v1210 = vmul.f32 %v1199, %v964
    %v1211 = vmul.f32 %v1204, %v965
    %1213 = vrot.lane.b32.xlu0 %v1091, 96
    %v1214 = vpop.permute.xlu0 %1213
    %1215 = vrot.lane.b32.xlu0 %v1094, 96
    %v1216 = vpop.permute.xlu0 %1215
    %v1218 = vsel %vm1003, %v1207, 0
    %v1221 = vsel %vm1003, %v1208, 0
    %v1224 = vsel %vm1003, %v1209, 0
    %v1227 = vsel %vm1003, %v1210, 0
    %v1230 = vsel %vm1003, %v1211, 0
    %v1232 = vsel %vm1003, %v1214, 0
    %v1234 = vsel %vm1003, %v1216, 0
    %1236 = vmatprep.subr.mxu0 0.0
    %1237 = vmatpush1.xpose.msra.mxu0 0.0
    %1238 = vmatprep.subr.mxu0 0.0
    %1239 = vmatpush1.xpose.msra.mxu0 0.0
    %1240 = vmatprep.subr.mxu0 0.0
    %1241 = vmatpush1.xpose.msra.mxu0 0.0
    %1242 = vmatprep.subr.mxu0 0.0
    %1243 = vmatpush1.xpose.msra.mxu0 0.0
    %1244 = vmatprep.subr.mxu0 0.0
    %1245 = vmatpush1.xpose.msra.mxu0 0.0
    %1246 = vmatprep.subr.mxu0 0.0
    %1247 = vmatpush1.xpose.msra.mxu0 0.0
    %1248 = vmatprep.subr.mxu0 0.0
    %1249 = vmatpush1.xpose.msra.mxu0 0.0
    %1250 = vmatprep.subr.mxu0 0.0
    %1251 = vmatpush1.xpose.msra.mxu0 0.0
    %1252 = vmatprep.subr.mxu0 0.0
    %1253 = vmatpush1.xpose.msra.mxu0 0.0
    %1254 = vmatprep.subr.mxu0 0.0
    %1255 = vmatpush1.xpose.msra.mxu0 0.0
    %1256 = vmatprep.subr.mxu0 0.0
    %1257 = vmatpush1.xpose.msra.mxu0 0.0
    %1258 = vmatprep.subr.mxu0 0.0
    %1259 = vmatpush1.xpose.msra.mxu0 0.0
    %1260 = vmatprep.subr.mxu0 0.0
    %1261 = vmatpush1.xpose.msra.mxu0 0.0
    %1262 = vmatprep.subr.mxu0 0.0
    %1263 = vmatpush1.xpose.msra.mxu0 0.0
    %1264 = vmatprep.subr.mxu0 0.0
    %1265 = vmatpush1.xpose.msra.mxu0 %v1234
    %1266 = vmatprep.subr.mxu0 0.0
    %1267 = vmatpush1.xpose.msra.mxu0 %v1232
    %1268 = vmatprep.subr.mxu0 0.0
    %1269 = vmatpush2.xpose.msra.mxu0 0.0
    %1270 = vmatprep.subr.mxu0 0.0
    %1271 = vmatpush2.xpose.msra.mxu0 0.0
    %1272 = vmatprep.subr.mxu0 0.0
    %1273 = vmatpush2.xpose.msra.mxu0 0.0
    %1274 = vmatprep.subr.mxu0 0.0
    %1275 = vmatpush2.xpose.msra.mxu0 0.0
    %1276 = vmatprep.subr.mxu0 0.0
    %1277 = vmatpush2.xpose.msra.mxu0 0.0
    %1278 = vmatprep.subr.mxu0 0.0
    %1279 = vmatpush2.xpose.msra.mxu0 0.0
    %1280 = vmatprep.subr.mxu0 0.0
    %1281 = vmatpush2.xpose.msra.mxu0 0.0
    %1282 = vmatprep.subr.mxu0 0.0
    %1283 = vmatpush2.xpose.msra.mxu0 0.0
    %1284 = vmatprep.subr.mxu0 0.0
    %1285 = vmatpush2.xpose.msra.mxu0 0.0
    %1286 = vmatprep.subr.mxu0 0.0
    %1287 = vmatpush2.xpose.msra.mxu0 0.0
    %1288 = vmatprep.subr.mxu0 0.0
    %1289 = vmatpush2.xpose.msra.mxu0 0.0
    %1290 = vmatprep.subr.mxu0 0.0
    %1291 = vmatpush2.xpose.msra.mxu0 0.0
    %1292 = vmatprep.subr.mxu0 0.0
    %1293 = vmatpush2.xpose.msra.mxu0 0.0
    %1294 = vmatprep.subr.mxu0 0.0
    %1295 = vmatpush2.xpose.msra.mxu0 0.0
    %1296 = vmatprep.subr.mxu0 0.0
    %1297 = vmatpush2.xpose.msra.mxu0 0.0
    %1298 = vmatprep.subr.mxu0 0.0
    %1299 = vmatpush2.xpose.msra.mxu0 0.0
    %1300 = vmatprep.mubr.f32.mxu0 0.0
    %1301 = vmatmul.mubr.f32.gmra.mxu0 %v1218
    %v1302 = vpop.f32.mrf.mxu0
    %v1303 = vadd.f32 0.0, %v1302
    %v1304 = vpop.f32.mrf.mxu0
    %1305 = vmatprep.mubr.f32.mxu0 0.0
    %1306 = vmatmul.mubr.f32.gmra.mxu0 %v1221
    %v1307 = vpop.f32.mrf.mxu0
    %v1308 = vadd.f32 0.0, %v1307
    %v1309 = vpop.f32.mrf.mxu0
    %1310 = vmatprep.mubr.f32.mxu0 0.0
    %1311 = vmatmul.mubr.f32.gmra.mxu0 %v1224
    %v1312 = vpop.f32.mrf.mxu0
    %v1313 = vadd.f32 0.0, %v1312
    %v1314 = vpop.f32.mrf.mxu0
    %1315 = vmatprep.mubr.f32.mxu0 0.0
    %1316 = vmatmul.mubr.f32.gmra.mxu0 %v1227
    %v1317 = vpop.f32.mrf.mxu0
    %v1318 = vadd.f32 0.0, %v1317
    %v1319 = vpop.f32.mrf.mxu0
    %1320 = vmatprep.mubr.f32.mxu0 0.0
    %1321 = vmatmul.mubr.f32.gmra.mxu0 %v1230
    %v1322 = vpop.f32.mrf.mxu0
    %v1323 = vadd.f32 0.0, %v1322
    %v1324 = vpop.f32.mrf.mxu0
    %1325 = vdwg.mxu0
    %v1326 = vmul.f32 %v1303, 0.35355338
    %v1327 = vmul.f32 %v1308, 0.35355338
    %v1328 = vmul.f32 %v1313, 0.35355338
    %v1329 = vmul.f32 %v1318, 0.35355338
    %v1330 = vmul.f32 %v1323, 0.35355338
    %v1331 = vsel %vm859, %v1326, -1e+30
    %v1332 = vsel %vm860, %v1327, -1e+30
    %v1333 = vsel %vm861, %v1328, -1e+30
    %v1334 = vsel %vm862, %v1329, -1e+30
    %v1335 = vsel %vm863, %v1330, -1e+30
    %v1336 = vsel %vm1097, %v1331, -inf
    %1337 = vmax.xlane.f32.xlu0 %v1336
    %v1338 = vpop.xlane.xlu0 %1337
    %v1339 = vsel %vm1097, %v1332, -inf
    %1340 = vmax.xlane.f32.xlu0 %v1339
    %v1341 = vpop.xlane.xlu0 %1340
    %v1342 = vsel %vm1097, %v1333, -inf
    %1343 = vmax.xlane.f32.xlu0 %v1342
    %v1344 = vpop.xlane.xlu0 %1343
    %v1345 = vsel %vm1097, %v1334, -inf
    %1346 = vmax.xlane.f32.xlu0 %v1345
    %v1347 = vpop.xlane.xlu0 %1346
    %v1348 = vsel %vm1097, %v1335, -inf
    %1349 = vmax.xlane.f32.xlu0 %v1348
    %v1350 = vpop.xlane.xlu0 %1349
    %v1351 = vsub.f32 %v1331, %v1338
    %v1352 = vsub.f32 %v1332, %v1341
    %v1353 = vsub.f32 %v1333, %v1344
    %v1354 = vsub.f32 %v1334, %v1347
    %v1355 = vsub.f32 %v1335, %v1350
    %v1356 = vmul.f32 %v1351, 1.442695
    %v1357 = vpow.pop %v1356
    %v1358 = vmul.f32 %v1352, 1.442695
    %v1359 = vpow.pop %v1358
    %v1360 = vmul.f32 %v1353, 1.442695
    %v1361 = vpow.pop %v1360
    %v1362 = vmul.f32 %v1354, 1.442695
    %v1363 = vpow.pop %v1362
    %v1364 = vmul.f32 %v1355, 1.442695
    %v1365 = vpow.pop %v1364
    %v1366 = vsel %vm1097, %v1357, 0.0
    %1367 = vadd.xlane.f32.xlu0 %v1366
    %v1368 = vpop.xlane.xlu0 %1367
    %v1369 = vsel %vm1097, %v1359, 0.0
    %1370 = vadd.xlane.f32.xlu0 %v1369
    %v1371 = vpop.xlane.xlu0 %1370
    %v1372 = vsel %vm1097, %v1361, 0.0
    %1373 = vadd.xlane.f32.xlu0 %v1372
    %v1374 = vpop.xlane.xlu0 %1373
    %v1375 = vsel %vm1097, %v1363, 0.0
    %1376 = vadd.xlane.f32.xlu0 %v1375
    %v1377 = vpop.xlane.xlu0 %1376
    %v1378 = vsel %vm1097, %v1365, 0.0
    %1379 = vadd.xlane.f32.xlu0 %v1378
    %v1380 = vpop.xlane.xlu0 %1379
    %v1381 = vrcp.pop %v1368
    %v1382 = vrcp.pop %v1371
    %v1383 = vrcp.pop %v1374
    %v1384 = vrcp.pop %v1377
    %v1385 = vrcp.pop %v1380
    %v1386 = vmul.f32 %v1357, %v1381
    %v1387 = vmul.f32 %v1359, %v1382
    %v1388 = vmul.f32 %v1361, %v1383
    %v1389 = vmul.f32 %v1363, %v1384
    %v1390 = vmul.f32 %v1365, %v1385
    %1391 = vrot.lane.b32.xlu0 %v1091, 64
    %v1392 = vpop.permute.xlu0 %1391
    %1393 = vrot.lane.b32.xlu0 %v1094, 64
    %v1394 = vpop.permute.xlu0 %1393
    %v1397 = vsel %vm1097, %v1386, 0
    %v1400 = vsel %vm1097, %v1387, 0
    %v1403 = vsel %vm1097, %v1388, 0
    %v1406 = vsel %vm1097, %v1389, 0
    %v1409 = vsel %vm1097, %v1390, 0
    %v1411 = vsel %vm1113, %v1394, 0
    %1413 = vmatprep.subr.mxu0 0.0
    %1414 = vmatpush1.msra.mxu0 0.0
    %1415 = vmatprep.subr.mxu0 0.0
    %1416 = vmatpush1.msra.mxu0 0.0
    %1417 = vmatprep.subr.mxu0 0.0
    %1418 = vmatpush1.msra.mxu0 0.0
    %1419 = vmatprep.subr.mxu0 0.0
    %1420 = vmatpush1.msra.mxu0 0.0
    %1421 = vmatprep.subr.mxu0 0.0
    %1422 = vmatpush1.msra.mxu0 0.0
    %1423 = vmatprep.subr.mxu0 0.0
    %1424 = vmatpush1.msra.mxu0 0.0
    %1425 = vmatprep.subr.mxu0 0.0
    %1426 = vmatpush1.msra.mxu0 0.0
    %1427 = vmatprep.subr.mxu0 0.0
    %1428 = vmatpush1.msra.mxu0 0.0
    %1429 = vmatprep.subr.mxu0 0.0
    %1430 = vmatpush1.msra.mxu0 0.0
    %1431 = vmatprep.subr.mxu0 0.0
    %1432 = vmatpush1.msra.mxu0 0.0
    %1433 = vmatprep.subr.mxu0 0.0
    %1434 = vmatpush1.msra.mxu0 0.0
    %1435 = vmatprep.subr.mxu0 0.0
    %1436 = vmatpush1.msra.mxu0 0.0
    %1437 = vmatprep.subr.mxu0 0.0
    %1438 = vmatpush1.msra.mxu0 0.0
    %1439 = vmatprep.subr.mxu0 0.0
    %1440 = vmatpush1.msra.mxu0 0.0
    %1441 = vmatprep.subr.mxu0 0.0
    %1442 = vmatpush1.msra.mxu0 %v1411
    %1443 = vmatprep.subr.mxu0 0.0
    %1444 = vmatpush1.msra.mxu0 %v1392
    %1445 = vmatprep.subr.mxu0 0.0
    %1446 = vmatpush2.msra.mxu0 0.0
    %1447 = vmatprep.subr.mxu0 0.0
    %1448 = vmatpush2.msra.mxu0 0.0
    %1449 = vmatprep.subr.mxu0 0.0
    %1450 = vmatpush2.msra.mxu0 0.0
    %1451 = vmatprep.subr.mxu0 0.0
    %1452 = vmatpush2.msra.mxu0 0.0
    %1453 = vmatprep.subr.mxu0 0.0
    %1454 = vmatpush2.msra.mxu0 0.0
    %1455 = vmatprep.subr.mxu0 0.0
    %1456 = vmatpush2.msra.mxu0 0.0
    %1457 = vmatprep.subr.mxu0 0.0
    %1458 = vmatpush2.msra.mxu0 0.0
    %1459 = vmatprep.subr.mxu0 0.0
    %1460 = vmatpush2.msra.mxu0 0.0
    %1461 = vmatprep.subr.mxu0 0.0
    %1462 = vmatpush2.msra.mxu0 0.0
    %1463 = vmatprep.subr.mxu0 0.0
    %1464 = vmatpush2.msra.mxu0 0.0
    %1465 = vmatprep.subr.mxu0 0.0
    %1466 = vmatpush2.msra.mxu0 0.0
    %1467 = vmatprep.subr.mxu0 0.0
    %1468 = vmatpush2.msra.mxu0 0.0
    %1469 = vmatprep.subr.mxu0 0.0
    %1470 = vmatpush2.msra.mxu0 0.0
    %1471 = vmatprep.subr.mxu0 0.0
    %1472 = vmatpush2.msra.mxu0 0.0
    %1473 = vmatprep.subr.mxu0 0.0
    %1474 = vmatpush2.msra.mxu0 0.0
    %1475 = vmatprep.subr.mxu0 0.0
    %1476 = vmatpush2.msra.mxu0 0.0
    %1477 = vmatprep.mubr.f32.mxu0 0.0
    %1478 = vmatmul.mubr.f32.gmra.mxu0 %v1397
    %v1479 = vpop.f32.mrf.mxu0
    %v1480 = vadd.f32 0.0, %v1479
    %v1481 = vpop.f32.mrf.mxu0
    %1482 = vmatprep.mubr.f32.mxu0 0.0
    %1483 = vmatmul.mubr.f32.gmra.mxu0 %v1400
    %v1484 = vpop.f32.mrf.mxu0
    %v1485 = vadd.f32 0.0, %v1484
    %v1486 = vpop.f32.mrf.mxu0
    %1487 = vmatprep.mubr.f32.mxu0 0.0
    %1488 = vmatmul.mubr.f32.gmra.mxu0 %v1403
    %v1489 = vpop.f32.mrf.mxu0
    %v1490 = vadd.f32 0.0, %v1489
    %v1491 = vpop.f32.mrf.mxu0
    %1492 = vmatprep.mubr.f32.mxu0 0.0
    %1493 = vmatmul.mubr.f32.gmra.mxu0 %v1406
    %v1494 = vpop.f32.mrf.mxu0
    %v1495 = vadd.f32 0.0, %v1494
    %v1496 = vpop.f32.mrf.mxu0
    %1497 = vmatprep.mubr.f32.mxu0 0.0
    %1498 = vmatmul.mubr.f32.gmra.mxu0 %v1409
    %v1499 = vpop.f32.mrf.mxu0
    %v1500 = vadd.f32 0.0, %v1499
    %v1501 = vpop.f32.mrf.mxu0
    %1502 = vdwg.mxu0
    %v1503 = vmul.f32 %v1480, %v961
    %v1504 = vmul.f32 %v1485, %v962
    %v1505 = vmul.f32 %v1490, %v963
    %v1506 = vmul.f32 %v1495, %v964
    %v1507 = vmul.f32 %v1500, %v965
    %vm1508 = vcmask 326656
    %v1510 = vsel %vm1508, %v988, 0
    %v1513 = vsel %vm1508, %v989, 0
    %1515 = vmatprep.subr.mxu0 0.0
    %1516 = vmatpush1.msra.mxu0 0.0
    %1517 = vmatprep.subr.mxu0 0.0
    %1518 = vmatpush1.msra.mxu0 0.0
    %1519 = vmatprep.subr.mxu0 0.0
    %1520 = vmatpush1.msra.mxu0 0.0
    %1521 = vmatprep.subr.mxu0 0.0
    %1522 = vmatpush1.msra.mxu0 0.0
    %1523 = vmatprep.subr.mxu0 0.0
    %1524 = vmatpush1.msra.mxu0 0.0
    %1525 = vmatprep.subr.mxu0 0.0
    %1526 = vmatpush1.msra.mxu0 0.0
    %1527 = vmatprep.subr.mxu0 0.0
    %1528 = vmatpush1.msra.mxu0 0.0
    %1529 = vmatprep.subr.mxu0 0.0
    %1530 = vmatpush1.msra.mxu0 0.0
    %1531 = vmatprep.subr.mxu0 0.0
    %1532 = vmatpush1.msra.mxu0 0.0
    %1533 = vmatprep.subr.mxu0 0.0
    %1534 = vmatpush1.msra.mxu0 0.0
    %1535 = vmatprep.subr.mxu0 0.0
    %1536 = vmatpush1.msra.mxu0 0.0
    %1537 = vmatprep.subr.mxu0 0.0
    %1538 = vmatpush1.msra.mxu0 %v1507
    %1539 = vmatprep.subr.mxu0 0.0
    %1540 = vmatpush1.msra.mxu0 %v1506
    %1541 = vmatprep.subr.mxu0 0.0
    %1542 = vmatpush1.msra.mxu0 %v1505
    %1543 = vmatprep.subr.mxu0 0.0
    %1544 = vmatpush1.msra.mxu0 %v1504
    %1545 = vmatprep.subr.mxu0 0.0
    %1546 = vmatpush1.msra.mxu0 %v1503
    %1547 = vmatprep.subr.mxu0 0.0
    %1548 = vmatpush2.msra.mxu0 0.0
    %1549 = vmatprep.subr.mxu0 0.0
    %1550 = vmatpush2.msra.mxu0 0.0
    %1551 = vmatprep.subr.mxu0 0.0
    %1552 = vmatpush2.msra.mxu0 0.0
    %1553 = vmatprep.subr.mxu0 0.0
    %1554 = vmatpush2.msra.mxu0 0.0
    %1555 = vmatprep.subr.mxu0 0.0
    %1556 = vmatpush2.msra.mxu0 0.0
    %1557 = vmatprep.subr.mxu0 0.0
    %1558 = vmatpush2.msra.mxu0 0.0
    %1559 = vmatprep.subr.mxu0 0.0
    %1560 = vmatpush2.msra.mxu0 0.0
    %1561 = vmatprep.subr.mxu0 0.0
    %1562 = vmatpush2.msra.mxu0 0.0
    %1563 = vmatprep.subr.mxu0 0.0
    %1564 = vmatpush2.msra.mxu0 0.0
    %1565 = vmatprep.subr.mxu0 0.0
    %1566 = vmatpush2.msra.mxu0 0.0
    %1567 = vmatprep.subr.mxu0 0.0
    %1568 = vmatpush2.msra.mxu0 0.0
    %1569 = vmatprep.subr.mxu0 0.0
    %1570 = vmatpush2.msra.mxu0 0.0
    %1571 = vmatprep.subr.mxu0 0.0
    %1572 = vmatpush2.msra.mxu0 0.0
    %1573 = vmatprep.subr.mxu0 0.0
    %1574 = vmatpush2.msra.mxu0 0.0
    %1575 = vmatprep.subr.mxu0 0.0
    %1576 = vmatpush2.msra.mxu0 0.0
    %1577 = vmatprep.subr.mxu0 0.0
    %1578 = vmatpush2.msra.mxu0 0.0
    %1579 = vmatprep.mubr.f32.mxu0 0.0
    %1580 = vmatmul.mubr.f32.gmra.mxu0 %v1510
    %v1581 = vpop.f32.mrf.mxu0
    %v1582 = vadd.f32 0.0, %v1581
    %v1583 = vpop.f32.mrf.mxu0
    %1584 = vmatprep.mubr.f32.mxu0 0.0
    %1585 = vmatmul.mubr.f32.gmra.mxu0 %v1513
    %v1586 = vpop.f32.mrf.mxu0
    %v1587 = vadd.f32 0.0, %v1586
    %v1588 = vpop.f32.mrf.mxu0
    %1589 = vdwg.mxu0
    %v1590 = vpack.c.bf16 %v1587, %v1582
    %v1595 = vunpack.c.l.b16 %v990
    %v1596 = vunpack.c.l.b16 %v991
    %v1597 = vunpack.c.l.b16 %v992
    %v1598 = vunpack.c.l.b16 %v993
    %v1599 = vpack.c.b16 %v1596, %v1595
    %v1600 = vpack.c.b16 %v1598, %v1597
    %v1604 = vsel %vm1003, %v1590, 0
    %1606 = vmatprep.subr.bf16.mxu0 0
    %1607 = vmatpush1.bf16.msra.mxu0 0
    %1608 = vmatprep.subr.bf16.mxu0 0
    %1609 = vmatpush1.bf16.msra.mxu0 0
    %1610 = vmatprep.subr.bf16.mxu0 0
    %1611 = vmatpush1.bf16.msra.mxu0 0
    %1612 = vmatprep.subr.bf16.mxu0 0
    %1613 = vmatpush1.bf16.msra.mxu0 0
    %1614 = vmatprep.subr.bf16.mxu0 0
    %1615 = vmatpush1.bf16.msra.mxu0 0
    %1616 = vmatprep.subr.bf16.mxu0 0
    %1617 = vmatpush1.bf16.msra.mxu0 0
    %1618 = vmatprep.subr.bf16.mxu0 0
    %1619 = vmatpush1.bf16.msra.mxu0 %v1600
    %1620 = vmatprep.subr.bf16.mxu0 0
    %1621 = vmatpush1.bf16.msra.mxu0 %v1599
    %1622 = vmatprep.subr.bf16.mxu0 0
    %1623 = vmatpush2.bf16.msra.mxu0 0
    %1624 = vmatprep.subr.bf16.mxu0 0
    %1625 = vmatpush2.bf16.msra.mxu0 0
    %1626 = vmatprep.subr.bf16.mxu0 0
    %1627 = vmatpush2.bf16.msra.mxu0 0
    %1628 = vmatprep.subr.bf16.mxu0 0
    %1629 = vmatpush2.bf16.msra.mxu0 0
    %1630 = vmatprep.subr.bf16.mxu0 0
    %1631 = vmatpush2.bf16.msra.mxu0 0
    %1632 = vmatprep.subr.bf16.mxu0 0
    %1633 = vmatpush2.bf16.msra.mxu0 0
    %1634 = vmatprep.subr.bf16.mxu0 0
    %1635 = vmatpush2.bf16.msra.mxu0 0
    %1636 = vmatprep.subr.bf16.mxu0 0
    %1637 = vmatpush2.bf16.msra.mxu0 0
    %1638 = vmatprep.mubr.bf16.mxu0 0
    %1639 = vmatmul.mubr.bf16.gmra.mxu0 %v1604
    %v1640 = vpop.f32.mrf.mxu0
    %v1641 = vadd.f32 0.0, %v1640
    %v1642 = vpop.f32.mrf.mxu0
    %v1643 = vpop.f32.mrf.mxu0
    %v1644 = vadd.f32 0.0, %v1643
    %v1645 = vpop.f32.mrf.mxu0
    %1646 = vdwg.mxu0
    %v1647 = vadd.f32 %v573, %v1641
    %v1648 = vadd.f32 %v576, %v1644
    %v1649 = vlaneseq
    %v1650 = vshrl.u32 %v1649, 7
    %v1651 = vsub.s32 1, %v1650
    %v1652 = vrot.slane %v1002, %v1651
    %v1653 = vadd.f32 %v1647, %v1652
    %v1654 = vadd.f32 %v1648, %v1652
    %v1655 = vsel %vm1003, %v1653, 0.0
    %1656 = vadd.xlane.f32.xlu0 %v1655
    %v1657 = vpop.xlane.xlu0 %1656
    %v1658 = vsel %vm1007, %v1654, 0.0
    %1659 = vadd.xlane.f32.xlu0 %v1658
    %v1660 = vpop.xlane.xlu0 %1659
    %v1661 = vmul.f32 %v1657, %v1011
    %v1662 = vmul.f32 %v1660, %v1011
    %v1663 = vsub.f32 %v1653, %v1661
    %v1664 = vsub.f32 %v1654, %v1662
    %v1665 = vmul.f32 %v1663, %v1663
    %v1666 = vmul.f32 %v1664, %v1664
    %v1667 = vsel %vm1003, %v1665, 0.0
    %1668 = vadd.xlane.f32.xlu0 %v1667
    %v1669 = vpop.xlane.xlu0 %1668
    %v1670 = vsel %vm1007, %v1666, 0.0
    %1671 = vadd.xlane.f32.xlu0 %v1670
    %v1672 = vpop.xlane.xlu0 %1671
    %v1673 = vmul.f32 %v1669, %v1011
    %v1674 = vmul.f32 %v1672, %v1011
    %v1675 = vadd.f32 %v1673, 1e-12
    %v1676 = vadd.f32 %v1674, 1e-12
    %v1677 = vrsqrt.pop %v1675
    %v1678 = vrsqrt.pop %v1676
    %v1679 = vmul.f32 %v1663, %v1677
    %v1680 = vmul.f32 %v1664, %v1678
    %v1681 = vpack.c.bf16 %v1680, %v1679
    %v1682 = vld [vmem:[%s5] sm:$0xf]
    %v1683 = vld [vmem:[%s5 + $0x4] sm:$0xf]
    %v1684 = vld [vmem:[%s5 + $0x8] sm:$0xf]
    %v1685 = vld [vmem:[%s5 + $0xc] sm:$0xf]
    %v1686 = vlaneseq
    %v1687 = vshrl.u32 %v1686, 7
    %v1688 = vsub.s32 2, %v1687
    %v1689 = vrot.slane %v1002, %v1688
    %v1694 = vunpack.c.l.b16 %v1682
    %v1695 = vunpack.c.l.b16 %v1683
    %v1696 = vunpack.c.l.b16 %v1684
    %v1697 = vunpack.c.l.b16 %v1685
    %v1698 = vpack.c.b16 %v1695, %v1694
    %v1699 = vpack.c.b16 %v1697, %v1696
    %v1703 = vsel %vm1003, %v1681, 0
    %1705 = vmatprep.subr.bf16.mxu0 0
    %1706 = vmatpush1.bf16.msra.mxu0 0
    %1707 = vmatprep.subr.bf16.mxu0 0
    %1708 = vmatpush1.bf16.msra.mxu0 0
    %1709 = vmatprep.subr.bf16.mxu0 0
    %1710 = vmatpush1.bf16.msra.mxu0 0
    %1711 = vmatprep.subr.bf16.mxu0 0
    %1712 = vmatpush1.bf16.msra.mxu0 0
    %1713 = vmatprep.subr.bf16.mxu0 0
    %1714 = vmatpush1.bf16.msra.mxu0 0
    %1715 = vmatprep.subr.bf16.mxu0 0
    %1716 = vmatpush1.bf16.msra.mxu0 0
    %1717 = vmatprep.subr.bf16.mxu0 0
    %1718 = vmatpush1.bf16.msra.mxu0 %v1699
    %1719 = vmatprep.subr.bf16.mxu0 0
    %1720 = vmatpush1.bf16.msra.mxu0 %v1698
    %1721 = vmatprep.subr.bf16.mxu0 0
    %1722 = vmatpush2.bf16.msra.mxu0 0
    %1723 = vmatprep.subr.bf16.mxu0 0
    %1724 = vmatpush2.bf16.msra.mxu0 0
    %1725 = vmatprep.subr.bf16.mxu0 0
    %1726 = vmatpush2.bf16.msra.mxu0 0
    %1727 = vmatprep.subr.bf16.mxu0 0
    %1728 = vmatpush2.bf16.msra.mxu0 0
    %1729 = vmatprep.subr.bf16.mxu0 0
    %1730 = vmatpush2.bf16.msra.mxu0 0
    %1731 = vmatprep.subr.bf16.mxu0 0
    %1732 = vmatpush2.bf16.msra.mxu0 0
    %1733 = vmatprep.subr.bf16.mxu0 0
    %1734 = vmatpush2.bf16.msra.mxu0 0
    %1735 = vmatprep.subr.bf16.mxu0 0
    %1736 = vmatpush2.bf16.msra.mxu0 0
    %1737 = vmatprep.mubr.bf16.mxu0 0
    %1738 = vmatmul.mubr.bf16.gmra.mxu0 %v1703
    %v1739 = vpop.f32.mrf.mxu0
    %v1740 = vadd.f32 %v1689, %v1739
    %v1741 = vpop.f32.mrf.mxu0
    %v1742 = vpop.f32.mrf.mxu0
    %v1743 = vadd.f32 %v1689, %v1742
    %v1744 = vpop.f32.mrf.mxu0
    %1745 = vdwg.mxu0
    %v1746 = vmul.f32 %v1740, %v1740
    %v1747 = vmul.f32 %v1743, %v1743
    %v1748 = vmul.f32 %v1740, %v1746
    %v1749 = vmul.f32 %v1743, %v1747
    %v1750 = vmul.f32 %v1748, 0.044715
    %v1751 = vmul.f32 %v1749, 0.044715
    %v1752 = vadd.f32 %v1740, %v1750
    %v1753 = vadd.f32 %v1743, %v1751
    %v1754 = vmul.f32 %v1752, 0.7978846
    %v1755 = vmul.f32 %v1753, 0.7978846
    %v1756 = vtanh.pop %v1754
    %v1757 = vtanh.pop %v1755
    %v1758 = vadd.f32 %v1756, 1.0
    %v1759 = vadd.f32 %v1757, 1.0
    %v1760 = vmul.f32 %v1758, 0.5
    %v1761 = vmul.f32 %v1759, 0.5
    %v1762 = vmul.f32 %v1740, %v1760
    %v1763 = vmul.f32 %v1743, %v1761
    %v1764 = vpack.c.bf16 %v1763, %v1762
    %v1773 = vunpack.c.l.b16 %v994
    %v1774 = vunpack.c.l.b16 %v995
    %v1775 = vunpack.c.l.b16 %v996
    %v1776 = vunpack.c.l.b16 %v997
    %v1777 = vunpack.c.l.b16 %v998
    %v1778 = vunpack.c.l.b16 %v999
    %v1779 = vunpack.c.l.b16 %v1000
    %v1780 = vunpack.c.l.b16 %v1001
    %v1781 = vpack.c.b16 %v1774, %v1773
    %v1782 = vpack.c.b16 %v1776, %v1775
    %v1783 = vpack.c.b16 %v1778, %v1777
    %v1784 = vpack.c.b16 %v1780, %v1779
    %vm1789 = vcmask 523264
    %v1791 = vsel %vm1789, %v1764, 0
    %1793 = vmatprep.subr.bf16.mxu0 0
    %1794 = vmatpush1.bf16.msra.mxu0 0
    %1795 = vmatprep.subr.bf16.mxu0 0
    %1796 = vmatpush1.bf16.msra.mxu0 0
    %1797 = vmatprep.subr.bf16.mxu0 0
    %1798 = vmatpush1.bf16.msra.mxu0 0
    %1799 = vmatprep.subr.bf16.mxu0 0
    %1800 = vmatpush1.bf16.msra.mxu0 0
    %1801 = vmatprep.subr.bf16.mxu0 0
    %1802 = vmatpush1.bf16.msra.mxu0 %v1784
    %1803 = vmatprep.subr.bf16.mxu0 0
    %1804 = vmatpush1.bf16.msra.mxu0 %v1783
    %1805 = vmatprep.subr.bf16.mxu0 0
    %1806 = vmatpush1.bf16.msra.mxu0 %v1782
    %1807 = vmatprep.subr.bf16.mxu0 0
    %1808 = vmatpush1.bf16.msra.mxu0 %v1781
    %1809 = vmatprep.subr.bf16.mxu0 0
    %1810 = vmatpush2.bf16.msra.mxu0 0
    %1811 = vmatprep.subr.bf16.mxu0 0
    %1812 = vmatpush2.bf16.msra.mxu0 0
    %1813 = vmatprep.subr.bf16.mxu0 0
    %1814 = vmatpush2.bf16.msra.mxu0 0
    %1815 = vmatprep.subr.bf16.mxu0 0
    %1816 = vmatpush2.bf16.msra.mxu0 0
    %1817 = vmatprep.subr.bf16.mxu0 0
    %1818 = vmatpush2.bf16.msra.mxu0 0
    %1819 = vmatprep.subr.bf16.mxu0 0
    %1820 = vmatpush2.bf16.msra.mxu0 0
    %1821 = vmatprep.subr.bf16.mxu0 0
    %1822 = vmatpush2.bf16.msra.mxu0 0
    %1823 = vmatprep.subr.bf16.mxu0 0
    %1824 = vmatpush2.bf16.msra.mxu0 0
    %1825 = vmatprep.mubr.bf16.mxu0 0
    %1826 = vmatmul.mubr.bf16.gmra.mxu0 %v1791
    %v1827 = vpop.f32.mrf.mxu0
    %v1828 = vadd.f32 0.0, %v1827
    %v1829 = vpop.f32.mrf.mxu0
    %v1830 = vpop.f32.mrf.mxu0
    %v1831 = vadd.f32 0.0, %v1830
    %v1832 = vpop.f32.mrf.mxu0
    %1833 = vdwg.mxu0
    %v1834 = vadd.f32 %v1653, %v1828
    %v1835 = vadd.f32 %v1654, %v1831
    %v1836 = vlaneseq
    %v1837 = vshrl.u32 %v1836, 7
    %v1838 = vsub.s32 3, %v1837
    %v1839 = vrot.slane %v1002, %v1838
    %v1840 = vadd.f32 %v1834, %v1839
    %v1841 = vadd.f32 %v1835, %v1839
    %s1842 = scalar_lea.vmem %s4, 48
    %v1843 = vld [vmem:[%s1842] sm:$0xf]
    %v1844 = vld [vmem:[%s1842 + $0x4] sm:$0xf]
    %v1845 = vld [vmem:[%s1842 + $0x8] sm:$0xf]
    %v1846 = vld [vmem:[%s1842 + $0xc] sm:$0xf]
    %v1847 = vld [vmem:[%s1842 + $0x10] sm:$0xf]
    %v1848 = vld [vmem:[%s1842 + $0x14] sm:$0xf]
    %v1849 = vld [vmem:[%s1842 + $0x18] sm:$0xf]
    %v1850 = vld [vmem:[%s1842 + $0x1c] sm:$0xf]
    %v1851 = vld [vmem:[%s1842 + $0x20] sm:$0xf]
    %v1852 = vld [vmem:[%s1842 + $0x24] sm:$0xf]
    %v1853 = vld [vmem:[%s1842 + $0x28] sm:$0xf]
    %v1854 = vld [vmem:[%s1842 + $0x2c] sm:$0xf]
    %s1855 = scalar_lea.vmem %s6, 4
    %v1856 = vld [vmem:[%s1855] sm:$0xf]
    %v1857 = vsel %vm1003, %v1840, 0.0
    %1858 = vadd.xlane.f32.xlu0 %v1857
    %v1859 = vpop.xlane.xlu0 %1858
    %v1860 = vsel %vm1007, %v1841, 0.0
    %1861 = vadd.xlane.f32.xlu0 %v1860
    %v1862 = vpop.xlane.xlu0 %1861
    %v1863 = vmul.f32 %v1859, %v1011
    %v1864 = vmul.f32 %v1862, %v1011
    %v1865 = vsub.f32 %v1840, %v1863
    %v1866 = vsub.f32 %v1841, %v1864
    %v1867 = vmul.f32 %v1865, %v1865
    %v1868 = vmul.f32 %v1866, %v1866
    %v1869 = vsel %vm1003, %v1867, 0.0
    %1870 = vadd.xlane.f32.xlu0 %v1869
    %v1871 = vpop.xlane.xlu0 %1870
    %v1872 = vsel %vm1007, %v1868, 0.0
    %1873 = vadd.xlane.f32.xlu0 %v1872
    %v1874 = vpop.xlane.xlu0 %1873
    %v1875 = vmul.f32 %v1871, %v1011
    %v1876 = vmul.f32 %v1874, %v1011
    %v1877 = vadd.f32 %v1875, 1e-12
    %v1878 = vadd.f32 %v1876, 1e-12
    %v1879 = vrsqrt.pop %v1877
    %v1880 = vrsqrt.pop %v1878
    %v1881 = vmul.f32 %v1865, %v1879
    %v1882 = vmul.f32 %v1866, %v1880
    %v1883 = vpack.c.bf16 %v1882, %v1881
    %s1884 = scalar_lea.vmem %s3, 16
    %v1885 = vld [vmem:[%s1884] sm:$0xf]
    %v1886 = vld [vmem:[%s1884 + $0x4] sm:$0xf]
    %v1887 = vld [vmem:[%s1884 + $0x8] sm:$0xf]
    %v1888 = vld [vmem:[%s1884 + $0xc] sm:$0xf]
    %v1889 = vlaneseq
    %v1890 = vshrl.u32 %v1889, 7
    %v1891 = vsub.s32 0, %v1890
    %v1892 = vrot.slane %v1856, %v1891
    %v1897 = vunpack.c.l.b16 %v1885
    %v1898 = vunpack.c.l.b16 %v1886
    %v1899 = vunpack.c.l.b16 %v1887
    %v1900 = vunpack.c.l.b16 %v1888
    %v1901 = vpack.c.b16 %v1898, %v1897
    %v1902 = vpack.c.b16 %v1900, %v1899
    %v1906 = vsel %vm1003, %v1883, 0
    %1908 = vmatprep.subr.bf16.mxu0 0
    %1909 = vmatpush1.bf16.msra.mxu0 0
    %1910 = vmatprep.subr.bf16.mxu0 0
    %1911 = vmatpush1.bf16.msra.mxu0 0
    %1912 = vmatprep.subr.bf16.mxu0 0
    %1913 = vmatpush1.bf16.msra.mxu0 0
    %1914 = vmatprep.subr.bf16.mxu0 0
    %1915 = vmatpush1.bf16.msra.mxu0 0
    %1916 = vmatprep.subr.bf16.mxu0 0
    %1917 = vmatpush1.bf16.msra.mxu0 0
    %1918 = vmatprep.subr.bf16.mxu0 0
    %1919 = vmatpush1.bf16.msra.mxu0 0
    %1920 = vmatprep.subr.bf16.mxu0 0
    %1921 = vmatpush1.bf16.msra.mxu0 %v1902
    %1922 = vmatprep.subr.bf16.mxu0 0
    %1923 = vmatpush1.bf16.msra.mxu0 %v1901
    %1924 = vmatprep.subr.bf16.mxu0 0
    %1925 = vmatpush2.bf16.msra.mxu0 0
    %1926 = vmatprep.subr.bf16.mxu0 0
    %1927 = vmatpush2.bf16.msra.mxu0 0
    %1928 = vmatprep.subr.bf16.mxu0 0
    %1929 = vmatpush2.bf16.msra.mxu0 0
    %1930 = vmatprep.subr.bf16.mxu0 0
    %1931 = vmatpush2.bf16.msra.mxu0 0
    %1932 = vmatprep.subr.bf16.mxu0 0
    %1933 = vmatpush2.bf16.msra.mxu0 0
    %1934 = vmatprep.subr.bf16.mxu0 0
    %1935 = vmatpush2.bf16.msra.mxu0 0
    %1936 = vmatprep.subr.bf16.mxu0 0
    %1937 = vmatpush2.bf16.msra.mxu0 0
    %1938 = vmatprep.subr.bf16.mxu0 0
    %1939 = vmatpush2.bf16.msra.mxu0 0
    %1940 = vmatprep.mubr.bf16.mxu0 0
    %1941 = vmatmul.mubr.bf16.gmra.mxu0 %v1906
    %v1942 = vpop.f32.mrf.mxu0
    %v1943 = vadd.f32 %v1892, %v1942
    %v1944 = vpop.f32.mrf.mxu0
    %v1945 = vpop.f32.mrf.mxu0
    %v1946 = vadd.f32 %v1892, %v1945
    %v1947 = vpop.f32.mrf.mxu0
    %1948 = vdwg.mxu0
    %v1950 = vsel %vm1113, %v1946, 0
    %1952 = vmatprep.subr.mxu0 0.0
    %1953 = vmatpush1.msra.mxu0 0.0
    %1954 = vmatprep.subr.mxu0 0.0
    %1955 = vmatpush1.msra.mxu0 0.0
    %1956 = vmatprep.subr.mxu0 0.0
    %1957 = vmatpush1.msra.mxu0 0.0
    %1958 = vmatprep.subr.mxu0 0.0
    %1959 = vmatpush1.msra.mxu0 0.0
    %1960 = vmatprep.subr.mxu0 0.0
    %1961 = vmatpush1.msra.mxu0 0.0
    %1962 = vmatprep.subr.mxu0 0.0
    %1963 = vmatpush1.msra.mxu0 0.0
    %1964 = vmatprep.subr.mxu0 0.0
    %1965 = vmatpush1.msra.mxu0 0.0
    %1966 = vmatprep.subr.mxu0 0.0
    %1967 = vmatpush1.msra.mxu0 0.0
    %1968 = vmatprep.subr.mxu0 0.0
    %1969 = vmatpush1.msra.mxu0 0.0
    %1970 = vmatprep.subr.mxu0 0.0
    %1971 = vmatpush1.msra.mxu0 0.0
    %1972 = vmatprep.subr.mxu0 0.0
    %1973 = vmatpush1.msra.mxu0 0.0
    %1974 = vmatprep.subr.mxu0 0.0
    %1975 = vmatpush1.msra.mxu0 0.0
    %1976 = vmatprep.subr.mxu0 0.0
    %1977 = vmatpush1.msra.mxu0 0.0
    %1978 = vmatprep.subr.mxu0 0.0
    %1979 = vmatpush1.msra.mxu0 0.0
    %1980 = vmatprep.subr.mxu0 0.0
    %1981 = vmatpush1.msra.mxu0 %v1950
    %1982 = vmatprep.subr.mxu0 0.0
    %1983 = vmatpush1.msra.mxu0 %v1943
    %1984 = vmatprep.subr.mxu0 0.0
    %1985 = vmatpush2.msra.mxu0 0.0
    %1986 = vmatprep.subr.mxu0 0.0
    %1987 = vmatpush2.msra.mxu0 0.0
    %1988 = vmatprep.subr.mxu0 0.0
    %1989 = vmatpush2.msra.mxu0 0.0
    %1990 = vmatprep.subr.mxu0 0.0
    %1991 = vmatpush2.msra.mxu0 0.0
    %1992 = vmatprep.subr.mxu0 0.0
    %1993 = vmatpush2.msra.mxu0 0.0
    %1994 = vmatprep.subr.mxu0 0.0
    %1995 = vmatpush2.msra.mxu0 0.0
    %1996 = vmatprep.subr.mxu0 0.0
    %1997 = vmatpush2.msra.mxu0 0.0
    %1998 = vmatprep.subr.mxu0 0.0
    %1999 = vmatpush2.msra.mxu0 0.0
    %2000 = vmatprep.subr.mxu0 0.0
    %2001 = vmatpush2.msra.mxu0 0.0
    %2002 = vmatprep.subr.mxu0 0.0
    %2003 = vmatpush2.msra.mxu0 0.0
    %2004 = vmatprep.subr.mxu0 0.0
    %2005 = vmatpush2.msra.mxu0 0.0
    %2006 = vmatprep.subr.mxu0 0.0
    %2007 = vmatpush2.msra.mxu0 0.0
    %2008 = vmatprep.subr.mxu0 0.0
    %2009 = vmatpush2.msra.mxu0 0.0
    %2010 = vmatprep.subr.mxu0 0.0
    %2011 = vmatpush2.msra.mxu0 0.0
    %2012 = vmatprep.subr.mxu0 0.0
    %2013 = vmatpush2.msra.mxu0 0.0
    %2014 = vmatprep.subr.mxu0 0.0
    %2015 = vmatpush2.msra.mxu0 0.0
    %2016 = vmatprep.mubr.f32.mxu0 0.0
    %2017 = vmatmul.mubr.f32.gmra.mxu0 %v1099
    %v2018 = vpop.f32.mrf.mxu0
    %v2019 = vadd.f32 0.0, %v2018
    %v2020 = vpop.f32.mrf.mxu0
    %2021 = vmatprep.mubr.f32.mxu0 0.0
    %2022 = vmatmul.mubr.f32.gmra.mxu0 %v1102
    %v2023 = vpop.f32.mrf.mxu0
    %v2024 = vadd.f32 0.0, %v2023
    %v2025 = vpop.f32.mrf.mxu0
    %2026 = vmatprep.mubr.f32.mxu0 0.0
    %2027 = vmatmul.mubr.f32.gmra.mxu0 %v1105
    %v2028 = vpop.f32.mrf.mxu0
    %v2029 = vadd.f32 0.0, %v2028
    %v2030 = vpop.f32.mrf.mxu0
    %2031 = vmatprep.mubr.f32.mxu0 0.0
    %2032 = vmatmul.mubr.f32.gmra.mxu0 %v1108
    %v2033 = vpop.f32.mrf.mxu0
    %v2034 = vadd.f32 0.0, %v2033
    %v2035 = vpop.f32.mrf.mxu0
    %2036 = vmatprep.mubr.f32.mxu0 0.0
    %2037 = vmatmul.mubr.f32.gmra.mxu0 %v1111
    %v2038 = vpop.f32.mrf.mxu0
    %v2039 = vadd.f32 0.0, %v2038
    %v2040 = vpop.f32.mrf.mxu0
    %2041 = vdwg.mxu0
    %v2042 = vmul.f32 %v2019, %v961
    %v2043 = vmul.f32 %v2024, %v962
    %v2044 = vmul.f32 %v2029, %v963
    %v2045 = vmul.f32 %v2034, %v964
    %v2046 = vmul.f32 %v2039, %v965
    %2048 = vrot.lane.b32.xlu0 %v1943, 96
    %v2049 = vpop.permute.xlu0 %2048
    %2050 = vrot.lane.b32.xlu0 %v1946, 96
    %v2051 = vpop.permute.xlu0 %2050
    %v2053 = vsel %vm1003, %v2042, 0
    %v2056 = vsel %vm1003, %v2043, 0
    %v2059 = vsel %vm1003, %v2044, 0
    %v2062 = vsel %vm1003, %v2045, 0
    %v2065 = vsel %vm1003, %v2046, 0
    %v2067 = vsel %vm1003, %v2049, 0
    %v2069 = vsel %vm1003, %v2051, 0
    %2071 = vmatprep.subr.mxu0 0.0
    %2072 = vmatpush1.xpose.msra.mxu0 0.0
    %2073 = vmatprep.subr.mxu0 0.0
    %2074 = vmatpush1.xpose.msra.mxu0 0.0
    %2075 = vmatprep.subr.mxu0 0.0
    %2076 = vmatpush1.xpose.msra.mxu0 0.0
    %2077 = vmatprep.subr.mxu0 0.0
    %2078 = vmatpush1.xpose.msra.mxu0 0.0
    %2079 = vmatprep.subr.mxu0 0.0
    %2080 = vmatpush1.xpose.msra.mxu0 0.0
    %2081 = vmatprep.subr.mxu0 0.0
    %2082 = vmatpush1.xpose.msra.mxu0 0.0
    %2083 = vmatprep.subr.mxu0 0.0
    %2084 = vmatpush1.xpose.msra.mxu0 0.0
    %2085 = vmatprep.subr.mxu0 0.0
    %2086 = vmatpush1.xpose.msra.mxu0 0.0
    %2087 = vmatprep.subr.mxu0 0.0
    %2088 = vmatpush1.xpose.msra.mxu0 0.0
    %2089 = vmatprep.subr.mxu0 0.0
    %2090 = vmatpush1.xpose.msra.mxu0 0.0
    %2091 = vmatprep.subr.mxu0 0.0
    %2092 = vmatpush1.xpose.msra.mxu0 0.0
    %2093 = vmatprep.subr.mxu0 0.0
    %2094 = vmatpush1.xpose.msra.mxu0 0.0
    %2095 = vmatprep.subr.mxu0 0.0
    %2096 = vmatpush1.xpose.msra.mxu0 0.0
    %2097 = vmatprep.subr.mxu0 0.0
    %2098 = vmatpush1.xpose.msra.mxu0 0.0
    %2099 = vmatprep.subr.mxu0 0.0
    %2100 = vmatpush1.xpose.msra.mxu0 %v2069
    %2101 = vmatprep.subr.mxu0 0.0
    %2102 = vmatpush1.xpose.msra.mxu0 %v2067
    %2103 = vmatprep.subr.mxu0 0.0
    %2104 = vmatpush2.xpose.msra.mxu0 0.0
    %2105 = vmatprep.subr.mxu0 0.0
    %2106 = vmatpush2.xpose.msra.mxu0 0.0
    %2107 = vmatprep.subr.mxu0 0.0
    %2108 = vmatpush2.xpose.msra.mxu0 0.0
    %2109 = vmatprep.subr.mxu0 0.0
    %2110 = vmatpush2.xpose.msra.mxu0 0.0
    %2111 = vmatprep.subr.mxu0 0.0
    %2112 = vmatpush2.xpose.msra.mxu0 0.0
    %2113 = vmatprep.subr.mxu0 0.0
    %2114 = vmatpush2.xpose.msra.mxu0 0.0
    %2115 = vmatprep.subr.mxu0 0.0
    %2116 = vmatpush2.xpose.msra.mxu0 0.0
    %2117 = vmatprep.subr.mxu0 0.0
    %2118 = vmatpush2.xpose.msra.mxu0 0.0
    %2119 = vmatprep.subr.mxu0 0.0
    %2120 = vmatpush2.xpose.msra.mxu0 0.0
    %2121 = vmatprep.subr.mxu0 0.0
    %2122 = vmatpush2.xpose.msra.mxu0 0.0
    %2123 = vmatprep.subr.mxu0 0.0
    %2124 = vmatpush2.xpose.msra.mxu0 0.0
    %2125 = vmatprep.subr.mxu0 0.0
    %2126 = vmatpush2.xpose.msra.mxu0 0.0
    %2127 = vmatprep.subr.mxu0 0.0
    %2128 = vmatpush2.xpose.msra.mxu0 0.0
    %2129 = vmatprep.subr.mxu0 0.0
    %2130 = vmatpush2.xpose.msra.mxu0 0.0
    %2131 = vmatprep.subr.mxu0 0.0
    %2132 = vmatpush2.xpose.msra.mxu0 0.0
    %2133 = vmatprep.subr.mxu0 0.0
    %2134 = vmatpush2.xpose.msra.mxu0 0.0
    %2135 = vmatprep.mubr.f32.mxu0 0.0
    %2136 = vmatmul.mubr.f32.gmra.mxu0 %v2053
    %v2137 = vpop.f32.mrf.mxu0
    %v2138 = vadd.f32 0.0, %v2137
    %v2139 = vpop.f32.mrf.mxu0
    %2140 = vmatprep.mubr.f32.mxu0 0.0
    %2141 = vmatmul.mubr.f32.gmra.mxu0 %v2056
    %v2142 = vpop.f32.mrf.mxu0
    %v2143 = vadd.f32 0.0, %v2142
    %v2144 = vpop.f32.mrf.mxu0
    %2145 = vmatprep.mubr.f32.mxu0 0.0
    %2146 = vmatmul.mubr.f32.gmra.mxu0 %v2059
    %v2147 = vpop.f32.mrf.mxu0
    %v2148 = vadd.f32 0.0, %v2147
    %v2149 = vpop.f32.mrf.mxu0
    %2150 = vmatprep.mubr.f32.mxu0 0.0
    %2151 = vmatmul.mubr.f32.gmra.mxu0 %v2062
    %v2152 = vpop.f32.mrf.mxu0
    %v2153 = vadd.f32 0.0, %v2152
    %v2154 = vpop.f32.mrf.mxu0
    %2155 = vmatprep.mubr.f32.mxu0 0.0
    %2156 = vmatmul.mubr.f32.gmra.mxu0 %v2065
    %v2157 = vpop.f32.mrf.mxu0
    %v2158 = vadd.f32 0.0, %v2157
    %v2159 = vpop.f32.mrf.mxu0
    %2160 = vdwg.mxu0
    %v2161 = vmul.f32 %v2138, 0.35355338
    %v2162 = vmul.f32 %v2143, 0.35355338
    %v2163 = vmul.f32 %v2148, 0.35355338
    %v2164 = vmul.f32 %v2153, 0.35355338
    %v2165 = vmul.f32 %v2158, 0.35355338
    %v2166 = vsel %vm859, %v2161, -1e+30
    %v2167 = vsel %vm860, %v2162, -1e+30
    %v2168 = vsel %vm861, %v2163, -1e+30
    %v2169 = vsel %vm862, %v2164, -1e+30
    %v2170 = vsel %vm863, %v2165, -1e+30
    %v2171 = vsel %vm1097, %v2166, -inf
    %2172 = vmax.xlane.f32.xlu0 %v2171
    %v2173 = vpop.xlane.xlu0 %2172
    %v2174 = vsel %vm1097, %v2167, -inf
    %2175 = vmax.xlane.f32.xlu0 %v2174
    %v2176 = vpop.xlane.xlu0 %2175
    %v2177 = vsel %vm1097, %v2168, -inf
    %2178 = vmax.xlane.f32.xlu0 %v2177
    %v2179 = vpop.xlane.xlu0 %2178
    %v2180 = vsel %vm1097, %v2169, -inf
    %2181 = vmax.xlane.f32.xlu0 %v2180
    %v2182 = vpop.xlane.xlu0 %2181
    %v2183 = vsel %vm1097, %v2170, -inf
    %2184 = vmax.xlane.f32.xlu0 %v2183
    %v2185 = vpop.xlane.xlu0 %2184
    %v2186 = vsub.f32 %v2166, %v2173
    %v2187 = vsub.f32 %v2167, %v2176
    %v2188 = vsub.f32 %v2168, %v2179
    %v2189 = vsub.f32 %v2169, %v2182
    %v2190 = vsub.f32 %v2170, %v2185
    %v2191 = vmul.f32 %v2186, 1.442695
    %v2192 = vpow.pop %v2191
    %v2193 = vmul.f32 %v2187, 1.442695
    %v2194 = vpow.pop %v2193
    %v2195 = vmul.f32 %v2188, 1.442695
    %v2196 = vpow.pop %v2195
    %v2197 = vmul.f32 %v2189, 1.442695
    %v2198 = vpow.pop %v2197
    %v2199 = vmul.f32 %v2190, 1.442695
    %v2200 = vpow.pop %v2199
    %v2201 = vsel %vm1097, %v2192, 0.0
    %2202 = vadd.xlane.f32.xlu0 %v2201
    %v2203 = vpop.xlane.xlu0 %2202
    %v2204 = vsel %vm1097, %v2194, 0.0
    %2205 = vadd.xlane.f32.xlu0 %v2204
    %v2206 = vpop.xlane.xlu0 %2205
    %v2207 = vsel %vm1097, %v2196, 0.0
    %2208 = vadd.xlane.f32.xlu0 %v2207
    %v2209 = vpop.xlane.xlu0 %2208
    %v2210 = vsel %vm1097, %v2198, 0.0
    %2211 = vadd.xlane.f32.xlu0 %v2210
    %v2212 = vpop.xlane.xlu0 %2211
    %v2213 = vsel %vm1097, %v2200, 0.0
    %2214 = vadd.xlane.f32.xlu0 %v2213
    %v2215 = vpop.xlane.xlu0 %2214
    %v2216 = vrcp.pop %v2203
    %v2217 = vrcp.pop %v2206
    %v2218 = vrcp.pop %v2209
    %v2219 = vrcp.pop %v2212
    %v2220 = vrcp.pop %v2215
    %v2221 = vmul.f32 %v2192, %v2216
    %v2222 = vmul.f32 %v2194, %v2217
    %v2223 = vmul.f32 %v2196, %v2218
    %v2224 = vmul.f32 %v2198, %v2219
    %v2225 = vmul.f32 %v2200, %v2220
    %2226 = vrot.lane.b32.xlu0 %v1943, 64
    %v2227 = vpop.permute.xlu0 %2226
    %2228 = vrot.lane.b32.xlu0 %v1946, 64
    %v2229 = vpop.permute.xlu0 %2228
    %v2232 = vsel %vm1097, %v2221, 0
    %v2235 = vsel %vm1097, %v2222, 0
    %v2238 = vsel %vm1097, %v2223, 0
    %v2241 = vsel %vm1097, %v2224, 0
    %v2244 = vsel %vm1097, %v2225, 0
    %v2246 = vsel %vm1113, %v2229, 0
    %2248 = vmatprep.subr.mxu0 0.0
    %2249 = vmatpush1.msra.mxu0 0.0
    %2250 = vmatprep.subr.mxu0 0.0
    %2251 = vmatpush1.msra.mxu0 0.0
    %2252 = vmatprep.subr.mxu0 0.0
    %2253 = vmatpush1.msra.mxu0 0.0
    %2254 = vmatprep.subr.mxu0 0.0
    %2255 = vmatpush1.msra.mxu0 0.0
    %2256 = vmatprep.subr.mxu0 0.0
    %2257 = vmatpush1.msra.mxu0 0.0
    %2258 = vmatprep.subr.mxu0 0.0
    %2259 = vmatpush1.msra.mxu0 0.0
    %2260 = vmatprep.subr.mxu0 0.0
    %2261 = vmatpush1.msra.mxu0 0.0
    %2262 = vmatprep.subr.mxu0 0.0
    %2263 = vmatpush1.msra.mxu0 0.0
    %2264 = vmatprep.subr.mxu0 0.0
    %2265 = vmatpush1.msra.mxu0 0.0
    %2266 = vmatprep.subr.mxu0 0.0
    %2267 = vmatpush1.msra.mxu0 0.0
    %2268 = vmatprep.subr.mxu0 0.0
    %2269 = vmatpush1.msra.mxu0 0.0
    %2270 = vmatprep.subr.mxu0 0.0
    %2271 = vmatpush1.msra.mxu0 0.0
    %2272 = vmatprep.subr.mxu0 0.0
    %2273 = vmatpush1.msra.mxu0 0.0
    %2274 = vmatprep.subr.mxu0 0.0
    %2275 = vmatpush1.msra.mxu0 0.0
    %2276 = vmatprep.subr.mxu0 0.0
    %2277 = vmatpush1.msra.mxu0 %v2246
    %2278 = vmatprep.subr.mxu0 0.0
    %2279 = vmatpush1.msra.mxu0 %v2227
    %2280 = vmatprep.subr.mxu0 0.0
    %2281 = vmatpush2.msra.mxu0 0.0
    %2282 = vmatprep.subr.mxu0 0.0
    %2283 = vmatpush2.msra.mxu0 0.0
    %2284 = vmatprep.subr.mxu0 0.0
    %2285 = vmatpush2.msra.mxu0 0.0
    %2286 = vmatprep.subr.mxu0 0.0
    %2287 = vmatpush2.msra.mxu0 0.0
    %2288 = vmatprep.subr.mxu0 0.0
    %2289 = vmatpush2.msra.mxu0 0.0
    %2290 = vmatprep.subr.mxu0 0.0
    %2291 = vmatpush2.msra.mxu0 0.0
    %2292 = vmatprep.subr.mxu0 0.0
    %2293 = vmatpush2.msra.mxu0 0.0
    %2294 = vmatprep.subr.mxu0 0.0
    %2295 = vmatpush2.msra.mxu0 0.0
    %2296 = vmatprep.subr.mxu0 0.0
    %2297 = vmatpush2.msra.mxu0 0.0
    %2298 = vmatprep.subr.mxu0 0.0
    %2299 = vmatpush2.msra.mxu0 0.0
    %2300 = vmatprep.subr.mxu0 0.0
    %2301 = vmatpush2.msra.mxu0 0.0
    %2302 = vmatprep.subr.mxu0 0.0
    %2303 = vmatpush2.msra.mxu0 0.0
    %2304 = vmatprep.subr.mxu0 0.0
    %2305 = vmatpush2.msra.mxu0 0.0
    %2306 = vmatprep.subr.mxu0 0.0
    %2307 = vmatpush2.msra.mxu0 0.0
    %2308 = vmatprep.subr.mxu0 0.0
    %2309 = vmatpush2.msra.mxu0 0.0
    %2310 = vmatprep.subr.mxu0 0.0
    %2311 = vmatpush2.msra.mxu0 0.0
    %2312 = vmatprep.mubr.f32.mxu0 0.0
    %2313 = vmatmul.mubr.f32.gmra.mxu0 %v2232
    %v2314 = vpop.f32.mrf.mxu0
    %v2315 = vadd.f32 0.0, %v2314
    %v2316 = vpop.f32.mrf.mxu0
    %2317 = vmatprep.mubr.f32.mxu0 0.0
    %2318 = vmatmul.mubr.f32.gmra.mxu0 %v2235
    %v2319 = vpop.f32.mrf.mxu0
    %v2320 = vadd.f32 0.0, %v2319
    %v2321 = vpop.f32.mrf.mxu0
    %2322 = vmatprep.mubr.f32.mxu0 0.0
    %2323 = vmatmul.mubr.f32.gmra.mxu0 %v2238
    %v2324 = vpop.f32.mrf.mxu0
    %v2325 = vadd.f32 0.0, %v2324
    %v2326 = vpop.f32.mrf.mxu0
    %2327 = vmatprep.mubr.f32.mxu0 0.0
    %2328 = vmatmul.mubr.f32.gmra.mxu0 %v2241
    %v2329 = vpop.f32.mrf.mxu0
    %v2330 = vadd.f32 0.0, %v2329
    %v2331 = vpop.f32.mrf.mxu0
    %2332 = vmatprep.mubr.f32.mxu0 0.0
    %2333 = vmatmul.mubr.f32.gmra.mxu0 %v2244
    %v2334 = vpop.f32.mrf.mxu0
    %v2335 = vadd.f32 0.0, %v2334
    %v2336 = vpop.f32.mrf.mxu0
    %2337 = vdwg.mxu0
    %v2338 = vmul.f32 %v2315, %v961
    %v2339 = vmul.f32 %v2320, %v962
    %v2340 = vmul.f32 %v2325, %v963
    %v2341 = vmul.f32 %v2330, %v964
    %v2342 = vmul.f32 %v2335, %v965
    %2343 = vmatprep.subr.mxu0 0.0
    %2344 = vmatpush1.msra.mxu0 0.0
    %2345 = vmatprep.subr.mxu0 0.0
    %2346 = vmatpush1.msra.mxu0 0.0
    %2347 = vmatprep.subr.mxu0 0.0
    %2348 = vmatpush1.msra.mxu0 0.0
    %2349 = vmatprep.subr.mxu0 0.0
    %2350 = vmatpush1.msra.mxu0 0.0
    %2351 = vmatprep.subr.mxu0 0.0
    %2352 = vmatpush1.msra.mxu0 0.0
    %2353 = vmatprep.subr.mxu0 0.0
    %2354 = vmatpush1.msra.mxu0 0.0
    %2355 = vmatprep.subr.mxu0 0.0
    %2356 = vmatpush1.msra.mxu0 0.0
    %2357 = vmatprep.subr.mxu0 0.0
    %2358 = vmatpush1.msra.mxu0 0.0
    %2359 = vmatprep.subr.mxu0 0.0
    %2360 = vmatpush1.msra.mxu0 0.0
    %2361 = vmatprep.subr.mxu0 0.0
    %2362 = vmatpush1.msra.mxu0 0.0
    %2363 = vmatprep.subr.mxu0 0.0
    %2364 = vmatpush1.msra.mxu0 0.0
    %2365 = vmatprep.subr.mxu0 0.0
    %2366 = vmatpush1.msra.mxu0 %v2342
    %2367 = vmatprep.subr.mxu0 0.0
    %2368 = vmatpush1.msra.mxu0 %v2341
    %2369 = vmatprep.subr.mxu0 0.0
    %2370 = vmatpush1.msra.mxu0 %v2340
    %2371 = vmatprep.subr.mxu0 0.0
    %2372 = vmatpush1.msra.mxu0 %v2339
    %2373 = vmatprep.subr.mxu0 0.0
    %2374 = vmatpush1.msra.mxu0 %v2338
    %2375 = vmatprep.subr.mxu0 0.0
    %2376 = vmatpush2.msra.mxu0 0.0
    %2377 = vmatprep.subr.mxu0 0.0
    %2378 = vmatpush2.msra.mxu0 0.0
    %2379 = vmatprep.subr.mxu0 0.0
    %2380 = vmatpush2.msra.mxu0 0.0
    %2381 = vmatprep.subr.mxu0 0.0
    %2382 = vmatpush2.msra.mxu0 0.0
    %2383 = vmatprep.subr.mxu0 0.0
    %2384 = vmatpush2.msra.mxu0 0.0
    %2385 = vmatprep.subr.mxu0 0.0
    %2386 = vmatpush2.msra.mxu0 0.0
    %2387 = vmatprep.subr.mxu0 0.0
    %2388 = vmatpush2.msra.mxu0 0.0
    %2389 = vmatprep.subr.mxu0 0.0
    %2390 = vmatpush2.msra.mxu0 0.0
    %2391 = vmatprep.subr.mxu0 0.0
    %2392 = vmatpush2.msra.mxu0 0.0
    %2393 = vmatprep.subr.mxu0 0.0
    %2394 = vmatpush2.msra.mxu0 0.0
    %2395 = vmatprep.subr.mxu0 0.0
    %2396 = vmatpush2.msra.mxu0 0.0
    %2397 = vmatprep.subr.mxu0 0.0
    %2398 = vmatpush2.msra.mxu0 0.0
    %2399 = vmatprep.subr.mxu0 0.0
    %2400 = vmatpush2.msra.mxu0 0.0
    %2401 = vmatprep.subr.mxu0 0.0
    %2402 = vmatpush2.msra.mxu0 0.0
    %2403 = vmatprep.subr.mxu0 0.0
    %2404 = vmatpush2.msra.mxu0 0.0
    %2405 = vmatprep.subr.mxu0 0.0
    %2406 = vmatpush2.msra.mxu0 0.0
    %2407 = vmatprep.mubr.f32.mxu0 0.0
    %2408 = vmatmul.mubr.f32.gmra.mxu0 %v1510
    %v2409 = vpop.f32.mrf.mxu0
    %v2410 = vadd.f32 0.0, %v2409
    %v2411 = vpop.f32.mrf.mxu0
    %2412 = vmatprep.mubr.f32.mxu0 0.0
    %2413 = vmatmul.mubr.f32.gmra.mxu0 %v1513
    %v2414 = vpop.f32.mrf.mxu0
    %v2415 = vadd.f32 0.0, %v2414
    %v2416 = vpop.f32.mrf.mxu0
    %2417 = vdwg.mxu0
    %v2418 = vpack.c.bf16 %v2415, %v2410
    %v2423 = vunpack.c.l.b16 %v1843
    %v2424 = vunpack.c.l.b16 %v1844
    %v2425 = vunpack.c.l.b16 %v1845
    %v2426 = vunpack.c.l.b16 %v1846
    %v2427 = vpack.c.b16 %v2424, %v2423
    %v2428 = vpack.c.b16 %v2426, %v2425
    %v2432 = vsel %vm1003, %v2418, 0
    %2434 = vmatprep.subr.bf16.mxu0 0
    %2435 = vmatpush1.bf16.msra.mxu0 0
    %2436 = vmatprep.subr.bf16.mxu0 0
    %2437 = vmatpush1.bf16.msra.mxu0 0
    %2438 = vmatprep.subr.bf16.mxu0 0
    %2439 = vmatpush1.bf16.msra.mxu0 0
    %2440 = vmatprep.subr.bf16.mxu0 0
    %2441 = vmatpush1.bf16.msra.mxu0 0
    %2442 = vmatprep.subr.bf16.mxu0 0
    %2443 = vmatpush1.bf16.msra.mxu0 0
    %2444 = vmatprep.subr.bf16.mxu0 0
    %2445 = vmatpush1.bf16.msra.mxu0 0
    %2446 = vmatprep.subr.bf16.mxu0 0
    %2447 = vmatpush1.bf16.msra.mxu0 %v2428
    %2448 = vmatprep.subr.bf16.mxu0 0
    %2449 = vmatpush1.bf16.msra.mxu0 %v2427
    %2450 = vmatprep.subr.bf16.mxu0 0
    %2451 = vmatpush2.bf16.msra.mxu0 0
    %2452 = vmatprep.subr.bf16.mxu0 0
    %2453 = vmatpush2.bf16.msra.mxu0 0
    %2454 = vmatprep.subr.bf16.mxu0 0
    %2455 = vmatpush2.bf16.msra.mxu0 0
    %2456 = vmatprep.subr.bf16.mxu0 0
    %2457 = vmatpush2.bf16.msra.mxu0 0
    %2458 = vmatprep.subr.bf16.mxu0 0
    %2459 = vmatpush2.bf16.msra.mxu0 0
    %2460 = vmatprep.subr.bf16.mxu0 0
    %2461 = vmatpush2.bf16.msra.mxu0 0
    %2462 = vmatprep.subr.bf16.mxu0 0
    %2463 = vmatpush2.bf16.msra.mxu0 0
    %2464 = vmatprep.subr.bf16.mxu0 0
    %2465 = vmatpush2.bf16.msra.mxu0 0
    %2466 = vmatprep.mubr.bf16.mxu0 0
    %2467 = vmatmul.mubr.bf16.gmra.mxu0 %v2432
    %v2468 = vpop.f32.mrf.mxu0
    %v2469 = vadd.f32 0.0, %v2468
    %v2470 = vpop.f32.mrf.mxu0
    %v2471 = vpop.f32.mrf.mxu0
    %v2472 = vadd.f32 0.0, %v2471
    %v2473 = vpop.f32.mrf.mxu0
    %2474 = vdwg.mxu0
    %v2475 = vadd.f32 %v1840, %v2469
    %v2476 = vadd.f32 %v1841, %v2472
    %v2477 = vlaneseq
    %v2478 = vshrl.u32 %v2477, 7
    %v2479 = vsub.s32 1, %v2478
    %v2480 = vrot.slane %v1856, %v2479
    %v2481 = vadd.f32 %v2475, %v2480
    %v2482 = vadd.f32 %v2476, %v2480
    %v2483 = vsel %vm1003, %v2481, 0.0
    %2484 = vadd.xlane.f32.xlu0 %v2483
    %v2485 = vpop.xlane.xlu0 %2484
    %v2486 = vsel %vm1007, %v2482, 0.0
    %2487 = vadd.xlane.f32.xlu0 %v2486
    %v2488 = vpop.xlane.xlu0 %2487
    %v2489 = vmul.f32 %v2485, %v1011
    %v2490 = vmul.f32 %v2488, %v1011
    %v2491 = vsub.f32 %v2481, %v2489
    %v2492 = vsub.f32 %v2482, %v2490
    %v2493 = vmul.f32 %v2491, %v2491
    %v2494 = vmul.f32 %v2492, %v2492
    %v2495 = vsel %vm1003, %v2493, 0.0
    %2496 = vadd.xlane.f32.xlu0 %v2495
    %v2497 = vpop.xlane.xlu0 %2496
    %v2498 = vsel %vm1007, %v2494, 0.0
    %2499 = vadd.xlane.f32.xlu0 %v2498
    %v2500 = vpop.xlane.xlu0 %2499
    %v2501 = vmul.f32 %v2497, %v1011
    %v2502 = vmul.f32 %v2500, %v1011
    %v2503 = vadd.f32 %v2501, 1e-12
    %v2504 = vadd.f32 %v2502, 1e-12
    %v2505 = vrsqrt.pop %v2503
    %v2506 = vrsqrt.pop %v2504
    %v2507 = vmul.f32 %v2491, %v2505
    %v2508 = vmul.f32 %v2492, %v2506
    %v2509 = vpack.c.bf16 %v2508, %v2507
    %s2510 = scalar_lea.vmem %s5, 16
    %v2511 = vld [vmem:[%s2510] sm:$0xf]
    %v2512 = vld [vmem:[%s2510 + $0x4] sm:$0xf]
    %v2513 = vld [vmem:[%s2510 + $0x8] sm:$0xf]
    %v2514 = vld [vmem:[%s2510 + $0xc] sm:$0xf]
    %v2515 = vlaneseq
    %v2516 = vshrl.u32 %v2515, 7
    %v2517 = vsub.s32 2, %v2516
    %v2518 = vrot.slane %v1856, %v2517
    %v2523 = vunpack.c.l.b16 %v2511
    %v2524 = vunpack.c.l.b16 %v2512
    %v2525 = vunpack.c.l.b16 %v2513
    %v2526 = vunpack.c.l.b16 %v2514
    %v2527 = vpack.c.b16 %v2524, %v2523
    %v2528 = vpack.c.b16 %v2526, %v2525
    %v2532 = vsel %vm1003, %v2509, 0
    %2534 = vmatprep.subr.bf16.mxu0 0
    %2535 = vmatpush1.bf16.msra.mxu0 0
    %2536 = vmatprep.subr.bf16.mxu0 0
    %2537 = vmatpush1.bf16.msra.mxu0 0
    %2538 = vmatprep.subr.bf16.mxu0 0
    %2539 = vmatpush1.bf16.msra.mxu0 0
    %2540 = vmatprep.subr.bf16.mxu0 0
    %2541 = vmatpush1.bf16.msra.mxu0 0
    %2542 = vmatprep.subr.bf16.mxu0 0
    %2543 = vmatpush1.bf16.msra.mxu0 0
    %2544 = vmatprep.subr.bf16.mxu0 0
    %2545 = vmatpush1.bf16.msra.mxu0 0
    %2546 = vmatprep.subr.bf16.mxu0 0
    %2547 = vmatpush1.bf16.msra.mxu0 %v2528
    %2548 = vmatprep.subr.bf16.mxu0 0
    %2549 = vmatpush1.bf16.msra.mxu0 %v2527
    %2550 = vmatprep.subr.bf16.mxu0 0
    %2551 = vmatpush2.bf16.msra.mxu0 0
    %2552 = vmatprep.subr.bf16.mxu0 0
    %2553 = vmatpush2.bf16.msra.mxu0 0
    %2554 = vmatprep.subr.bf16.mxu0 0
    %2555 = vmatpush2.bf16.msra.mxu0 0
    %2556 = vmatprep.subr.bf16.mxu0 0
    %2557 = vmatpush2.bf16.msra.mxu0 0
    %2558 = vmatprep.subr.bf16.mxu0 0
    %2559 = vmatpush2.bf16.msra.mxu0 0
    %2560 = vmatprep.subr.bf16.mxu0 0
    %2561 = vmatpush2.bf16.msra.mxu0 0
    %2562 = vmatprep.subr.bf16.mxu0 0
    %2563 = vmatpush2.bf16.msra.mxu0 0
    %2564 = vmatprep.subr.bf16.mxu0 0
    %2565 = vmatpush2.bf16.msra.mxu0 0
    %2566 = vmatprep.mubr.bf16.mxu0 0
    %2567 = vmatmul.mubr.bf16.gmra.mxu0 %v2532
    %v2568 = vpop.f32.mrf.mxu0
    %v2569 = vadd.f32 %v2518, %v2568
    %v2570 = vpop.f32.mrf.mxu0
    %v2571 = vpop.f32.mrf.mxu0
    %v2572 = vadd.f32 %v2518, %v2571
    %v2573 = vpop.f32.mrf.mxu0
    %2574 = vdwg.mxu0
    %v2575 = vmul.f32 %v2569, %v2569
    %v2576 = vmul.f32 %v2572, %v2572
    %v2577 = vmul.f32 %v2569, %v2575
    %v2578 = vmul.f32 %v2572, %v2576
    %v2579 = vmul.f32 %v2577, 0.044715
    %v2580 = vmul.f32 %v2578, 0.044715
    %v2581 = vadd.f32 %v2569, %v2579
    %v2582 = vadd.f32 %v2572, %v2580
    %v2583 = vmul.f32 %v2581, 0.7978846
    %v2584 = vmul.f32 %v2582, 0.7978846
    %v2585 = vtanh.pop %v2583
    %v2586 = vtanh.pop %v2584
    %v2587 = vadd.f32 %v2585, 1.0
    %v2588 = vadd.f32 %v2586, 1.0
    %v2589 = vmul.f32 %v2587, 0.5
    %v2590 = vmul.f32 %v2588, 0.5
    %v2591 = vmul.f32 %v2569, %v2589
    %v2592 = vmul.f32 %v2572, %v2590
    %v2593 = vpack.c.bf16 %v2592, %v2591
    %v2602 = vunpack.c.l.b16 %v1847
    %v2603 = vunpack.c.l.b16 %v1848
    %v2604 = vunpack.c.l.b16 %v1849
    %v2605 = vunpack.c.l.b16 %v1850
    %v2606 = vunpack.c.l.b16 %v1851
    %v2607 = vunpack.c.l.b16 %v1852
    %v2608 = vunpack.c.l.b16 %v1853
    %v2609 = vunpack.c.l.b16 %v1854
    %v2610 = vpack.c.b16 %v2603, %v2602
    %v2611 = vpack.c.b16 %v2605, %v2604
    %v2612 = vpack.c.b16 %v2607, %v2606
    %v2613 = vpack.c.b16 %v2609, %v2608
    %v2619 = vsel %vm1789, %v2593, 0
    %2621 = vmatprep.subr.bf16.mxu0 0
    %2622 = vmatpush1.bf16.msra.mxu0 0
    %2623 = vmatprep.subr.bf16.mxu0 0
    %2624 = vmatpush1.bf16.msra.mxu0 0
    %2625 = vmatprep.subr.bf16.mxu0 0
    %2626 = vmatpush1.bf16.msra.mxu0 0
    %2627 = vmatprep.subr.bf16.mxu0 0
    %2628 = vmatpush1.bf16.msra.mxu0 0
    %2629 = vmatprep.subr.bf16.mxu0 0
    %2630 = vmatpush1.bf16.msra.mxu0 %v2613
    %2631 = vmatprep.subr.bf16.mxu0 0
    %2632 = vmatpush1.bf16.msra.mxu0 %v2612
    %2633 = vmatprep.subr.bf16.mxu0 0
    %2634 = vmatpush1.bf16.msra.mxu0 %v2611
    %2635 = vmatprep.subr.bf16.mxu0 0
    %2636 = vmatpush1.bf16.msra.mxu0 %v2610
    %2637 = vmatprep.subr.bf16.mxu0 0
    %2638 = vmatpush2.bf16.msra.mxu0 0
    %2639 = vmatprep.subr.bf16.mxu0 0
    %2640 = vmatpush2.bf16.msra.mxu0 0
    %2641 = vmatprep.subr.bf16.mxu0 0
    %2642 = vmatpush2.bf16.msra.mxu0 0
    %2643 = vmatprep.subr.bf16.mxu0 0
    %2644 = vmatpush2.bf16.msra.mxu0 0
    %2645 = vmatprep.subr.bf16.mxu0 0
    %2646 = vmatpush2.bf16.msra.mxu0 0
    %2647 = vmatprep.subr.bf16.mxu0 0
    %2648 = vmatpush2.bf16.msra.mxu0 0
    %2649 = vmatprep.subr.bf16.mxu0 0
    %2650 = vmatpush2.bf16.msra.mxu0 0
    %2651 = vmatprep.subr.bf16.mxu0 0
    %2652 = vmatpush2.bf16.msra.mxu0 0
    %2653 = vmatprep.mubr.bf16.mxu0 0
    %2654 = vmatmul.mubr.bf16.gmra.mxu0 %v2619
    %v2655 = vpop.f32.mrf.mxu0
    %v2656 = vadd.f32 0.0, %v2655
    %v2657 = vpop.f32.mrf.mxu0
    %v2658 = vpop.f32.mrf.mxu0
    %v2659 = vadd.f32 0.0, %v2658
    %v2660 = vpop.f32.mrf.mxu0
    %2661 = vdwg.mxu0
    %v2662 = vadd.f32 %v2481, %v2656
    %v2663 = vadd.f32 %v2482, %v2659
    %v2664 = vlaneseq
    %v2665 = vshrl.u32 %v2664, 7
    %v2666 = vsub.s32 3, %v2665
    %v2667 = vrot.slane %v1856, %v2666
    %v2668 = vadd.f32 %v2662, %v2667
    %v2669 = vadd.f32 %v2663, %v2667
    %v2670 = vmul.u32 %v580, 5
    %vm2671 = vcmp.eq.s32.totalorder %v586, %v2670
    %v2672 = vsel %vm2671, 1, 0
    %v2673 = vcvt.s32.f32 %v2672
    %v2675 = vsel %vm1097, %v2673, 0
    %v2678 = vsel %vm1113, %v2669, 0
    %2680 = vmatprep.subr.mxu0 0.0
    %2681 = vmatpush1.msra.mxu0 0.0
    %2682 = vmatprep.subr.mxu0 0.0
    %2683 = vmatpush1.msra.mxu0 0.0
    %2684 = vmatprep.subr.mxu0 0.0
    %2685 = vmatpush1.msra.mxu0 0.0
    %2686 = vmatprep.subr.mxu0 0.0
    %2687 = vmatpush1.msra.mxu0 0.0
    %2688 = vmatprep.subr.mxu0 0.0
    %2689 = vmatpush1.msra.mxu0 0.0
    %2690 = vmatprep.subr.mxu0 0.0
    %2691 = vmatpush1.msra.mxu0 0.0
    %2692 = vmatprep.subr.mxu0 0.0
    %2693 = vmatpush1.msra.mxu0 0.0
    %2694 = vmatprep.subr.mxu0 0.0
    %2695 = vmatpush1.msra.mxu0 0.0
    %2696 = vmatprep.subr.mxu0 0.0
    %2697 = vmatpush1.msra.mxu0 0.0
    %2698 = vmatprep.subr.mxu0 0.0
    %2699 = vmatpush1.msra.mxu0 0.0
    %2700 = vmatprep.subr.mxu0 0.0
    %2701 = vmatpush1.msra.mxu0 0.0
    %2702 = vmatprep.subr.mxu0 0.0
    %2703 = vmatpush1.msra.mxu0 0.0
    %2704 = vmatprep.subr.mxu0 0.0
    %2705 = vmatpush1.msra.mxu0 0.0
    %2706 = vmatprep.subr.mxu0 0.0
    %2707 = vmatpush1.msra.mxu0 0.0
    %2708 = vmatprep.subr.mxu0 0.0
    %2709 = vmatpush1.msra.mxu0 %v2678
    %2710 = vmatprep.subr.mxu0 0.0
    %2711 = vmatpush1.msra.mxu0 %v2668
    %2712 = vmatprep.subr.mxu0 0.0
    %2713 = vmatpush2.msra.mxu0 0.0
    %2714 = vmatprep.subr.mxu0 0.0
    %2715 = vmatpush2.msra.mxu0 0.0
    %2716 = vmatprep.subr.mxu0 0.0
    %2717 = vmatpush2.msra.mxu0 0.0
    %2718 = vmatprep.subr.mxu0 0.0
    %2719 = vmatpush2.msra.mxu0 0.0
    %2720 = vmatprep.subr.mxu0 0.0
    %2721 = vmatpush2.msra.mxu0 0.0
    %2722 = vmatprep.subr.mxu0 0.0
    %2723 = vmatpush2.msra.mxu0 0.0
    %2724 = vmatprep.subr.mxu0 0.0
    %2725 = vmatpush2.msra.mxu0 0.0
    %2726 = vmatprep.subr.mxu0 0.0
    %2727 = vmatpush2.msra.mxu0 0.0
    %2728 = vmatprep.subr.mxu0 0.0
    %2729 = vmatpush2.msra.mxu0 0.0
    %2730 = vmatprep.subr.mxu0 0.0
    %2731 = vmatpush2.msra.mxu0 0.0
    %2732 = vmatprep.subr.mxu0 0.0
    %2733 = vmatpush2.msra.mxu0 0.0
    %2734 = vmatprep.subr.mxu0 0.0
    %2735 = vmatpush2.msra.mxu0 0.0
    %2736 = vmatprep.subr.mxu0 0.0
    %2737 = vmatpush2.msra.mxu0 0.0
    %2738 = vmatprep.subr.mxu0 0.0
    %2739 = vmatpush2.msra.mxu0 0.0
    %2740 = vmatprep.subr.mxu0 0.0
    %2741 = vmatpush2.msra.mxu0 0.0
    %2742 = vmatprep.subr.mxu0 0.0
    %2743 = vmatpush2.msra.mxu0 0.0
    %2744 = vmatprep.mubr.f32.mxu0 0.0
    %2745 = vmatmul.mubr.f32.gmra.mxu0 %v2675
    %v2746 = vpop.f32.mrf.mxu0
    %v2747 = vadd.f32 0.0, %v2746
    %v2748 = vpop.f32.mrf.mxu0
    %2749 = vdwg.mxu0
    %v2750 = vsel %vm1007, %v2747, 0.0
    %2751 = vadd.xlane.f32.xlu0 %v2750
    %v2752 = vpop.xlane.xlu0 %2751
    %v2753 = vmul.f32 %v2752, %v1011
    %v2754 = vsub.f32 %v2747, %v2753
    %v2755 = vmul.f32 %v2754, %v2754
    %v2756 = vsel %vm1007, %v2755, 0.0
    %2757 = vadd.xlane.f32.xlu0 %v2756
    %v2758 = vpop.xlane.xlu0 %2757
    %v2759 = vmul.f32 %v2758, %v1011
    %v2760 = vadd.f32 %v2759, 1e-12
    %v2761 = vrsqrt.pop %v2760
    %v2762 = vmul.f32 %v2754, %v2761
    %v2763 = vld [vmem:[%s7] sm:$0xff]
    %v2764 = vld [vmem:[%s7 + $0x8] sm:$0xff]
    %v2765 = vld [vmem:[%s7 + $0x10] sm:$0xff]
    %v2766 = vld [vmem:[%s7 + $0x18] sm:$0xff]
    %v2767 = vld [vmem:[%s8] sm:$0x1]
    %v2769 = vlaneseq
    %v2770 = vshrl.u32 %v2769, 7
    %v2771 = vsub.s32 0, %v2770
    %v2772 = vrot.slane %v2767, %v2771
    %v2775 = vsel %vm1003, %v2762, 0
    %2777 = vmatprep.subr.mxu0 0.0
    %2778 = vmatpush1.msra.mxu0 0.0
    %2779 = vmatprep.subr.mxu0 0.0
    %2780 = vmatpush1.msra.mxu0 0.0
    %2781 = vmatprep.subr.mxu0 0.0
    %2782 = vmatpush1.msra.mxu0 0.0
    %2783 = vmatprep.subr.mxu0 0.0
    %2784 = vmatpush1.msra.mxu0 0.0
    %2785 = vmatprep.subr.mxu0 0.0
    %2786 = vmatpush1.msra.mxu0 0.0
    %2787 = vmatprep.subr.mxu0 0.0
    %2788 = vmatpush1.msra.mxu0 0.0
    %2789 = vmatprep.subr.mxu0 0.0
    %2790 = vmatpush1.msra.mxu0 0.0
    %2791 = vmatprep.subr.mxu0 0.0
    %2792 = vmatpush1.msra.mxu0 0.0
    %2793 = vmatprep.subr.mxu0 0.0
    %2794 = vmatpush1.msra.mxu0 0.0
    %2795 = vmatprep.subr.mxu0 0.0
    %2796 = vmatpush1.msra.mxu0 0.0
    %2797 = vmatprep.subr.mxu0 0.0
    %2798 = vmatpush1.msra.mxu0 0.0
    %2799 = vmatprep.subr.mxu0 0.0
    %2800 = vmatpush1.msra.mxu0 0.0
    %2801 = vmatprep.subr.mxu0 0.0
    %2802 = vmatpush1.msra.mxu0 %v2766
    %2803 = vmatprep.subr.mxu0 0.0
    %2804 = vmatpush1.msra.mxu0 %v2765
    %2805 = vmatprep.subr.mxu0 0.0
    %2806 = vmatpush1.msra.mxu0 %v2764
    %2807 = vmatprep.subr.mxu0 0.0
    %2808 = vmatpush1.msra.mxu0 %v2763
    %2809 = vmatprep.subr.mxu0 0.0
    %2810 = vmatpush2.msra.mxu0 0.0
    %2811 = vmatprep.subr.mxu0 0.0
    %2812 = vmatpush2.msra.mxu0 0.0
    %2813 = vmatprep.subr.mxu0 0.0
    %2814 = vmatpush2.msra.mxu0 0.0
    %2815 = vmatprep.subr.mxu0 0.0
    %2816 = vmatpush2.msra.mxu0 0.0
    %2817 = vmatprep.subr.mxu0 0.0
    %2818 = vmatpush2.msra.mxu0 0.0
    %2819 = vmatprep.subr.mxu0 0.0
    %2820 = vmatpush2.msra.mxu0 0.0
    %2821 = vmatprep.subr.mxu0 0.0
    %2822 = vmatpush2.msra.mxu0 0.0
    %2823 = vmatprep.subr.mxu0 0.0
    %2824 = vmatpush2.msra.mxu0 0.0
    %2825 = vmatprep.subr.mxu0 0.0
    %2826 = vmatpush2.msra.mxu0 0.0
    %2827 = vmatprep.subr.mxu0 0.0
    %2828 = vmatpush2.msra.mxu0 0.0
    %2829 = vmatprep.subr.mxu0 0.0
    %2830 = vmatpush2.msra.mxu0 0.0
    %2831 = vmatprep.subr.mxu0 0.0
    %2832 = vmatpush2.msra.mxu0 0.0
    %2833 = vmatprep.subr.mxu0 0.0
    %2834 = vmatpush2.msra.mxu0 0.0
    %2835 = vmatprep.subr.mxu0 0.0
    %2836 = vmatpush2.msra.mxu0 0.0
    %2837 = vmatprep.subr.mxu0 0.0
    %2838 = vmatpush2.msra.mxu0 0.0
    %2839 = vmatprep.subr.mxu0 0.0
    %2840 = vmatpush2.msra.mxu0 0.0
    %2841 = vmatprep.mubr.f32.mxu0 0.0
    %2842 = vmatmul.mubr.f32.gmra.mxu0 %v2775
    %v2843 = vpop.f32.mrf.mxu0
    %v2844 = vadd.f32 %v2772, %v2843
    %v2845 = vpop.f32.mrf.mxu0
    %2846 = vdwg.mxu0
    %vm2847 = vcmask 9216
    %2848 = vst.msk [vmem:[#allocation2] sm:$0x3] %vm2847, %v2844
    // Predicated region
    $region38: #{_lambda_.1} parent=1 // pred_check
      _
    $region39: #{_lambda_.1} parent=1 // pred_check_branch
      %2850 = sbr.rel (0) target = $region41
    $region40: #{_lambda_.1} parent=1 // pred_region
      %s2852 = ssub.s32 32, 32
      %2853 = vsyncadd [#allocation3], %s2852
      %s2855 = sshll.u32 [#allocation2], 4
      %s2856 = int_to_ptr.vmem [resolvable:$true] %s2855
      %2858 = dma.vmem_to_hbm [thread:$0]  %s2856, 32, %s9, [#allocation3]
    $region41: #{_lambda_.1} parent=1 // pred_fallthru
      _
    // Predicated region
    $region42: #{_lambda_.1} parent=1 // pred_check
      _
    $region43: #{_lambda_.1} parent=1 // pred_check_branch
      %2860 = sbr.rel (0) target = $region45
    $region44: #{_lambda_.1} parent=1 // pred_region
      %2861 = dma.done [#allocation3], 32
    $region45: #{_lambda_.1} parent=1 // pred_fallthru
      _
    %2862 = vsyncpa [#allocation3], 1

</llo_original>
